<compile_context>
chip_gen: v6e
topology: v6e:2x2x1
jax: 0.10.0
libtpu: 0.0.40
codegen_flags: <defaults>
</compile_context>

<pallas_src>
import functools
import math

import jax
import jax.numpy as jnp
from jax.experimental import pallas as pl
from jax.experimental.pallas import tpu as pltpu

SCALE = 0.7071067811865476  # sqrt(0.5), matches torch.sqrt(FloatTensor([0.5]))


def _round_up(x, m):
    return ((x + m - 1) // m) * m


def _cdiv(a, b):
    return (a + b - 1) // b


def _default_matmul_dtype():
    """bf16 MXU operands on v6e/v7x (per perf review); f32 elsewhere for exact parity."""
    try:
        kind = jax.devices()[0].device_kind.lower()
    except Exception:  # pragma: no cover - defensive only
        return jnp.float32
    if ("v6" in kind) or ("v7" in kind) or ("7x" in kind) or ("trillium" in kind):
        return jnp.bfloat16
    return jnp.float32


# ---------------------------------------------------------------------------
# Fused encoder kernel (one grid step = BB whole sequences, RB = BB * L rows)
# ---------------------------------------------------------------------------
def _encoder_kernel(src_ref, pos_ref, mask_ref,
                    w_e2h_ref, b_e2h_ref,
                    w_glu_ref, b_glu_ref,
                    w_h2e_ref, b_h2e_ref,
                    emb_out_ref, conv_out_ref,
                    *, n_layers, k_taps, pad_t, h_pad, mm_dtype):
    """Shapes (lane dims padded to multiples of 128):

    src_ref   : (RB, E_pad)            flattened (batch*seq, emb) block
    pos_ref   : (RB, E_pad)            positional rows tiled over the BB sequences
    mask_ref  : (K, RB, 1)             per-tap sequence-boundary validity masks
    w_e2h_ref : (E_pad, H_pad)         b_e2h_ref : (1, H_pad)
    w_glu_ref : (N*K, H_pad, 2*H_pad)  fused GLU weights ("a" half lanes [0, H_pad),
                                       gate half lanes [H_pad, 2*H_pad))
    b_glu_ref : (N, 1, 2*H_pad)
    w_h2e_ref : (H_pad, E_pad)         b_h2e_ref : (1, E_pad)
    emb_out_ref, conv_out_ref : (RB, E_pad)
    """
    # embedded = src + pos_embedding
    emb = src_ref[...] + pos_ref[...]
    emb_out_ref[...] = emb.astype(emb_out_ref.dtype)

    # conv_input = tanh(embedded @ W_e2h + b)   (MXU, f32 accumulate)
    h = jnp.tanh(
        jnp.dot(emb.astype(mm_dtype), w_e2h_ref[...],
                preferred_element_type=jnp.float32)
        + b_e2h_ref[...]
    )  # (RB, H_pad) f32

    rb = h.shape[0]
    # conv / GLU / residual stack; weights resident in VMEM.
    for i in range(n_layers):
        h_mm = h.astype(mm_dtype)                       # center tap: no shift, no mask
        acc = None
        for t in range(k_taps):
            s = t - pad_t                               # tap offset within the sequence
            if s == 0:
                hs = h_mm
            else:
                # shifted[r] = h[r + s]: XLU sublane roll + VPU boundary mask.
                # (np.roll convention: roll(h, -s)[r] == h[r + s]; the mask zeroes
                #  rows whose source position falls outside its own sequence, which
                #  also covers the wrap-around at the tile edges.)
                rolled = pltpu.roll(h, shift=(-s) % rb, axis=0)
                hs = (rolled * mask_ref[t]).astype(mm_dtype)
            d = jnp.dot(hs, w_glu_ref[i * k_taps + t],
                        preferred_element_type=jnp.float32)      # (RB, 2*H_pad)
            acc = d if acc is None else acc + d
        acc = acc + b_glu_ref[i]
        a = acc[:, :h_pad]            # 128-aligned lane split -> free
        g = acc[:, h_pad:]
        h = (a * jax.nn.sigmoid(g) + h) * SCALE         # GLU + residual + scale

    # conved = tanh(h @ W_h2e + b)
    conved = jnp.tanh(
        jnp.dot(h.astype(mm_dtype), w_h2e_ref[...],
                preferred_element_type=jnp.float32)
        + b_h2e_ref[...]
    )
    conv_out_ref[...] = conved.astype(conv_out_ref.dtype)


# ---------------------------------------------------------------------------
# Encoder forward (padding / packing in plain JAX, hot path in one pallas_call)
# ---------------------------------------------------------------------------
def encoder_forward(src, params, matmul_dtype=None):
    """src: (B, L, E) float32 (pre-embedded tokens, as in the PyTorch forward)."""
    f32 = jnp.float32
    if matmul_dtype is None:
        matmul_dtype = _default_matmul_dtype()

    B, L, E = src.shape
    conv_w = params["conv_w"]  # (N, K, H, 2H)
    conv_b = params["conv_b"]  # (N, 1, 2H)
    N_LAYERS, K, H, _ = conv_w.shape
    pad_t = (K - 1) // 2       # odd kernel size (asserted by the PyTorch module)

    E_pad = _round_up(E, 128)
    H_pad = _round_up(H, 128)

    # --- rows per grid tile: whole sequences, sublane aligned, MXU-M filling -----
    sub = 16 if matmul_dtype == jnp.bfloat16 else 8      # sublane packing granularity
    bb_step = sub // math.gcd(L, sub)                    # sequences so RB % sub == 0
    target_rows = 256                                    # fill the 256-wide MXU M dim
    BB = _round_up(max(1, _cdiv(target_rows, L)), bb_step)   # NOT capped by raw B
    RB = BB * L                                          # rows per grid tile
    B_pad = _round_up(B, BB)
    num_tiles = B_pad // BB      # > 1 whenever the batch provides it -> megacore split
    M_rows = B_pad * L

    # --- pad / flatten activations (lane dim -> multiple of 128) ---------------
    src_p = (jnp.zeros((B_pad, L, E_pad), f32)
             .at[:B, :, :E].set(src.astype(f32))
             .reshape(M_rows, E_pad))

    pos = params["pos_embedding"][:L]                                  # (L, E)
    pos_p = jnp.zeros((L, E_pad), f32).at[:, :E].set(pos)
    pos_tile = jnp.tile(pos_p, (BB, 1))                                # (RB, E_pad)

    # --- per-tap validity masks (zero rows whose source is outside its sequence) -
    lpos = jnp.arange(RB) % L
    masks = jnp.stack(
        [((lpos + (t - pad_t) >= 0) & (lpos + (t - pad_t) < L)).astype(f32)[:, None]
         for t in range(K)],
        axis=0)                                                        # (K, RB, 1)

    # --- pad weights (matmul operands in matmul_dtype, biases stay f32) ---------
    w_e2h = (jnp.zeros((E_pad, H_pad), f32)
             .at[:E, :H].set(params["w_e2h"]).astype(matmul_dtype))
    b_e2h = jnp.zeros((1, H_pad), f32).at[:, :H].set(params["b_e2h"])
    w_h2e = (jnp.zeros((H_pad, E_pad), f32)
             .at[:H, :E].set(params["w_h2e"]).astype(matmul_dtype))
    b_h2e = jnp.zeros((1, E_pad), f32).at[:, :E].set(params["b_h2e"])

    # Fused GLU weights: one (H_pad -> 2*H_pad) matmul per tap; "a" half in lanes
    # [0, H_pad), gate half in lanes [H_pad, 2*H_pad) so the in-kernel split is free.
    w_glu = (jnp.zeros((N_LAYERS, K, H_pad, 2 * H_pad), f32)
             .at[:, :, :H, :H].set(conv_w[..., :H])
             .at[:, :, :H, H_pad:H_pad + H].set(conv_w[..., H:])
             .reshape(N_LAYERS * K, H_pad, 2 * H_pad)
             .astype(matmul_dtype))
    b_glu = (jnp.zeros((N_LAYERS, 1, 2 * H_pad), f32)
             .at[:, :, :H].set(conv_b[..., :H])
             .at[:, :, H_pad:H_pad + H].set(conv_b[..., H:]))

    inputs = (src_p, pos_tile, masks, w_e2h, b_e2h, w_glu, b_glu, w_h2e, b_h2e)

    # --- cost estimate (advisory) ----------------------------------------------
    flops = num_tiles * (
        2 * RB * E_pad * H_pad
        + N_LAYERS * K * 2 * RB * H_pad * (2 * H_pad)
        + 2 * RB * H_pad * E_pad
    )
    transcendentals = num_tiles * RB * (H_pad + N_LAYERS * H_pad + E_pad)
    bytes_accessed = (sum(int(x.size) * x.dtype.itemsize for x in inputs)
                      + 2 * M_rows * E_pad * 4)

    kernel = functools.partial(
        _encoder_kernel, n_layers=N_LAYERS, k_taps=K, pad_t=pad_t,
        h_pad=H_pad, mm_dtype=matmul_dtype)

    emb_out, conv_out = pl.pallas_call(
        kernel,
        out_shape=(
            jax.ShapeDtypeStruct((M_rows, E_pad), f32),
            jax.ShapeDtypeStruct((M_rows, E_pad), f32),
        ),
        grid=(num_tiles,),
        in_specs=[
            pl.BlockSpec((RB, E_pad), lambda i: (i, 0)),                         # src
            pl.BlockSpec((RB, E_pad), lambda i: (0, 0)),                         # pos tile
            pl.BlockSpec((K, RB, 1), lambda i: (0, 0, 0)),                       # tap masks
            pl.BlockSpec((E_pad, H_pad), lambda i: (0, 0)),                      # w_e2h
            pl.BlockSpec((1, H_pad), lambda i: (0, 0)),                          # b_e2h
            pl.BlockSpec((N_LAYERS * K, H_pad, 2 * H_pad), lambda i: (0, 0, 0)), # w_glu
            pl.BlockSpec((N_LAYERS, 1, 2 * H_pad), lambda i: (0, 0, 0)),         # b_glu
            pl.BlockSpec((H_pad, E_pad), lambda i: (0, 0)),                      # w_h2e
            pl.BlockSpec((1, E_pad), lambda i: (0, 0)),                          # b_h2e
        ],
        out_specs=(
            pl.BlockSpec((RB, E_pad), lambda i: (i, 0)),
            pl.BlockSpec((RB, E_pad), lambda i: (i, 0)),
        ),
        compiler_params=pltpu.CompilerParams(
            dimension_semantics=("parallel",),     # batch-tile axis -> megacore on v7x
            vmem_limit_bytes=48 * 1024 * 1024,     # explicit; fits v7x's 64 MiB w/ headroom
        ),
        cost_estimate=pl.CostEstimate(
            flops=int(flops),
            transcendentals=int(transcendentals),
            bytes_accessed=int(bytes_accessed),
        ),
    )(*inputs)

    embedded = emb_out.reshape(B_pad, L, E_pad)[:B, :, :E]
    conved = conv_out.reshape(B_pad, L, E_pad)[:B, :, :E]
    # `combined = (conved + embedded) * SCALE` is computed by the PyTorch module but
    # never returned; the module returns (conved, embedded), which we match exactly.
    return conved, embedded


# ---------------------------------------------------------------------------
# Pure-JAX reference (for a correctness sanity check)
# ---------------------------------------------------------------------------
def encoder_reference(src, params):
    L = src.shape[1]
    embedded = src + params["pos_embedding"][:L][None]
    conv_input = jnp.tanh(embedded @ params["w_e2h"] + params["b_e2h"][0])
    n_layers, K, H, _ = params["conv_w"].shape
    pad = (K - 1) // 2
    for i in range(n_layers):
        x = conv_input
        xp = jnp.pad(x, ((0, 0), (pad, pad), (0, 0)))
        out = jnp.zeros((x.shape[0], L, 2 * H), jnp.float32) + params["conv_b"][i][0]
        for t in range(K):
            out = out + jnp.einsum("blh,ho->blo", xp[:, t:t + L], params["conv_w"][i][t])
        a, g = out[..., :H], out[..., H:]
        conv_input = (a * jax.nn.sigmoid(g) + x) * SCALE
    conved = jnp.tanh(conv_input @ params["w_h2e"] + params["b_h2e"][0])
    return conved, embedded


# ---------------------------------------------------------------------------
# Main
# ---------------------------------------------------------------------------
if __name__ == "__main__":
    # Small config consistent with the module: emb_dim=32, hid_dim=32,
    # n_layers=2, kernel_size=3, batch=2, seq=8, max_length=150.
    B, L, E, H = 2, 8, 32, 32
    N_LAYERS, K, MAX_LEN = 2, 3, 150

    key = jax.random.PRNGKey(0)
    keys = jax.random.split(key, 8)

    params = {
        "pos_embedding": 0.1 * jax.random.normal(keys[0], (MAX_LEN, E), jnp.float32),
        "w_e2h": 0.1 * jax.random.normal(keys[1], (E, H), jnp.float32),
        "b_e2h": 0.1 * jax.random.normal(keys[2], (1, H), jnp.float32),
        "w_h2e": 0.1 * jax.random.normal(keys[3], (H, E), jnp.float32),
        "b_h2e": 0.1 * jax.random.normal(keys[4], (1, E), jnp.float32),
        "conv_w": 0.1 * jax.random.normal(keys[5], (N_LAYERS, K, H, 2 * H), jnp.float32),
        "conv_b": 0.1 * jax.random.normal(keys[6], (N_LAYERS, 1, 2 * H), jnp.float32),
    }

    src = jax.random.normal(keys[7], (B, L, E), jnp.float32)

    fwd = jax.jit(encoder_forward)
    conved, embedded = jax.block_until_ready(fwd(src, params))

    conved_ref, embedded_ref = encoder_reference(src, params)
    assert conved.shape == (B, L, E) and embedded.shape == (B, L, E)

    # Tolerance is chosen deliberately per matmul-operand dtype: exact-parity f32
    # path keeps 1e-5; the bf16-MXU path on v6e/v7x allows quantization error.
    mm_dtype = _default_matmul_dtype()
    tol = 2e-2 if mm_dtype == jnp.bfloat16 else 1e-5
    assert jnp.allclose(embedded, embedded_ref, atol=1e-5, rtol=1e-5)  # no matmul -> exact
    assert jnp.allclose(conved, conved_ref, atol=tol, rtol=tol)

    print("KERNEL_OK")
</pallas_src>

<mosaic_0001>
module attributes {stable_mosaic.version = 11 : i64} {
  func.func @_encoder_kernel(%arg0: i32, %arg1: memref<256x128xf32, #tpu.memory_space<vmem>>, %arg2: memref<256x128xf32, #tpu.memory_space<vmem>>, %arg3: memref<3x256x1xf32, #tpu.memory_space<vmem>>, %arg4: memref<128x128xf32, #tpu.memory_space<vmem>>, %arg5: memref<1x128xf32, #tpu.memory_space<vmem>>, %arg6: memref<6x128x256xf32, #tpu.memory_space<vmem>>, %arg7: memref<2x1x256xf32, #tpu.memory_space<vmem>>, %arg8: memref<128x128xf32, #tpu.memory_space<vmem>>, %arg9: memref<1x128xf32, #tpu.memory_space<vmem>>, %arg10: memref<256x128xf32, #tpu.memory_space<vmem>>, %arg11: memref<256x128xf32, #tpu.memory_space<vmem>>) attributes {dimension_semantics = [#tpu.dimension_semantics<parallel>], iteration_bounds = array<i64: 1>, scalar_prefetch = 0 : i64, scratch_operands = 0 : i64, tpu.core_type = #tpu.core_type<tc>, window_params = [{transform_indices = @transform_0, window_bounds = array<i64: 256, 128>}, {pipeline_mode = #tpu.pipeline_mode<synchronous>, transform_indices = @transform_1, window_bounds = array<i64: 256, 128>}, {pipeline_mode = #tpu.pipeline_mode<synchronous>, transform_indices = @transform_2, window_bounds = array<i64: 3, 256, 1>}, {pipeline_mode = #tpu.pipeline_mode<synchronous>, transform_indices = @transform_3, window_bounds = array<i64: 128, 128>}, {pipeline_mode = #tpu.pipeline_mode<synchronous>, transform_indices = @transform_4, window_bounds = array<i64: 1, 128>}, {pipeline_mode = #tpu.pipeline_mode<synchronous>, transform_indices = @transform_5, window_bounds = array<i64: 6, 128, 256>}, {pipeline_mode = #tpu.pipeline_mode<synchronous>, transform_indices = @transform_6, window_bounds = array<i64: 2, 1, 256>}, {pipeline_mode = #tpu.pipeline_mode<synchronous>, transform_indices = @transform_7, window_bounds = array<i64: 128, 128>}, {pipeline_mode = #tpu.pipeline_mode<synchronous>, transform_indices = @transform_8, window_bounds = array<i64: 1, 128>}, {transform_indices = @transform_9, window_bounds = array<i64: 256, 128>}, {transform_indices = @transform_10, window_bounds = array<i64: 256, 128>}]} {
    %c0 = arith.constant 0 : index
    %c0_0 = arith.constant 0 : index
    %0 = vector.load %arg1[%c0, %c0_0] : memref<256x128xf32, #tpu.memory_space<vmem>>, vector<256x128xf32>
    %c0_1 = arith.constant 0 : index
    %c0_2 = arith.constant 0 : index
    %1 = vector.load %arg2[%c0_1, %c0_2] : memref<256x128xf32, #tpu.memory_space<vmem>>, vector<256x128xf32>
    %2 = arith.addf %0, %1 : vector<256x128xf32>
    %c0_3 = arith.constant 0 : index
    %c0_4 = arith.constant 0 : index
    %3 = vector.load %arg10[%c0_3, %c0_4] : memref<256x128xf32, #tpu.memory_space<vmem>>, vector<256x128xf32>
    tpu.vector_store %arg10[%c0_3, %c0_4], %2 {strides = array<i32>} : memref<256x128xf32, #tpu.memory_space<vmem>>, vector<256x128xf32>,
    %c0_5 = arith.constant 0 : index
    %c0_6 = arith.constant 0 : index
    %4 = vector.load %arg4[%c0_5, %c0_6] : memref<128x128xf32, #tpu.memory_space<vmem>>, vector<128x128xf32>
    %cst = arith.constant dense<0.000000e+00> : vector<256x128xf32>
    %5 = tpu.matmul %2, %4, %cst {dimension_numbers = #tpu.dot_dimension_numbers<[1], [0], [0], [1], [0, 0, 1, 1], [], []>} : vector<256x128xf32>, vector<128x128xf32>, vector<256x128xf32> -> vector<256x128xf32>
    %c0_7 = arith.constant 0 : index
    %c0_8 = arith.constant 0 : index
    %6 = vector.load %arg5[%c0_7, %c0_8] : memref<1x128xf32, #tpu.memory_space<vmem>>, vector<1x128xf32>
    %7 = vector.broadcast %6 : vector<1x128xf32> to vector<256x128xf32>
    %8 = arith.addf %5, %7 : vector<256x128xf32>
    %9 = math.tanh %8 : vector<256x128xf32>
    %c1_i32 = arith.constant 1 : i32
    %10 = tpu.dynamic_rotate %9 by %c1_i32 dim 0 : vector<256x128xf32>, i32 -> vector<256x128xf32>
    %c0_9 = arith.constant 0 : index
    %c0_10 = arith.constant 0 : index
    %c0_11 = arith.constant 0 : index
    %11 = vector.load %arg3[%c0_9, %c0_10, %c0_11] : memref<3x256x1xf32, #tpu.memory_space<vmem>>, vector<1x256x1xf32>
    %12 = vector.shape_cast %11 : vector<1x256x1xf32> to vector<256x1xf32>
    %13 = vector.broadcast %12 : vector<256x1xf32> to vector<256x128xf32>
    %14 = arith.mulf %10, %13 : vector<256x128xf32>
    %c0_12 = arith.constant 0 : index
    %c0_13 = arith.constant 0 : index
    %c0_14 = arith.constant 0 : index
    %15 = vector.load %arg6[%c0_12, %c0_13, %c0_14] : memref<6x128x256xf32, #tpu.memory_space<vmem>>, vector<1x128x256xf32>
    %16 = vector.shape_cast %15 : vector<1x128x256xf32> to vector<128x256xf32>
    %cst_15 = arith.constant dense<0.000000e+00> : vector<256x256xf32>
    %17 = tpu.matmul %14, %16, %cst_15 {dimension_numbers = #tpu.dot_dimension_numbers<[1], [0], [0], [1], [0, 0, 1, 1], [], []>} : vector<256x128xf32>, vector<128x256xf32>, vector<256x256xf32> -> vector<256x256xf32>
    %c1 = arith.constant 1 : index
    %c0_16 = arith.constant 0 : index
    %c0_17 = arith.constant 0 : index
    %18 = vector.load %arg6[%c1, %c0_16, %c0_17] : memref<6x128x256xf32, #tpu.memory_space<vmem>>, vector<1x128x256xf32>
    %19 = vector.shape_cast %18 : vector<1x128x256xf32> to vector<128x256xf32>
    %cst_18 = arith.constant dense<0.000000e+00> : vector<256x256xf32>
    %20 = tpu.matmul %9, %19, %cst_18 {dimension_numbers = #tpu.dot_dimension_numbers<[1], [0], [0], [1], [0, 0, 1, 1], [], []>} : vector<256x128xf32>, vector<128x256xf32>, vector<256x256xf32> -> vector<256x256xf32>
    %21 = arith.addf %17, %20 : vector<256x256xf32>
    %c255_i32 = arith.constant 255 : i32
    %22 = tpu.dynamic_rotate %9 by %c255_i32 dim 0 : vector<256x128xf32>, i32 -> vector<256x128xf32>
    %c2 = arith.constant 2 : index
    %c0_19 = arith.constant 0 : index
    %c0_20 = arith.constant 0 : index
    %23 = vector.load %arg3[%c2, %c0_19, %c0_20] : memref<3x256x1xf32, #tpu.memory_space<vmem>>, vector<1x256x1xf32>
    %24 = vector.shape_cast %23 : vector<1x256x1xf32> to vector<256x1xf32>
    %25 = vector.broadcast %24 : vector<256x1xf32> to vector<256x128xf32>
    %26 = arith.mulf %22, %25 : vector<256x128xf32>
    %c2_21 = arith.constant 2 : index
    %c0_22 = arith.constant 0 : index
    %c0_23 = arith.constant 0 : index
    %27 = vector.load %arg6[%c2_21, %c0_22, %c0_23] : memref<6x128x256xf32, #tpu.memory_space<vmem>>, vector<1x128x256xf32>
    %28 = vector.shape_cast %27 : vector<1x128x256xf32> to vector<128x256xf32>
    %cst_24 = arith.constant dense<0.000000e+00> : vector<256x256xf32>
    %29 = tpu.matmul %26, %28, %cst_24 {dimension_numbers = #tpu.dot_dimension_numbers<[1], [0], [0], [1], [0, 0, 1, 1], [], []>} : vector<256x128xf32>, vector<128x256xf32>, vector<256x256xf32> -> vector<256x256xf32>
    %30 = arith.addf %21, %29 : vector<256x256xf32>
    %c0_25 = arith.constant 0 : index
    %c0_26 = arith.constant 0 : index
    %c0_27 = arith.constant 0 : index
    %31 = vector.load %arg7[%c0_25, %c0_26, %c0_27] : memref<2x1x256xf32, #tpu.memory_space<vmem>>, vector<1x1x256xf32>
    %32 = vector.shape_cast %31 : vector<1x1x256xf32> to vector<1x256xf32>
    %33 = vector.broadcast %32 : vector<1x256xf32> to vector<256x256xf32>
    %34 = arith.addf %30, %33 : vector<256x256xf32>
    %35 = vector.extract_strided_slice %34 {offsets = [0, 0], sizes = [256, 128], strides = [1, 1]} : vector<256x256xf32> to vector<256x128xf32>
    %36 = vector.extract_strided_slice %34 {offsets = [0, 128], sizes = [256, 128], strides = [1, 1]} : vector<256x256xf32> to vector<256x128xf32>
    %37 = arith.negf %36 : vector<256x128xf32>
    %38 = math.exp %37 : vector<256x128xf32>
    %cst_28 = arith.constant 1.000000e+00 : f32
    %39 = vector.broadcast %cst_28 : f32 to vector<256x128xf32>
    %40 = arith.addf %39, %38 : vector<256x128xf32>
    %41 = arith.divf %39, %40 : vector<256x128xf32>
    %42 = arith.mulf %35, %41 : vector<256x128xf32>
    %43 = arith.addf %42, %9 : vector<256x128xf32>
    %cst_29 = arith.constant 0.707106769 : f32
    %44 = vector.broadcast %cst_29 : f32 to vector<256x128xf32>
    %45 = arith.mulf %43, %44 : vector<256x128xf32>
    %c1_i32_30 = arith.constant 1 : i32
    %46 = tpu.dynamic_rotate %45 by %c1_i32_30 dim 0 : vector<256x128xf32>, i32 -> vector<256x128xf32>
    %c0_31 = arith.constant 0 : index
    %c0_32 = arith.constant 0 : index
    %c0_33 = arith.constant 0 : index
    %47 = vector.load %arg3[%c0_31, %c0_32, %c0_33] : memref<3x256x1xf32, #tpu.memory_space<vmem>>, vector<1x256x1xf32>
    %48 = vector.shape_cast %47 : vector<1x256x1xf32> to vector<256x1xf32>
    %49 = vector.broadcast %48 : vector<256x1xf32> to vector<256x128xf32>
    %50 = arith.mulf %46, %49 : vector<256x128xf32>
    %c3 = arith.constant 3 : index
    %c0_34 = arith.constant 0 : index
    %c0_35 = arith.constant 0 : index
    %51 = vector.load %arg6[%c3, %c0_34, %c0_35] : memref<6x128x256xf32, #tpu.memory_space<vmem>>, vector<1x128x256xf32>
    %52 = vector.shape_cast %51 : vector<1x128x256xf32> to vector<128x256xf32>
    %cst_36 = arith.constant dense<0.000000e+00> : vector<256x256xf32>
    %53 = tpu.matmul %50, %52, %cst_36 {dimension_numbers = #tpu.dot_dimension_numbers<[1], [0], [0], [1], [0, 0, 1, 1], [], []>} : vector<256x128xf32>, vector<128x256xf32>, vector<256x256xf32> -> vector<256x256xf32>
    %c4 = arith.constant 4 : index
    %c0_37 = arith.constant 0 : index
    %c0_38 = arith.constant 0 : index
    %54 = vector.load %arg6[%c4, %c0_37, %c0_38] : memref<6x128x256xf32, #tpu.memory_space<vmem>>, vector<1x128x256xf32>
    %55 = vector.shape_cast %54 : vector<1x128x256xf32> to vector<128x256xf32>
    %cst_39 = arith.constant dense<0.000000e+00> : vector<256x256xf32>
    %56 = tpu.matmul %45, %55, %cst_39 {dimension_numbers = #tpu.dot_dimension_numbers<[1], [0], [0], [1], [0, 0, 1, 1], [], []>} : vector<256x128xf32>, vector<128x256xf32>, vector<256x256xf32> -> vector<256x256xf32>
    %57 = arith.addf %53, %56 : vector<256x256xf32>
    %c255_i32_40 = arith.constant 255 : i32
    %58 = tpu.dynamic_rotate %45 by %c255_i32_40 dim 0 : vector<256x128xf32>, i32 -> vector<256x128xf32>
    %c2_41 = arith.constant 2 : index
    %c0_42 = arith.constant 0 : index
    %c0_43 = arith.constant 0 : index
    %59 = vector.load %arg3[%c2_41, %c0_42, %c0_43] : memref<3x256x1xf32, #tpu.memory_space<vmem>>, vector<1x256x1xf32>
    %60 = vector.shape_cast %59 : vector<1x256x1xf32> to vector<256x1xf32>
    %61 = vector.broadcast %60 : vector<256x1xf32> to vector<256x128xf32>
    %62 = arith.mulf %58, %61 : vector<256x128xf32>
    %c5 = arith.constant 5 : index
    %c0_44 = arith.constant 0 : index
    %c0_45 = arith.constant 0 : index
    %63 = vector.load %arg6[%c5, %c0_44, %c0_45] : memref<6x128x256xf32, #tpu.memory_space<vmem>>, vector<1x128x256xf32>
    %64 = vector.shape_cast %63 : vector<1x128x256xf32> to vector<128x256xf32>
    %cst_46 = arith.constant dense<0.000000e+00> : vector<256x256xf32>
    %65 = tpu.matmul %62, %64, %cst_46 {dimension_numbers = #tpu.dot_dimension_numbers<[1], [0], [0], [1], [0, 0, 1, 1], [], []>} : vector<256x128xf32>, vector<128x256xf32>, vector<256x256xf32> -> vector<256x256xf32>
    %66 = arith.addf %57, %65 : vector<256x256xf32>
    %c1_47 = arith.constant 1 : index
    %c0_48 = arith.constant 0 : index
    %c0_49 = arith.constant 0 : index
    %67 = vector.load %arg7[%c1_47, %c0_48, %c0_49] : memref<2x1x256xf32, #tpu.memory_space<vmem>>, vector<1x1x256xf32>
    %68 = vector.shape_cast %67 : vector<1x1x256xf32> to vector<1x256xf32>
    %69 = vector.broadcast %68 : vector<1x256xf32> to vector<256x256xf32>
    %70 = arith.addf %66, %69 : vector<256x256xf32>
    %71 = vector.extract_strided_slice %70 {offsets = [0, 0], sizes = [256, 128], strides = [1, 1]} : vector<256x256xf32> to vector<256x128xf32>
    %72 = vector.extract_strided_slice %70 {offsets = [0, 128], sizes = [256, 128], strides = [1, 1]} : vector<256x256xf32> to vector<256x128xf32>
    %73 = arith.negf %72 : vector<256x128xf32>
    %74 = math.exp %73 : vector<256x128xf32>
    %cst_50 = arith.constant 1.000000e+00 : f32
    %75 = vector.broadcast %cst_50 : f32 to vector<256x128xf32>
    %76 = arith.addf %75, %74 : vector<256x128xf32>
    %77 = arith.divf %75, %76 : vector<256x128xf32>
    %78 = arith.mulf %71, %77 : vector<256x128xf32>
    %79 = arith.addf %78, %45 : vector<256x128xf32>
    %cst_51 = arith.constant 0.707106769 : f32
    %80 = vector.broadcast %cst_51 : f32 to vector<256x128xf32>
    %81 = arith.mulf %79, %80 : vector<256x128xf32>
    %c0_52 = arith.constant 0 : index
    %c0_53 = arith.constant 0 : index
    %82 = vector.load %arg8[%c0_52, %c0_53] : memref<128x128xf32, #tpu.memory_space<vmem>>, vector<128x128xf32>
    %cst_54 = arith.constant dense<0.000000e+00> : vector<256x128xf32>
    %83 = tpu.matmul %81, %82, %cst_54 {dimension_numbers = #tpu.dot_dimension_numbers<[1], [0], [0], [1], [0, 0, 1, 1], [], []>} : vector<256x128xf32>, vector<128x128xf32>, vector<256x128xf32> -> vector<256x128xf32>
    %c0_55 = arith.constant 0 : index
    %c0_56 = arith.constant 0 : index
    %84 = vector.load %arg9[%c0_55, %c0_56] : memref<1x128xf32, #tpu.memory_space<vmem>>, vector<1x128xf32>
    %85 = vector.broadcast %84 : vector<1x128xf32> to vector<256x128xf32>
    %86 = arith.addf %83, %85 : vector<256x128xf32>
    %87 = math.tanh %86 : vector<256x128xf32>
    %c0_57 = arith.constant 0 : index
    %c0_58 = arith.constant 0 : index
    %88 = vector.load %arg11[%c0_57, %c0_58] : memref<256x128xf32, #tpu.memory_space<vmem>>, vector<256x128xf32>
    tpu.vector_store %arg11[%c0_57, %c0_58], %87 {strides = array<i32>} : memref<256x128xf32, #tpu.memory_space<vmem>>, vector<256x128xf32>,
    return
  }
  func.func @transform_0(%arg0: i32) -> (i32, i32) {
    %c0_i32 = arith.constant 0 : i32
    %c0_i32_0 = arith.constant 0 : i32
    return %arg0, %c0_i32 : i32, i32
  }
  func.func @transform_1(%arg0: i32) -> (i32, i32) {
    %c0_i32 = arith.constant 0 : i32
    %c0_i32_0 = arith.constant 0 : i32
    %c0_i32_1 = arith.constant 0 : i32
    return %c0_i32, %c0_i32_0 : i32, i32
  }
  func.func @transform_2(%arg0: i32) -> (i32, i32, i32) {
    %c0_i32 = arith.constant 0 : i32
    %c0_i32_0 = arith.constant 0 : i32
    %c0_i32_1 = arith.constant 0 : i32
    %c0_i32_2 = arith.constant 0 : i32
    return %c0_i32, %c0_i32_0, %c0_i32_1 : i32, i32, i32
  }
  func.func @transform_3(%arg0: i32) -> (i32, i32) {
    %c0_i32 = arith.constant 0 : i32
    %c0_i32_0 = arith.constant 0 : i32
    %c0_i32_1 = arith.constant 0 : i32
    return %c0_i32, %c0_i32_0 : i32, i32
  }
  func.func @transform_4(%arg0: i32) -> (i32, i32) {
    %c0_i32 = arith.constant 0 : i32
    %c0_i32_0 = arith.constant 0 : i32
    %c0_i32_1 = arith.constant 0 : i32
    return %c0_i32, %c0_i32_0 : i32, i32
  }
  func.func @transform_5(%arg0: i32) -> (i32, i32, i32) {
    %c0_i32 = arith.constant 0 : i32
    %c0_i32_0 = arith.constant 0 : i32
    %c0_i32_1 = arith.constant 0 : i32
    %c0_i32_2 = arith.constant 0 : i32
    return %c0_i32, %c0_i32_0, %c0_i32_1 : i32, i32, i32
  }
  func.func @transform_6(%arg0: i32) -> (i32, i32, i32) {
    %c0_i32 = arith.constant 0 : i32
    %c0_i32_0 = arith.constant 0 : i32
    %c0_i32_1 = arith.constant 0 : i32
    %c0_i32_2 = arith.constant 0 : i32
    return %c0_i32, %c0_i32_0, %c0_i32_1 : i32, i32, i32
  }
  func.func @transform_7(%arg0: i32) -> (i32, i32) {
    %c0_i32 = arith.constant 0 : i32
    %c0_i32_0 = arith.constant 0 : i32
    %c0_i32_1 = arith.constant 0 : i32
    return %c0_i32, %c0_i32_0 : i32, i32
  }
  func.func @transform_8(%arg0: i32) -> (i32, i32) {
    %c0_i32 = arith.constant 0 : i32
    %c0_i32_0 = arith.constant 0 : i32
    %c0_i32_1 = arith.constant 0 : i32
    return %c0_i32, %c0_i32_0 : i32, i32
  }
  func.func @transform_9(%arg0: i32) -> (i32, i32) {
    %c0_i32 = arith.constant 0 : i32
    %c0_i32_0 = arith.constant 0 : i32
    return %arg0, %c0_i32 : i32, i32
  }
  func.func @transform_10(%arg0: i32) -> (i32, i32) {
    %c0_i32 = arith.constant 0 : i32
    %c0_i32_0 = arith.constant 0 : i32
    return %arg0, %c0_i32 : i32, i32
  }
}

</mosaic_0001>

<llo_original>
// kernel: encoder_forward.1
$region0: #{encoder_forward.1}
  #allocation0 [shape = 'u32[]', space=smem, size = 0x4, offset = 0x4, fixed_abs, tag = 'smem constant byte address 0x4 - core index']
  #allocation1 [shape = 'u32[144,128]{1,0:T(1,128)}', space=vmem, size = 0x12000, scoped, tag = 'internal scratch']
  %s0 = inlined_call_operand.vmem [shape: f32[256,128], index: 0, kind: input, shape index: {}]
  %s1 = inlined_call_operand.vmem [shape: f32[256,128], index: 1, kind: input, shape index: {}]
  %s2 = inlined_call_operand.vmem [shape: f32[3,256,1], index: 2, kind: input, shape index: {}]
  %s3 = inlined_call_operand.vmem [shape: f32[128,128], index: 3, kind: input, shape index: {}]
  %s4 = inlined_call_operand.vmem [shape: f32[1,128], index: 4, kind: input, shape index: {}]
  %s5 = inlined_call_operand.vmem [shape: f32[6,128,256], index: 5, kind: input, shape index: {}]
  %s6 = inlined_call_operand.vmem [shape: f32[2,1,256], index: 6, kind: input, shape index: {}]
  %s7 = inlined_call_operand.vmem [shape: f32[128,128], index: 7, kind: input, shape index: {}]
  %s8 = inlined_call_operand.vmem [shape: f32[1,128], index: 8, kind: input, shape index: {}]
  %s9 = inlined_call_operand.vmem [shape: f32[256,128], index: 9, kind: output, shape index: {0}]
  %s10 = inlined_call_operand.vmem [shape: f32[256,128], index: 10, kind: output, shape index: {1}]
  %11 = xla_tuple %s9, %s10
  %s12 = sld [smem:[#allocation0]]
  $region54: #{encoder_forward.1} parent=0
    _
  %s14 = ssub.s32 1, %s12
  %s15 = scalar_select 0, %s14, %s12
  // Predicated region
  $region2: #{encoder_forward.1} parent=0 // pred_check
    _
  $region3: #{encoder_forward.1} parent=0 // pred_check_branch
    %17 = sbr.rel (0) target = $region5
  $region4: #{encoder_forward.1} parent=0 // pred_region
    _
  $region5: #{encoder_forward.1} parent=0 // pred_fallthru
    _
  // Predicated region
  $region6: #{encoder_forward.1} parent=0 // pred_check
    _
  $region7: #{encoder_forward.1} parent=0 // pred_check_branch
    %19 = sbr.rel (0) target = $region9
  $region8: #{encoder_forward.1} parent=0 // pred_region
    _
  $region9: #{encoder_forward.1} parent=0 // pred_fallthru
    _
  // Predicated region
  $region10: #{encoder_forward.1} parent=0 // pred_check
    _
  $region11: #{encoder_forward.1} parent=0 // pred_check_branch
    %21 = sbr.rel (0) target = $region13
  $region12: #{encoder_forward.1} parent=0 // pred_region
    _
  $region13: #{encoder_forward.1} parent=0 // pred_fallthru
    _
  // Predicated region
  $region14: #{encoder_forward.1} parent=0 // pred_check
    _
  $region15: #{encoder_forward.1} parent=0 // pred_check_branch
    %23 = sbr.rel (0) target = $region17
  $region16: #{encoder_forward.1} parent=0 // pred_region
    _
  $region17: #{encoder_forward.1} parent=0 // pred_fallthru
    _
  // Predicated region
  $region18: #{encoder_forward.1} parent=0 // pred_check
    _
  $region19: #{encoder_forward.1} parent=0 // pred_check_branch
    %25 = sbr.rel (0) target = $region21
  $region20: #{encoder_forward.1} parent=0 // pred_region
    _
  $region21: #{encoder_forward.1} parent=0 // pred_fallthru
    _
  // Predicated region
  $region22: #{encoder_forward.1} parent=0 // pred_check
    _
  $region23: #{encoder_forward.1} parent=0 // pred_check_branch
    %27 = sbr.rel (0) target = $region25
  $region24: #{encoder_forward.1} parent=0 // pred_region
    _
  $region25: #{encoder_forward.1} parent=0 // pred_fallthru
    _
  // Predicated region
  $region26: #{encoder_forward.1} parent=0 // pred_check
    _
  $region27: #{encoder_forward.1} parent=0 // pred_check_branch
    %29 = sbr.rel (0) target = $region29
  $region28: #{encoder_forward.1} parent=0 // pred_region
    _
  $region29: #{encoder_forward.1} parent=0 // pred_fallthru
    _
  // Predicated region
  $region30: #{encoder_forward.1} parent=0 // pred_check
    _
  $region31: #{encoder_forward.1} parent=0 // pred_check_branch
    %31 = sbr.rel (0) target = $region33
  $region32: #{encoder_forward.1} parent=0 // pred_region
    _
  $region33: #{encoder_forward.1} parent=0 // pred_fallthru
    _
  // Predicated region
  $region34: #{encoder_forward.1} parent=0 // pred_check
    _
  $region35: #{encoder_forward.1} parent=0 // pred_check_branch
    %33 = sbr.rel (0) target = $region37
  $region36: #{encoder_forward.1} parent=0 // pred_region
    _
  $region37: #{encoder_forward.1} parent=0 // pred_fallthru
    _
  %v34 = vld [vmem:[%s0] sm:$0xff]
  %v35 = vld [vmem:[%s0 + $0x8] sm:$0xff]
  %v36 = vld [vmem:[%s0 + $0x10] sm:$0xff]
  %v37 = vld [vmem:[%s0 + $0x18] sm:$0xff]
  %v38 = vld [vmem:[%s0 + $0x20] sm:$0xff]
  %v39 = vld [vmem:[%s0 + $0x28] sm:$0xff]
  %v40 = vld [vmem:[%s0 + $0x30] sm:$0xff]
  %v41 = vld [vmem:[%s0 + $0x38] sm:$0xff]
  %v42 = vld [vmem:[%s0 + $0x40] sm:$0xff]
  %v43 = vld [vmem:[%s0 + $0x48] sm:$0xff]
  %v44 = vld [vmem:[%s0 + $0x50] sm:$0xff]
  %v45 = vld [vmem:[%s0 + $0x58] sm:$0xff]
  %v46 = vld [vmem:[%s0 + $0x60] sm:$0xff]
  %v47 = vld [vmem:[%s0 + $0x68] sm:$0xff]
  %v48 = vld [vmem:[%s0 + $0x70] sm:$0xff]
  %v49 = vld [vmem:[%s0 + $0x78] sm:$0xff]
  %v50 = vld [vmem:[%s0 + $0x80] sm:$0xff]
  %v51 = vld [vmem:[%s0 + $0x88] sm:$0xff]
  %v52 = vld [vmem:[%s0 + $0x90] sm:$0xff]
  %v53 = vld [vmem:[%s0 + $0x98] sm:$0xff]
  %v54 = vld [vmem:[%s0 + $0xa0] sm:$0xff]
  %v55 = vld [vmem:[%s0 + $0xa8] sm:$0xff]
  %v56 = vld [vmem:[%s0 + $0xb0] sm:$0xff]
  %v57 = vld [vmem:[%s0 + $0xb8] sm:$0xff]
  %v58 = vld [vmem:[%s0 + $0xc0] sm:$0xff]
  %v59 = vld [vmem:[%s0 + $0xc8] sm:$0xff]
  %v60 = vld [vmem:[%s0 + $0xd0] sm:$0xff]
  %v61 = vld [vmem:[%s0 + $0xd8] sm:$0xff]
  %v62 = vld [vmem:[%s0 + $0xe0] sm:$0xff]
  %v63 = vld [vmem:[%s0 + $0xe8] sm:$0xff]
  %v64 = vld [vmem:[%s0 + $0xf0] sm:$0xff]
  %v65 = vld [vmem:[%s0 + $0xf8] sm:$0xff]
  %v66 = vld [vmem:[%s1] sm:$0xff]
  %v67 = vld [vmem:[%s1 + $0x8] sm:$0xff]
  %v68 = vld [vmem:[%s1 + $0x10] sm:$0xff]
  %v69 = vld [vmem:[%s1 + $0x18] sm:$0xff]
  %v70 = vld [vmem:[%s1 + $0x20] sm:$0xff]
  %v71 = vld [vmem:[%s1 + $0x28] sm:$0xff]
  %v72 = vld [vmem:[%s1 + $0x30] sm:$0xff]
  %v73 = vld [vmem:[%s1 + $0x38] sm:$0xff]
  %v74 = vld [vmem:[%s1 + $0x40] sm:$0xff]
  %v75 = vld [vmem:[%s1 + $0x48] sm:$0xff]
  %v76 = vld [vmem:[%s1 + $0x50] sm:$0xff]
  %v77 = vld [vmem:[%s1 + $0x58] sm:$0xff]
  %v78 = vld [vmem:[%s1 + $0x60] sm:$0xff]
  %v79 = vld [vmem:[%s1 + $0x68] sm:$0xff]
  %v80 = vld [vmem:[%s1 + $0x70] sm:$0xff]
  %v81 = vld [vmem:[%s1 + $0x78] sm:$0xff]
  %v82 = vld [vmem:[%s1 + $0x80] sm:$0xff]
  %v83 = vld [vmem:[%s1 + $0x88] sm:$0xff]
  %v84 = vld [vmem:[%s1 + $0x90] sm:$0xff]
  %v85 = vld [vmem:[%s1 + $0x98] sm:$0xff]
  %v86 = vld [vmem:[%s1 + $0xa0] sm:$0xff]
  %v87 = vld [vmem:[%s1 + $0xa8] sm:$0xff]
  %v88 = vld [vmem:[%s1 + $0xb0] sm:$0xff]
  %v89 = vld [vmem:[%s1 + $0xb8] sm:$0xff]
  %v90 = vld [vmem:[%s1 + $0xc0] sm:$0xff]
  %v91 = vld [vmem:[%s1 + $0xc8] sm:$0xff]
  %v92 = vld [vmem:[%s1 + $0xd0] sm:$0xff]
  %v93 = vld [vmem:[%s1 + $0xd8] sm:$0xff]
  %v94 = vld [vmem:[%s1 + $0xe0] sm:$0xff]
  %v95 = vld [vmem:[%s1 + $0xe8] sm:$0xff]
  %v96 = vld [vmem:[%s1 + $0xf0] sm:$0xff]
  %v97 = vld [vmem:[%s1 + $0xf8] sm:$0xff]
  %v98 = vadd.f32 %v34, %v66
  %v99 = vadd.f32 %v35, %v67
  %v100 = vadd.f32 %v36, %v68
  %v101 = vadd.f32 %v37, %v69
  %v102 = vadd.f32 %v38, %v70
  %v103 = vadd.f32 %v39, %v71
  %v104 = vadd.f32 %v40, %v72
  %v105 = vadd.f32 %v41, %v73
  %v106 = vadd.f32 %v42, %v74
  %v107 = vadd.f32 %v43, %v75
  %v108 = vadd.f32 %v44, %v76
  %v109 = vadd.f32 %v45, %v77
  %v110 = vadd.f32 %v46, %v78
  %v111 = vadd.f32 %v47, %v79
  %v112 = vadd.f32 %v48, %v80
  %v113 = vadd.f32 %v49, %v81
  %v114 = vadd.f32 %v50, %v82
  %v115 = vadd.f32 %v51, %v83
  %v116 = vadd.f32 %v52, %v84
  %v117 = vadd.f32 %v53, %v85
  %v118 = vadd.f32 %v54, %v86
  %v119 = vadd.f32 %v55, %v87
  %v120 = vadd.f32 %v56, %v88
  %v121 = vadd.f32 %v57, %v89
  %v122 = vadd.f32 %v58, %v90
  %v123 = vadd.f32 %v59, %v91
  %v124 = vadd.f32 %v60, %v92
  %v125 = vadd.f32 %v61, %v93
  %v126 = vadd.f32 %v62, %v94
  %v127 = vadd.f32 %v63, %v95
  %v128 = vadd.f32 %v64, %v96
  %v129 = vadd.f32 %v65, %v97
  %130 = vst [vmem:[%s9] sm:$0xff] %v98
  %131 = vst [vmem:[%s9 + $0x8] sm:$0xff] %v99
  %132 = vst [vmem:[%s9 + $0x10] sm:$0xff] %v100
  %133 = vst [vmem:[%s9 + $0x18] sm:$0xff] %v101
  %134 = vst [vmem:[%s9 + $0x20] sm:$0xff] %v102
  %135 = vst [vmem:[%s9 + $0x28] sm:$0xff] %v103
  %136 = vst [vmem:[%s9 + $0x30] sm:$0xff] %v104
  %137 = vst [vmem:[%s9 + $0x38] sm:$0xff] %v105
  %138 = vst [vmem:[%s9 + $0x40] sm:$0xff] %v106
  %139 = vst [vmem:[%s9 + $0x48] sm:$0xff] %v107
  %140 = vst [vmem:[%s9 + $0x50] sm:$0xff] %v108
  %141 = vst [vmem:[%s9 + $0x58] sm:$0xff] %v109
  %142 = vst [vmem:[%s9 + $0x60] sm:$0xff] %v110
  %143 = vst [vmem:[%s9 + $0x68] sm:$0xff] %v111
  %144 = vst [vmem:[%s9 + $0x70] sm:$0xff] %v112
  %145 = vst [vmem:[%s9 + $0x78] sm:$0xff] %v113
  %146 = vst [vmem:[%s9 + $0x80] sm:$0xff] %v114
  %147 = vst [vmem:[%s9 + $0x88] sm:$0xff] %v115
  %148 = vst [vmem:[%s9 + $0x90] sm:$0xff] %v116
  %149 = vst [vmem:[%s9 + $0x98] sm:$0xff] %v117
  %150 = vst [vmem:[%s9 + $0xa0] sm:$0xff] %v118
  %151 = vst [vmem:[%s9 + $0xa8] sm:$0xff] %v119
  %152 = vst [vmem:[%s9 + $0xb0] sm:$0xff] %v120
  %153 = vst [vmem:[%s9 + $0xb8] sm:$0xff] %v121
  %154 = vst [vmem:[%s9 + $0xc0] sm:$0xff] %v122
  %155 = vst [vmem:[%s9 + $0xc8] sm:$0xff] %v123
  %156 = vst [vmem:[%s9 + $0xd0] sm:$0xff] %v124
  %157 = vst [vmem:[%s9 + $0xd8] sm:$0xff] %v125
  %158 = vst [vmem:[%s9 + $0xe0] sm:$0xff] %v126
  %159 = vst [vmem:[%s9 + $0xe8] sm:$0xff] %v127
  %160 = vst [vmem:[%s9 + $0xf0] sm:$0xff] %v128
  %161 = vst [vmem:[%s9 + $0xf8] sm:$0xff] %v129
  %v162 = vld [vmem:[%s3] sm:$0xff]
  %v163 = vld [vmem:[%s3 + $0x8] sm:$0xff]
  %v164 = vld [vmem:[%s3 + $0x10] sm:$0xff]
  %v165 = vld [vmem:[%s3 + $0x18] sm:$0xff]
  %v166 = vld [vmem:[%s3 + $0x20] sm:$0xff]
  %v167 = vld [vmem:[%s3 + $0x28] sm:$0xff]
  %v168 = vld [vmem:[%s3 + $0x30] sm:$0xff]
  %v169 = vld [vmem:[%s3 + $0x38] sm:$0xff]
  %v170 = vld [vmem:[%s3 + $0x40] sm:$0xff]
  %v171 = vld [vmem:[%s3 + $0x48] sm:$0xff]
  %v172 = vld [vmem:[%s3 + $0x50] sm:$0xff]
  %v173 = vld [vmem:[%s3 + $0x58] sm:$0xff]
  %v174 = vld [vmem:[%s3 + $0x60] sm:$0xff]
  %v175 = vld [vmem:[%s3 + $0x68] sm:$0xff]
  %v176 = vld [vmem:[%s3 + $0x70] sm:$0xff]
  %v177 = vld [vmem:[%s3 + $0x78] sm:$0xff]
  %v178 = vld [vmem:[%s4] sm:$0x1]
  %v180 = vlaneseq
  %v181 = vshrl.u32 %v180, 7
  %v182 = vsub.s32 0, %v181
  %v183 = vrot.slane %v178, %v182
  %185 = vmatprep.subr.mxu0 0.0
  %186 = vmatpush1.msra.mxu0 %v177
  %187 = vmatprep.subr.mxu0 0.0
  %188 = vmatpush1.msra.mxu0 %v176
  %189 = vmatprep.subr.mxu0 0.0
  %190 = vmatpush1.msra.mxu0 %v175
  %191 = vmatprep.subr.mxu0 0.0
  %192 = vmatpush1.msra.mxu0 %v174
  %193 = vmatprep.subr.mxu0 0.0
  %194 = vmatpush1.msra.mxu0 %v173
  %195 = vmatprep.subr.mxu0 0.0
  %196 = vmatpush1.msra.mxu0 %v172
  %197 = vmatprep.subr.mxu0 0.0
  %198 = vmatpush1.msra.mxu0 %v171
  %199 = vmatprep.subr.mxu0 0.0
  %200 = vmatpush1.msra.mxu0 %v170
  %201 = vmatprep.subr.mxu0 0.0
  %202 = vmatpush1.msra.mxu0 %v169
  %203 = vmatprep.subr.mxu0 0.0
  %204 = vmatpush1.msra.mxu0 %v168
  %205 = vmatprep.subr.mxu0 0.0
  %206 = vmatpush1.msra.mxu0 %v167
  %207 = vmatprep.subr.mxu0 0.0
  %208 = vmatpush1.msra.mxu0 %v166
  %209 = vmatprep.subr.mxu0 0.0
  %210 = vmatpush1.msra.mxu0 %v165
  %211 = vmatprep.subr.mxu0 0.0
  %212 = vmatpush1.msra.mxu0 %v164
  %213 = vmatprep.subr.mxu0 0.0
  %214 = vmatpush1.msra.mxu0 %v163
  %215 = vmatprep.subr.mxu0 0.0
  %216 = vmatpush1.msra.mxu0 %v162
  %217 = vmatprep.subr.mxu0 0.0
  %218 = vmatpush2.msra.mxu0 0.0
  %219 = vmatprep.subr.mxu0 0.0
  %220 = vmatpush2.msra.mxu0 0.0
  %221 = vmatprep.subr.mxu0 0.0
  %222 = vmatpush2.msra.mxu0 0.0
  %223 = vmatprep.subr.mxu0 0.0
  %224 = vmatpush2.msra.mxu0 0.0
  %225 = vmatprep.subr.mxu0 0.0
  %226 = vmatpush2.msra.mxu0 0.0
  %227 = vmatprep.subr.mxu0 0.0
  %228 = vmatpush2.msra.mxu0 0.0
  %229 = vmatprep.subr.mxu0 0.0
  %230 = vmatpush2.msra.mxu0 0.0
  %231 = vmatprep.subr.mxu0 0.0
  %232 = vmatpush2.msra.mxu0 0.0
  %233 = vmatprep.subr.mxu0 0.0
  %234 = vmatpush2.msra.mxu0 0.0
  %235 = vmatprep.subr.mxu0 0.0
  %236 = vmatpush2.msra.mxu0 0.0
  %237 = vmatprep.subr.mxu0 0.0
  %238 = vmatpush2.msra.mxu0 0.0
  %239 = vmatprep.subr.mxu0 0.0
  %240 = vmatpush2.msra.mxu0 0.0
  %241 = vmatprep.subr.mxu0 0.0
  %242 = vmatpush2.msra.mxu0 0.0
  %243 = vmatprep.subr.mxu0 0.0
  %244 = vmatpush2.msra.mxu0 0.0
  %245 = vmatprep.subr.mxu0 0.0
  %246 = vmatpush2.msra.mxu0 0.0
  %247 = vmatprep.subr.mxu0 0.0
  %248 = vmatpush2.msra.mxu0 0.0
  %249 = vmatprep.mubr.f32.mxu0 0.0
  %250 = vmatmul.mubr.f32.gmra.mxu0 %v98
  %v251 = vpop.f32.mrf.mxu0
  %v252 = vadd.f32 %v183, %v251
  %v253 = vpop.f32.mrf.mxu0
  %254 = vmatprep.mubr.f32.mxu0 0.0
  %255 = vmatmul.mubr.f32.gmra.mxu0 %v99
  %v256 = vpop.f32.mrf.mxu0
  %v257 = vadd.f32 %v183, %v256
  %v258 = vpop.f32.mrf.mxu0
  %259 = vmatprep.mubr.f32.mxu0 0.0
  %260 = vmatmul.mubr.f32.gmra.mxu0 %v100
  %v261 = vpop.f32.mrf.mxu0
  %v262 = vadd.f32 %v183, %v261
  %v263 = vpop.f32.mrf.mxu0
  %264 = vmatprep.mubr.f32.mxu0 0.0
  %265 = vmatmul.mubr.f32.gmra.mxu0 %v101
  %v266 = vpop.f32.mrf.mxu0
  %v267 = vadd.f32 %v183, %v266
  %v268 = vpop.f32.mrf.mxu0
  %269 = vmatprep.mubr.f32.mxu0 0.0
  %270 = vmatmul.mubr.f32.gmra.mxu0 %v102
  %v271 = vpop.f32.mrf.mxu0
  %v272 = vadd.f32 %v183, %v271
  %v273 = vpop.f32.mrf.mxu0
  %274 = vmatprep.mubr.f32.mxu0 0.0
  %275 = vmatmul.mubr.f32.gmra.mxu0 %v103
  %v276 = vpop.f32.mrf.mxu0
  %v277 = vadd.f32 %v183, %v276
  %v278 = vpop.f32.mrf.mxu0
  %279 = vmatprep.mubr.f32.mxu0 0.0
  %280 = vmatmul.mubr.f32.gmra.mxu0 %v104
  %v281 = vpop.f32.mrf.mxu0
  %v282 = vadd.f32 %v183, %v281
  %v283 = vpop.f32.mrf.mxu0
  %284 = vmatprep.mubr.f32.mxu0 0.0
  %285 = vmatmul.mubr.f32.gmra.mxu0 %v105
  %v286 = vpop.f32.mrf.mxu0
  %v287 = vadd.f32 %v183, %v286
  %v288 = vpop.f32.mrf.mxu0
  %289 = vmatprep.mubr.f32.mxu0 0.0
  %290 = vmatmul.mubr.f32.gmra.mxu0 %v106
  %v291 = vpop.f32.mrf.mxu0
  %v292 = vadd.f32 %v183, %v291
  %v293 = vpop.f32.mrf.mxu0
  %294 = vmatprep.mubr.f32.mxu0 0.0
  %295 = vmatmul.mubr.f32.gmra.mxu0 %v107
  %v296 = vpop.f32.mrf.mxu0
  %v297 = vadd.f32 %v183, %v296
  %v298 = vpop.f32.mrf.mxu0
  %299 = vmatprep.mubr.f32.mxu0 0.0
  %300 = vmatmul.mubr.f32.gmra.mxu0 %v108
  %v301 = vpop.f32.mrf.mxu0
  %v302 = vadd.f32 %v183, %v301
  %v303 = vpop.f32.mrf.mxu0
  %304 = vmatprep.mubr.f32.mxu0 0.0
  %305 = vmatmul.mubr.f32.gmra.mxu0 %v109
  %v306 = vpop.f32.mrf.mxu0
  %v307 = vadd.f32 %v183, %v306
  %v308 = vpop.f32.mrf.mxu0
  %309 = vmatprep.mubr.f32.mxu0 0.0
  %310 = vmatmul.mubr.f32.gmra.mxu0 %v110
  %v311 = vpop.f32.mrf.mxu0
  %v312 = vadd.f32 %v183, %v311
  %v313 = vpop.f32.mrf.mxu0
  %314 = vmatprep.mubr.f32.mxu0 0.0
  %315 = vmatmul.mubr.f32.gmra.mxu0 %v111
  %v316 = vpop.f32.mrf.mxu0
  %v317 = vadd.f32 %v183, %v316
  %v318 = vpop.f32.mrf.mxu0
  %319 = vmatprep.mubr.f32.mxu0 0.0
  %320 = vmatmul.mubr.f32.gmra.mxu0 %v112
  %v321 = vpop.f32.mrf.mxu0
  %v322 = vadd.f32 %v183, %v321
  %v323 = vpop.f32.mrf.mxu0
  %324 = vmatprep.mubr.f32.mxu0 0.0
  %325 = vmatmul.mubr.f32.gmra.mxu0 %v113
  %v326 = vpop.f32.mrf.mxu0
  %v327 = vadd.f32 %v183, %v326
  %v328 = vpop.f32.mrf.mxu0
  %329 = vmatprep.mubr.f32.mxu0 0.0
  %330 = vmatmul.mubr.f32.gmra.mxu0 %v114
  %v331 = vpop.f32.mrf.mxu0
  %v332 = vadd.f32 %v183, %v331
  %v333 = vpop.f32.mrf.mxu0
  %334 = vmatprep.mubr.f32.mxu0 0.0
  %335 = vmatmul.mubr.f32.gmra.mxu0 %v115
  %v336 = vpop.f32.mrf.mxu0
  %v337 = vadd.f32 %v183, %v336
  %v338 = vpop.f32.mrf.mxu0
  %339 = vmatprep.mubr.f32.mxu0 0.0
  %340 = vmatmul.mubr.f32.gmra.mxu0 %v116
  %v341 = vpop.f32.mrf.mxu0
  %v342 = vadd.f32 %v183, %v341
  %v343 = vpop.f32.mrf.mxu0
  %344 = vmatprep.mubr.f32.mxu0 0.0
  %345 = vmatmul.mubr.f32.gmra.mxu0 %v117
  %v346 = vpop.f32.mrf.mxu0
  %v347 = vadd.f32 %v183, %v346
  %v348 = vpop.f32.mrf.mxu0
  %349 = vmatprep.mubr.f32.mxu0 0.0
  %350 = vmatmul.mubr.f32.gmra.mxu0 %v118
  %v351 = vpop.f32.mrf.mxu0
  %v352 = vadd.f32 %v183, %v351
  %v353 = vpop.f32.mrf.mxu0
  %354 = vmatprep.mubr.f32.mxu0 0.0
  %355 = vmatmul.mubr.f32.gmra.mxu0 %v119
  %v356 = vpop.f32.mrf.mxu0
  %v357 = vadd.f32 %v183, %v356
  %v358 = vpop.f32.mrf.mxu0
  %359 = vmatprep.mubr.f32.mxu0 0.0
  %360 = vmatmul.mubr.f32.gmra.mxu0 %v120
  %v361 = vpop.f32.mrf.mxu0
  %v362 = vadd.f32 %v183, %v361
  %v363 = vpop.f32.mrf.mxu0
  %364 = vmatprep.mubr.f32.mxu0 0.0
  %365 = vmatmul.mubr.f32.gmra.mxu0 %v121
  %v366 = vpop.f32.mrf.mxu0
  %v367 = vadd.f32 %v183, %v366
  %v368 = vpop.f32.mrf.mxu0
  %369 = vmatprep.mubr.f32.mxu0 0.0
  %370 = vmatmul.mubr.f32.gmra.mxu0 %v122
  %v371 = vpop.f32.mrf.mxu0
  %v372 = vadd.f32 %v183, %v371
  %v373 = vpop.f32.mrf.mxu0
  %374 = vmatprep.mubr.f32.mxu0 0.0
  %375 = vmatmul.mubr.f32.gmra.mxu0 %v123
  %v376 = vpop.f32.mrf.mxu0
  %v377 = vadd.f32 %v183, %v376
  %v378 = vpop.f32.mrf.mxu0
  %379 = vmatprep.mubr.f32.mxu0 0.0
  %380 = vmatmul.mubr.f32.gmra.mxu0 %v124
  %v381 = vpop.f32.mrf.mxu0
  %v382 = vadd.f32 %v183, %v381
  %v383 = vpop.f32.mrf.mxu0
  %384 = vmatprep.mubr.f32.mxu0 0.0
  %385 = vmatmul.mubr.f32.gmra.mxu0 %v125
  %v386 = vpop.f32.mrf.mxu0
  %v387 = vadd.f32 %v183, %v386
  %v388 = vpop.f32.mrf.mxu0
  %389 = vmatprep.mubr.f32.mxu0 0.0
  %390 = vmatmul.mubr.f32.gmra.mxu0 %v126
  %v391 = vpop.f32.mrf.mxu0
  %v392 = vadd.f32 %v183, %v391
  %v393 = vpop.f32.mrf.mxu0
  %394 = vmatprep.mubr.f32.mxu0 0.0
  %395 = vmatmul.mubr.f32.gmra.mxu0 %v127
  %v396 = vpop.f32.mrf.mxu0
  %v397 = vadd.f32 %v183, %v396
  %v398 = vpop.f32.mrf.mxu0
  %399 = vmatprep.mubr.f32.mxu0 0.0
  %400 = vmatmul.mubr.f32.gmra.mxu0 %v128
  %v401 = vpop.f32.mrf.mxu0
  %v402 = vadd.f32 %v183, %v401
  %v403 = vpop.f32.mrf.mxu0
  %404 = vmatprep.mubr.f32.mxu0 0.0
  %405 = vmatmul.mubr.f32.gmra.mxu0 %v129
  %v406 = vpop.f32.mrf.mxu0
  %v407 = vadd.f32 %v183, %v406
  %v408 = vpop.f32.mrf.mxu0
  %409 = vdwg.mxu0
  %v410 = vtanh.pop %v252
  %v411 = vtanh.pop %v257
  %v412 = vtanh.pop %v262
  %v413 = vtanh.pop %v267
  %v414 = vtanh.pop %v272
  %v415 = vtanh.pop %v277
  %v416 = vtanh.pop %v282
  %v417 = vtanh.pop %v287
  %v418 = vtanh.pop %v292
  %v419 = vtanh.pop %v297
  %v420 = vtanh.pop %v302
  %v421 = vtanh.pop %v307
  %v422 = vtanh.pop %v312
  %v423 = vtanh.pop %v317
  %v424 = vtanh.pop %v322
  %v425 = vtanh.pop %v327
  %v426 = vtanh.pop %v332
  %v427 = vtanh.pop %v337
  %v428 = vtanh.pop %v342
  %v429 = vtanh.pop %v347
  %v430 = vtanh.pop %v352
  %v431 = vtanh.pop %v357
  %v432 = vtanh.pop %v362
  %v433 = vtanh.pop %v367
  %v434 = vtanh.pop %v372
  %v435 = vtanh.pop %v377
  %v436 = vtanh.pop %v382
  %v437 = vtanh.pop %v387
  %v438 = vtanh.pop %v392
  %v439 = vtanh.pop %v397
  %v440 = vtanh.pop %v402
  %v441 = vtanh.pop %v407
  %v442 = vrot.slane %v410, 7
  %v443 = vrot.slane %v411, 7
  %v444 = vrot.slane %v412, 7
  %v445 = vrot.slane %v413, 7
  %v446 = vrot.slane %v414, 7
  %v447 = vrot.slane %v415, 7
  %v448 = vrot.slane %v416, 7
  %v449 = vrot.slane %v417, 7
  %v450 = vrot.slane %v418, 7
  %v451 = vrot.slane %v419, 7
  %v452 = vrot.slane %v420, 7
  %v453 = vrot.slane %v421, 7
  %v454 = vrot.slane %v422, 7
  %v455 = vrot.slane %v423, 7
  %v456 = vrot.slane %v424, 7
  %v457 = vrot.slane %v425, 7
  %v458 = vrot.slane %v426, 7
  %v459 = vrot.slane %v427, 7
  %v460 = vrot.slane %v428, 7
  %v461 = vrot.slane %v429, 7
  %v462 = vrot.slane %v430, 7
  %v463 = vrot.slane %v431, 7
  %v464 = vrot.slane %v432, 7
  %v465 = vrot.slane %v433, 7
  %v466 = vrot.slane %v434, 7
  %v467 = vrot.slane %v435, 7
  %v468 = vrot.slane %v436, 7
  %v469 = vrot.slane %v437, 7
  %v470 = vrot.slane %v438, 7
  %v471 = vrot.slane %v439, 7
  %v472 = vrot.slane %v440, 7
  %v473 = vrot.slane %v441, 7
  %v474 = vlaneseq
  %v475 = vshrl.u32 %v474, 7
  %vm476 = vcmp.lt.s32.totalorder %v475, 1
  %v477 = vsel %vm476, %v472, %v473
  %v478 = vsel %vm476, %v471, %v472
  %v479 = vsel %vm476, %v470, %v471
  %v480 = vsel %vm476, %v469, %v470
  %v481 = vsel %vm476, %v468, %v469
  %v482 = vsel %vm476, %v467, %v468
  %v483 = vsel %vm476, %v466, %v467
  %v484 = vsel %vm476, %v465, %v466
  %v485 = vsel %vm476, %v464, %v465
  %v486 = vsel %vm476, %v463, %v464
  %v487 = vsel %vm476, %v462, %v463
  %v488 = vsel %vm476, %v461, %v462
  %v489 = vsel %vm476, %v460, %v461
  %v490 = vsel %vm476, %v459, %v460
  %v491 = vsel %vm476, %v458, %v459
  %v492 = vsel %vm476, %v457, %v458
  %v493 = vsel %vm476, %v456, %v457
  %v494 = vsel %vm476, %v455, %v456
  %v495 = vsel %vm476, %v454, %v455
  %v496 = vsel %vm476, %v453, %v454
  %v497 = vsel %vm476, %v452, %v453
  %v498 = vsel %vm476, %v451, %v452
  %v499 = vsel %vm476, %v450, %v451
  %v500 = vsel %vm476, %v449, %v450
  %v501 = vsel %vm476, %v448, %v449
  %v502 = vsel %vm476, %v447, %v448
  %v503 = vsel %vm476, %v446, %v447
  %v504 = vsel %vm476, %v445, %v446
  %v505 = vsel %vm476, %v444, %v445
  %v506 = vsel %vm476, %v443, %v444
  %v507 = vsel %vm476, %v442, %v443
  %v508 = vsel %vm476, %v473, %v442
  %v509 = vld [vmem:[%s2] sm:$0xff]
  %v510 = vld [vmem:[%s2 + $0x8] sm:$0xff]
  %v511 = vld [vmem:[%s2 + $0x10] sm:$0xff]
  %v512 = vld [vmem:[%s2 + $0x18] sm:$0xff]
  %v513 = vld [vmem:[%s2 + $0x20] sm:$0xff]
  %v514 = vld [vmem:[%s2 + $0x28] sm:$0xff]
  %v515 = vld [vmem:[%s2 + $0x30] sm:$0xff]
  %v516 = vld [vmem:[%s2 + $0x38] sm:$0xff]
  %v517 = vld [vmem:[%s2 + $0x40] sm:$0xff]
  %v518 = vld [vmem:[%s2 + $0x48] sm:$0xff]
  %v519 = vld [vmem:[%s2 + $0x50] sm:$0xff]
  %v520 = vld [vmem:[%s2 + $0x58] sm:$0xff]
  %v521 = vld [vmem:[%s2 + $0x60] sm:$0xff]
  %v522 = vld [vmem:[%s2 + $0x68] sm:$0xff]
  %v523 = vld [vmem:[%s2 + $0x70] sm:$0xff]
  %v524 = vld [vmem:[%s2 + $0x78] sm:$0xff]
  %v525 = vld [vmem:[%s2 + $0x80] sm:$0xff]
  %v526 = vld [vmem:[%s2 + $0x88] sm:$0xff]
  %v527 = vld [vmem:[%s2 + $0x90] sm:$0xff]
  %v528 = vld [vmem:[%s2 + $0x98] sm:$0xff]
  %v529 = vld [vmem:[%s2 + $0xa0] sm:$0xff]
  %v530 = vld [vmem:[%s2 + $0xa8] sm:$0xff]
  %v531 = vld [vmem:[%s2 + $0xb0] sm:$0xff]
  %v532 = vld [vmem:[%s2 + $0xb8] sm:$0xff]
  %v533 = vld [vmem:[%s2 + $0xc0] sm:$0xff]
  %v534 = vld [vmem:[%s2 + $0xc8] sm:$0xff]
  %v535 = vld [vmem:[%s2 + $0xd0] sm:$0xff]
  %v536 = vld [vmem:[%s2 + $0xd8] sm:$0xff]
  %v537 = vld [vmem:[%s2 + $0xe0] sm:$0xff]
  %v538 = vld [vmem:[%s2 + $0xe8] sm:$0xff]
  %v539 = vld [vmem:[%s2 + $0xf0] sm:$0xff]
  %v540 = vld [vmem:[%s2 + $0xf8] sm:$0xff]
  %542 = vset.pattern.permute.xlu0 0
  %543 = vperm.xlu0 %542, %v509
  %v544 = vpop.permute.xlu0 %543
  %547 = vset.pattern.permute.xlu0 0
  %548 = vperm.xlu0 %547, %v510
  %v549 = vpop.permute.xlu0 %548
  %552 = vset.pattern.permute.xlu0 0
  %553 = vperm.xlu0 %552, %v511
  %v554 = vpop.permute.xlu0 %553
  %557 = vset.pattern.permute.xlu0 0
  %558 = vperm.xlu0 %557, %v512
  %v559 = vpop.permute.xlu0 %558
  %562 = vset.pattern.permute.xlu0 0
  %563 = vperm.xlu0 %562, %v513
  %v564 = vpop.permute.xlu0 %563
  %567 = vset.pattern.permute.xlu0 0
  %568 = vperm.xlu0 %567, %v514
  %v569 = vpop.permute.xlu0 %568
  %572 = vset.pattern.permute.xlu0 0
  %573 = vperm.xlu0 %572, %v515
  %v574 = vpop.permute.xlu0 %573
  %577 = vset.pattern.permute.xlu0 0
  %578 = vperm.xlu0 %577, %v516
  %v579 = vpop.permute.xlu0 %578
  %582 = vset.pattern.permute.xlu0 0
  %583 = vperm.xlu0 %582, %v517
  %v584 = vpop.permute.xlu0 %583
  %587 = vset.pattern.permute.xlu0 0
  %588 = vperm.xlu0 %587, %v518
  %v589 = vpop.permute.xlu0 %588
  %592 = vset.pattern.permute.xlu0 0
  %593 = vperm.xlu0 %592, %v519
  %v594 = vpop.permute.xlu0 %593
  %597 = vset.pattern.permute.xlu0 0
  %598 = vperm.xlu0 %597, %v520
  %v599 = vpop.permute.xlu0 %598
  %602 = vset.pattern.permute.xlu0 0
  %603 = vperm.xlu0 %602, %v521
  %v604 = vpop.permute.xlu0 %603
  %607 = vset.pattern.permute.xlu0 0
  %608 = vperm.xlu0 %607, %v522
  %v609 = vpop.permute.xlu0 %608
  %612 = vset.pattern.permute.xlu0 0
  %613 = vperm.xlu0 %612, %v523
  %v614 = vpop.permute.xlu0 %613
  %617 = vset.pattern.permute.xlu0 0
  %618 = vperm.xlu0 %617, %v524
  %v619 = vpop.permute.xlu0 %618
  %622 = vset.pattern.permute.xlu0 0
  %623 = vperm.xlu0 %622, %v525
  %v624 = vpop.permute.xlu0 %623
  %627 = vset.pattern.permute.xlu0 0
  %628 = vperm.xlu0 %627, %v526
  %v629 = vpop.permute.xlu0 %628
  %632 = vset.pattern.permute.xlu0 0
  %633 = vperm.xlu0 %632, %v527
  %v634 = vpop.permute.xlu0 %633
  %637 = vset.pattern.permute.xlu0 0
  %638 = vperm.xlu0 %637, %v528
  %v639 = vpop.permute.xlu0 %638
  %642 = vset.pattern.permute.xlu0 0
  %643 = vperm.xlu0 %642, %v529
  %v644 = vpop.permute.xlu0 %643
  %647 = vset.pattern.permute.xlu0 0
  %648 = vperm.xlu0 %647, %v530
  %v649 = vpop.permute.xlu0 %648
  %652 = vset.pattern.permute.xlu0 0
  %653 = vperm.xlu0 %652, %v531
  %v654 = vpop.permute.xlu0 %653
  %657 = vset.pattern.permute.xlu0 0
  %658 = vperm.xlu0 %657, %v532
  %v659 = vpop.permute.xlu0 %658
  %662 = vset.pattern.permute.xlu0 0
  %663 = vperm.xlu0 %662, %v533
  %v664 = vpop.permute.xlu0 %663
  %667 = vset.pattern.permute.xlu0 0
  %668 = vperm.xlu0 %667, %v534
  %v669 = vpop.permute.xlu0 %668
  %672 = vset.pattern.permute.xlu0 0
  %673 = vperm.xlu0 %672, %v535
  %v674 = vpop.permute.xlu0 %673
  %677 = vset.pattern.permute.xlu0 0
  %678 = vperm.xlu0 %677, %v536
  %v679 = vpop.permute.xlu0 %678
  %682 = vset.pattern.permute.xlu0 0
  %683 = vperm.xlu0 %682, %v537
  %v684 = vpop.permute.xlu0 %683
  %687 = vset.pattern.permute.xlu0 0
  %688 = vperm.xlu0 %687, %v538
  %v689 = vpop.permute.xlu0 %688
  %692 = vset.pattern.permute.xlu0 0
  %693 = vperm.xlu0 %692, %v539
  %v694 = vpop.permute.xlu0 %693
  %697 = vset.pattern.permute.xlu0 0
  %698 = vperm.xlu0 %697, %v540
  %v699 = vpop.permute.xlu0 %698
  %v701 = vmul.f32 %v508, %v544
  %v702 = vmul.f32 %v507, %v549
  %v703 = vmul.f32 %v506, %v554
  %v704 = vmul.f32 %v505, %v559
  %v705 = vmul.f32 %v504, %v564
  %v706 = vmul.f32 %v503, %v569
  %v707 = vmul.f32 %v502, %v574
  %v708 = vmul.f32 %v501, %v579
  %v709 = vmul.f32 %v500, %v584
  %v710 = vmul.f32 %v499, %v589
  %v711 = vmul.f32 %v498, %v594
  %v712 = vmul.f32 %v497, %v599
  %v713 = vmul.f32 %v496, %v604
  %v714 = vmul.f32 %v495, %v609
  %v715 = vmul.f32 %v494, %v614
  %v716 = vmul.f32 %v493, %v619
  %v717 = vmul.f32 %v492, %v624
  %v718 = vmul.f32 %v491, %v629
  %v719 = vmul.f32 %v490, %v634
  %v720 = vmul.f32 %v489, %v639
  %v721 = vmul.f32 %v488, %v644
  %v722 = vmul.f32 %v487, %v649
  %v723 = vmul.f32 %v486, %v654
  %v724 = vmul.f32 %v485, %v659
  %v725 = vmul.f32 %v484, %v664
  %v726 = vmul.f32 %v483, %v669
  %v727 = vmul.f32 %v482, %v674
  %v728 = vmul.f32 %v481, %v679
  %v729 = vmul.f32 %v480, %v684
  %v730 = vmul.f32 %v479, %v689
  %v731 = vmul.f32 %v478, %v694
  %v732 = vmul.f32 %v477, %v699
  %v733 = vld [vmem:[%s5] sm:$0xff]
  %v734 = vld [vmem:[%s5 + $0x8] sm:$0xff]
  %v735 = vld [vmem:[%s5 + $0x10] sm:$0xff]
  %v736 = vld [vmem:[%s5 + $0x18] sm:$0xff]
  %v737 = vld [vmem:[%s5 + $0x20] sm:$0xff]
  %v738 = vld [vmem:[%s5 + $0x28] sm:$0xff]
  %v739 = vld [vmem:[%s5 + $0x30] sm:$0xff]
  %v740 = vld [vmem:[%s5 + $0x38] sm:$0xff]
  %v741 = vld [vmem:[%s5 + $0x40] sm:$0xff]
  %v742 = vld [vmem:[%s5 + $0x48] sm:$0xff]
  %v743 = vld [vmem:[%s5 + $0x50] sm:$0xff]
  %v744 = vld [vmem:[%s5 + $0x58] sm:$0xff]
  %v745 = vld [vmem:[%s5 + $0x60] sm:$0xff]
  %v746 = vld [vmem:[%s5 + $0x68] sm:$0xff]
  %v747 = vld [vmem:[%s5 + $0x70] sm:$0xff]
  %v748 = vld [vmem:[%s5 + $0x78] sm:$0xff]
  %v749 = vld [vmem:[%s5 + $0x80] sm:$0xff]
  %v750 = vld [vmem:[%s5 + $0x88] sm:$0xff]
  %v751 = vld [vmem:[%s5 + $0x90] sm:$0xff]
  %v752 = vld [vmem:[%s5 + $0x98] sm:$0xff]
  %v753 = vld [vmem:[%s5 + $0xa0] sm:$0xff]
  %v754 = vld [vmem:[%s5 + $0xa8] sm:$0xff]
  %v755 = vld [vmem:[%s5 + $0xb0] sm:$0xff]
  %v756 = vld [vmem:[%s5 + $0xb8] sm:$0xff]
  %v757 = vld [vmem:[%s5 + $0xc0] sm:$0xff]
  %v758 = vld [vmem:[%s5 + $0xc8] sm:$0xff]
  %v759 = vld [vmem:[%s5 + $0xd0] sm:$0xff]
  %v760 = vld [vmem:[%s5 + $0xd8] sm:$0xff]
  %v761 = vld [vmem:[%s5 + $0xe0] sm:$0xff]
  %v762 = vld [vmem:[%s5 + $0xe8] sm:$0xff]
  %v763 = vld [vmem:[%s5 + $0xf0] sm:$0xff]
  %v764 = vld [vmem:[%s5 + $0xf8] sm:$0xff]
  %s765 = scalar_lea.vmem %s5, 256
  %v766 = vld [vmem:[%s765] sm:$0xff]
  %v767 = vld [vmem:[%s765 + $0x8] sm:$0xff]
  %v768 = vld [vmem:[%s765 + $0x10] sm:$0xff]
  %v769 = vld [vmem:[%s765 + $0x18] sm:$0xff]
  %v770 = vld [vmem:[%s765 + $0x20] sm:$0xff]
  %v771 = vld [vmem:[%s765 + $0x28] sm:$0xff]
  %v772 = vld [vmem:[%s765 + $0x30] sm:$0xff]
  %v773 = vld [vmem:[%s765 + $0x38] sm:$0xff]
  %v774 = vld [vmem:[%s765 + $0x40] sm:$0xff]
  %v775 = vld [vmem:[%s765 + $0x48] sm:$0xff]
  %v776 = vld [vmem:[%s765 + $0x50] sm:$0xff]
  %v777 = vld [vmem:[%s765 + $0x58] sm:$0xff]
  %v778 = vld [vmem:[%s765 + $0x60] sm:$0xff]
  %v779 = vld [vmem:[%s765 + $0x68] sm:$0xff]
  %v780 = vld [vmem:[%s765 + $0x70] sm:$0xff]
  %v781 = vld [vmem:[%s765 + $0x78] sm:$0xff]
  %v782 = vld [vmem:[%s765 + $0x80] sm:$0xff]
  %v783 = vld [vmem:[%s765 + $0x88] sm:$0xff]
  %v784 = vld [vmem:[%s765 + $0x90] sm:$0xff]
  %v785 = vld [vmem:[%s765 + $0x98] sm:$0xff]
  %v786 = vld [vmem:[%s765 + $0xa0] sm:$0xff]
  %v787 = vld [vmem:[%s765 + $0xa8] sm:$0xff]
  %v788 = vld [vmem:[%s765 + $0xb0] sm:$0xff]
  %v789 = vld [vmem:[%s765 + $0xb8] sm:$0xff]
  %v790 = vld [vmem:[%s765 + $0xc0] sm:$0xff]
  %v791 = vld [vmem:[%s765 + $0xc8] sm:$0xff]
  %v792 = vld [vmem:[%s765 + $0xd0] sm:$0xff]
  %v793 = vld [vmem:[%s765 + $0xd8] sm:$0xff]
  %v794 = vld [vmem:[%s765 + $0xe0] sm:$0xff]
  %v795 = vld [vmem:[%s765 + $0xe8] sm:$0xff]
  %v796 = vld [vmem:[%s765 + $0xf0] sm:$0xff]
  %v797 = vld [vmem:[%s765 + $0xf8] sm:$0xff]
  %798 = vmatprep.subr.mxu0 %v797
  %799 = vmatpush1.msra.mxu0 %v796
  %800 = vmatprep.subr.mxu0 %v795
  %801 = vmatpush1.msra.mxu0 %v794
  %802 = vmatprep.subr.mxu0 %v793
  %803 = vmatpush1.msra.mxu0 %v792
  %804 = vmatprep.subr.mxu0 %v791
  %805 = vmatpush1.msra.mxu0 %v790
  %806 = vmatprep.subr.mxu0 %v789
  %807 = vmatpush1.msra.mxu0 %v788
  %808 = vmatprep.subr.mxu0 %v787
  %809 = vmatpush1.msra.mxu0 %v786
  %810 = vmatprep.subr.mxu0 %v785
  %811 = vmatpush1.msra.mxu0 %v784
  %812 = vmatprep.subr.mxu0 %v783
  %813 = vmatpush1.msra.mxu0 %v782
  %814 = vmatprep.subr.mxu0 %v781
  %815 = vmatpush1.msra.mxu0 %v780
  %816 = vmatprep.subr.mxu0 %v779
  %817 = vmatpush1.msra.mxu0 %v778
  %818 = vmatprep.subr.mxu0 %v777
  %819 = vmatpush1.msra.mxu0 %v776
  %820 = vmatprep.subr.mxu0 %v775
  %821 = vmatpush1.msra.mxu0 %v774
  %822 = vmatprep.subr.mxu0 %v773
  %823 = vmatpush1.msra.mxu0 %v772
  %824 = vmatprep.subr.mxu0 %v771
  %825 = vmatpush1.msra.mxu0 %v770
  %826 = vmatprep.subr.mxu0 %v769
  %827 = vmatpush1.msra.mxu0 %v768
  %828 = vmatprep.subr.mxu0 %v767
  %829 = vmatpush1.msra.mxu0 %v766
  %830 = vmatprep.subr.mxu0 0.0
  %831 = vmatpush2.msra.mxu0 0.0
  %832 = vmatprep.subr.mxu0 0.0
  %833 = vmatpush2.msra.mxu0 0.0
  %834 = vmatprep.subr.mxu0 0.0
  %835 = vmatpush2.msra.mxu0 0.0
  %836 = vmatprep.subr.mxu0 0.0
  %837 = vmatpush2.msra.mxu0 0.0
  %838 = vmatprep.subr.mxu0 0.0
  %839 = vmatpush2.msra.mxu0 0.0
  %840 = vmatprep.subr.mxu0 0.0
  %841 = vmatpush2.msra.mxu0 0.0
  %842 = vmatprep.subr.mxu0 0.0
  %843 = vmatpush2.msra.mxu0 0.0
  %844 = vmatprep.subr.mxu0 0.0
  %845 = vmatpush2.msra.mxu0 0.0
  %846 = vmatprep.subr.mxu0 0.0
  %847 = vmatpush2.msra.mxu0 0.0
  %848 = vmatprep.subr.mxu0 0.0
  %849 = vmatpush2.msra.mxu0 0.0
  %850 = vmatprep.subr.mxu0 0.0
  %851 = vmatpush2.msra.mxu0 0.0
  %852 = vmatprep.subr.mxu0 0.0
  %853 = vmatpush2.msra.mxu0 0.0
  %854 = vmatprep.subr.mxu0 0.0
  %855 = vmatpush2.msra.mxu0 0.0
  %856 = vmatprep.subr.mxu0 0.0
  %857 = vmatpush2.msra.mxu0 0.0
  %858 = vmatprep.subr.mxu0 0.0
  %859 = vmatpush2.msra.mxu0 0.0
  %860 = vmatprep.subr.mxu0 0.0
  %861 = vmatpush2.msra.mxu0 0.0
  %862 = vmatprep.mubr.f32.mxu0 0.0
  %863 = vmatmul.mubr.f32.gmra.mxu0 %v410
  %v864 = vpop.f32.mrf.mxu0
  %v865 = vadd.f32 0.0, %v864
  %v866 = vpop.f32.mrf.mxu0
  %v867 = vadd.f32 0.0, %v866
  %868 = vmatprep.mubr.f32.mxu0 0.0
  %869 = vmatmul.mubr.f32.gmra.mxu0 %v411
  %v870 = vpop.f32.mrf.mxu0
  %v871 = vadd.f32 0.0, %v870
  %v872 = vpop.f32.mrf.mxu0
  %v873 = vadd.f32 0.0, %v872
  %874 = vmatprep.mubr.f32.mxu0 0.0
  %875 = vmatmul.mubr.f32.gmra.mxu0 %v412
  %v876 = vpop.f32.mrf.mxu0
  %v877 = vadd.f32 0.0, %v876
  %v878 = vpop.f32.mrf.mxu0
  %v879 = vadd.f32 0.0, %v878
  %880 = vmatprep.mubr.f32.mxu0 0.0
  %881 = vmatmul.mubr.f32.gmra.mxu0 %v413
  %v882 = vpop.f32.mrf.mxu0
  %v883 = vadd.f32 0.0, %v882
  %v884 = vpop.f32.mrf.mxu0
  %v885 = vadd.f32 0.0, %v884
  %886 = vmatprep.mubr.f32.mxu0 0.0
  %887 = vmatmul.mubr.f32.gmra.mxu0 %v414
  %v888 = vpop.f32.mrf.mxu0
  %v889 = vadd.f32 0.0, %v888
  %v890 = vpop.f32.mrf.mxu0
  %v891 = vadd.f32 0.0, %v890
  %892 = vmatprep.mubr.f32.mxu0 0.0
  %893 = vmatmul.mubr.f32.gmra.mxu0 %v415
  %v894 = vpop.f32.mrf.mxu0
  %v895 = vadd.f32 0.0, %v894
  %v896 = vpop.f32.mrf.mxu0
  %v897 = vadd.f32 0.0, %v896
  %898 = vmatprep.mubr.f32.mxu0 0.0
  %899 = vmatmul.mubr.f32.gmra.mxu0 %v416
  %v900 = vpop.f32.mrf.mxu0
  %v901 = vadd.f32 0.0, %v900
  %v902 = vpop.f32.mrf.mxu0
  %v903 = vadd.f32 0.0, %v902
  %904 = vmatprep.mubr.f32.mxu0 0.0
  %905 = vmatmul.mubr.f32.gmra.mxu0 %v417
  %v906 = vpop.f32.mrf.mxu0
  %v907 = vadd.f32 0.0, %v906
  %v908 = vpop.f32.mrf.mxu0
  %v909 = vadd.f32 0.0, %v908
  %910 = vmatprep.mubr.f32.mxu0 0.0
  %911 = vmatmul.mubr.f32.gmra.mxu0 %v418
  %v912 = vpop.f32.mrf.mxu0
  %v913 = vadd.f32 0.0, %v912
  %v914 = vpop.f32.mrf.mxu0
  %v915 = vadd.f32 0.0, %v914
  %916 = vmatprep.mubr.f32.mxu0 0.0
  %917 = vmatmul.mubr.f32.gmra.mxu0 %v419
  %v918 = vpop.f32.mrf.mxu0
  %v919 = vadd.f32 0.0, %v918
  %v920 = vpop.f32.mrf.mxu0
  %v921 = vadd.f32 0.0, %v920
  %922 = vmatprep.mubr.f32.mxu0 0.0
  %923 = vmatmul.mubr.f32.gmra.mxu0 %v420
  %v924 = vpop.f32.mrf.mxu0
  %v925 = vadd.f32 0.0, %v924
  %v926 = vpop.f32.mrf.mxu0
  %v927 = vadd.f32 0.0, %v926
  %928 = vmatprep.mubr.f32.mxu0 0.0
  %929 = vmatmul.mubr.f32.gmra.mxu0 %v421
  %v930 = vpop.f32.mrf.mxu0
  %v931 = vadd.f32 0.0, %v930
  %v932 = vpop.f32.mrf.mxu0
  %v933 = vadd.f32 0.0, %v932
  %934 = vmatprep.mubr.f32.mxu0 0.0
  %935 = vmatmul.mubr.f32.gmra.mxu0 %v422
  %v936 = vpop.f32.mrf.mxu0
  %v937 = vadd.f32 0.0, %v936
  %v938 = vpop.f32.mrf.mxu0
  %v939 = vadd.f32 0.0, %v938
  %940 = vmatprep.mubr.f32.mxu0 0.0
  %941 = vmatmul.mubr.f32.gmra.mxu0 %v423
  %v942 = vpop.f32.mrf.mxu0
  %v943 = vadd.f32 0.0, %v942
  %v944 = vpop.f32.mrf.mxu0
  %v945 = vadd.f32 0.0, %v944
  %946 = vmatprep.mubr.f32.mxu0 0.0
  %947 = vmatmul.mubr.f32.gmra.mxu0 %v424
  %v948 = vpop.f32.mrf.mxu0
  %v949 = vadd.f32 0.0, %v948
  %v950 = vpop.f32.mrf.mxu0
  %v951 = vadd.f32 0.0, %v950
  %952 = vmatprep.mubr.f32.mxu0 0.0
  %953 = vmatmul.mubr.f32.gmra.mxu0 %v425
  %v954 = vpop.f32.mrf.mxu0
  %v955 = vadd.f32 0.0, %v954
  %v956 = vpop.f32.mrf.mxu0
  %v957 = vadd.f32 0.0, %v956
  %958 = vmatprep.mubr.f32.mxu0 0.0
  %959 = vmatmul.mubr.f32.gmra.mxu0 %v426
  %v960 = vpop.f32.mrf.mxu0
  %v961 = vadd.f32 0.0, %v960
  %v962 = vpop.f32.mrf.mxu0
  %v963 = vadd.f32 0.0, %v962
  %964 = vmatprep.mubr.f32.mxu0 0.0
  %965 = vmatmul.mubr.f32.gmra.mxu0 %v427
  %v966 = vpop.f32.mrf.mxu0
  %v967 = vadd.f32 0.0, %v966
  %v968 = vpop.f32.mrf.mxu0
  %v969 = vadd.f32 0.0, %v968
  %970 = vmatprep.mubr.f32.mxu0 0.0
  %971 = vmatmul.mubr.f32.gmra.mxu0 %v428
  %v972 = vpop.f32.mrf.mxu0
  %v973 = vadd.f32 0.0, %v972
  %v974 = vpop.f32.mrf.mxu0
  %v975 = vadd.f32 0.0, %v974
  %976 = vmatprep.mubr.f32.mxu0 0.0
  %977 = vmatmul.mubr.f32.gmra.mxu0 %v429
  %v978 = vpop.f32.mrf.mxu0
  %v979 = vadd.f32 0.0, %v978
  %v980 = vpop.f32.mrf.mxu0
  %v981 = vadd.f32 0.0, %v980
  %982 = vmatprep.mubr.f32.mxu0 0.0
  %983 = vmatmul.mubr.f32.gmra.mxu0 %v430
  %v984 = vpop.f32.mrf.mxu0
  %v985 = vadd.f32 0.0, %v984
  %v986 = vpop.f32.mrf.mxu0
  %v987 = vadd.f32 0.0, %v986
  %988 = vmatprep.mubr.f32.mxu0 0.0
  %989 = vmatmul.mubr.f32.gmra.mxu0 %v431
  %v990 = vpop.f32.mrf.mxu0
  %v991 = vadd.f32 0.0, %v990
  %v992 = vpop.f32.mrf.mxu0
  %v993 = vadd.f32 0.0, %v992
  %994 = vmatprep.mubr.f32.mxu0 0.0
  %995 = vmatmul.mubr.f32.gmra.mxu0 %v432
  %v996 = vpop.f32.mrf.mxu0
  %v997 = vadd.f32 0.0, %v996
  %v998 = vpop.f32.mrf.mxu0
  %v999 = vadd.f32 0.0, %v998
  %1000 = vmatprep.mubr.f32.mxu0 0.0
  %1001 = vmatmul.mubr.f32.gmra.mxu0 %v433
  %v1002 = vpop.f32.mrf.mxu0
  %v1003 = vadd.f32 0.0, %v1002
  %v1004 = vpop.f32.mrf.mxu0
  %v1005 = vadd.f32 0.0, %v1004
  %1006 = vmatprep.mubr.f32.mxu0 0.0
  %1007 = vmatmul.mubr.f32.gmra.mxu0 %v434
  %v1008 = vpop.f32.mrf.mxu0
  %v1009 = vadd.f32 0.0, %v1008
  %v1010 = vpop.f32.mrf.mxu0
  %v1011 = vadd.f32 0.0, %v1010
  %1012 = vmatprep.mubr.f32.mxu0 0.0
  %1013 = vmatmul.mubr.f32.gmra.mxu0 %v435
  %v1014 = vpop.f32.mrf.mxu0
  %v1015 = vadd.f32 0.0, %v1014
  %v1016 = vpop.f32.mrf.mxu0
  %v1017 = vadd.f32 0.0, %v1016
  %1018 = vmatprep.mubr.f32.mxu0 0.0
  %1019 = vmatmul.mubr.f32.gmra.mxu0 %v436
  %v1020 = vpop.f32.mrf.mxu0
  %v1021 = vadd.f32 0.0, %v1020
  %v1022 = vpop.f32.mrf.mxu0
  %v1023 = vadd.f32 0.0, %v1022
  %1024 = vmatprep.mubr.f32.mxu0 0.0
  %1025 = vmatmul.mubr.f32.gmra.mxu0 %v437
  %v1026 = vpop.f32.mrf.mxu0
  %v1027 = vadd.f32 0.0, %v1026
  %v1028 = vpop.f32.mrf.mxu0
  %v1029 = vadd.f32 0.0, %v1028
  %1030 = vmatprep.mubr.f32.mxu0 0.0
  %1031 = vmatmul.mubr.f32.gmra.mxu0 %v438
  %v1032 = vpop.f32.mrf.mxu0
  %v1033 = vadd.f32 0.0, %v1032
  %v1034 = vpop.f32.mrf.mxu0
  %v1035 = vadd.f32 0.0, %v1034
  %1036 = vmatprep.mubr.f32.mxu0 0.0
  %1037 = vmatmul.mubr.f32.gmra.mxu0 %v439
  %v1038 = vpop.f32.mrf.mxu0
  %v1039 = vadd.f32 0.0, %v1038
  %v1040 = vpop.f32.mrf.mxu0
  %v1041 = vadd.f32 0.0, %v1040
  %1042 = vmatprep.mubr.f32.mxu0 0.0
  %1043 = vmatmul.mubr.f32.gmra.mxu0 %v440
  %v1044 = vpop.f32.mrf.mxu0
  %v1045 = vadd.f32 0.0, %v1044
  %v1046 = vpop.f32.mrf.mxu0
  %v1047 = vadd.f32 0.0, %v1046
  %1048 = vmatprep.mubr.f32.mxu0 0.0
  %1049 = vmatmul.mubr.f32.gmra.mxu0 %v441
  %v1050 = vpop.f32.mrf.mxu0
  %v1051 = vadd.f32 0.0, %v1050
  %v1052 = vpop.f32.mrf.mxu0
  %v1053 = vadd.f32 0.0, %v1052
  %1054 = vdwg.mxu0
  %1055 = vmatprep.subr.mxu0 %v764
  %1056 = vmatpush1.msra.mxu0 %v763
  %1057 = vmatprep.subr.mxu0 %v762
  %1058 = vmatpush1.msra.mxu0 %v761
  %1059 = vmatprep.subr.mxu0 %v760
  %1060 = vmatpush1.msra.mxu0 %v759
  %1061 = vmatprep.subr.mxu0 %v758
  %1062 = vmatpush1.msra.mxu0 %v757
  %1063 = vmatprep.subr.mxu0 %v756
  %1064 = vmatpush1.msra.mxu0 %v755
  %1065 = vmatprep.subr.mxu0 %v754
  %1066 = vmatpush1.msra.mxu0 %v753
  %1067 = vmatprep.subr.mxu0 %v752
  %1068 = vmatpush1.msra.mxu0 %v751
  %1069 = vmatprep.subr.mxu0 %v750
  %1070 = vmatpush1.msra.mxu0 %v749
  %1071 = vmatprep.subr.mxu0 %v748
  %1072 = vmatpush1.msra.mxu0 %v747
  %1073 = vmatprep.subr.mxu0 %v746
  %1074 = vmatpush1.msra.mxu0 %v745
  %1075 = vmatprep.subr.mxu0 %v744
  %1076 = vmatpush1.msra.mxu0 %v743
  %1077 = vmatprep.subr.mxu0 %v742
  %1078 = vmatpush1.msra.mxu0 %v741
  %1079 = vmatprep.subr.mxu0 %v740
  %1080 = vmatpush1.msra.mxu0 %v739
  %1081 = vmatprep.subr.mxu0 %v738
  %1082 = vmatpush1.msra.mxu0 %v737
  %1083 = vmatprep.subr.mxu0 %v736
  %1084 = vmatpush1.msra.mxu0 %v735
  %1085 = vmatprep.subr.mxu0 %v734
  %1086 = vmatpush1.msra.mxu0 %v733
  %1087 = vmatprep.subr.mxu0 0.0
  %1088 = vmatpush2.msra.mxu0 0.0
  %1089 = vmatprep.subr.mxu0 0.0
  %1090 = vmatpush2.msra.mxu0 0.0
  %1091 = vmatprep.subr.mxu0 0.0
  %1092 = vmatpush2.msra.mxu0 0.0
  %1093 = vmatprep.subr.mxu0 0.0
  %1094 = vmatpush2.msra.mxu0 0.0
  %1095 = vmatprep.subr.mxu0 0.0
  %1096 = vmatpush2.msra.mxu0 0.0
  %1097 = vmatprep.subr.mxu0 0.0
  %1098 = vmatpush2.msra.mxu0 0.0
  %1099 = vmatprep.subr.mxu0 0.0
  %1100 = vmatpush2.msra.mxu0 0.0
  %1101 = vmatprep.subr.mxu0 0.0
  %1102 = vmatpush2.msra.mxu0 0.0
  %1103 = vmatprep.subr.mxu0 0.0
  %1104 = vmatpush2.msra.mxu0 0.0
  %1105 = vmatprep.subr.mxu0 0.0
  %1106 = vmatpush2.msra.mxu0 0.0
  %1107 = vmatprep.subr.mxu0 0.0
  %1108 = vmatpush2.msra.mxu0 0.0
  %1109 = vmatprep.subr.mxu0 0.0
  %1110 = vmatpush2.msra.mxu0 0.0
  %1111 = vmatprep.subr.mxu0 0.0
  %1112 = vmatpush2.msra.mxu0 0.0
  %1113 = vmatprep.subr.mxu0 0.0
  %1114 = vmatpush2.msra.mxu0 0.0
  %1115 = vmatprep.subr.mxu0 0.0
  %1116 = vmatpush2.msra.mxu0 0.0
  %1117 = vmatprep.subr.mxu0 0.0
  %1118 = vmatpush2.msra.mxu0 0.0
  %1119 = vmatprep.mubr.f32.mxu0 0.0
  %1120 = vmatmul.mubr.f32.gmra.mxu0 %v701
  %v1121 = vpop.f32.mrf.mxu0
  %v1122 = vadd.f32 %v865, %v1121
  %v1123 = vpop.f32.mrf.mxu0
  %v1124 = vadd.f32 %v867, %v1123
  %1125 = vmatprep.mubr.f32.mxu0 0.0
  %1126 = vmatmul.mubr.f32.gmra.mxu0 %v702
  %v1127 = vpop.f32.mrf.mxu0
  %v1128 = vadd.f32 %v871, %v1127
  %v1129 = vpop.f32.mrf.mxu0
  %v1130 = vadd.f32 %v873, %v1129
  %1131 = vmatprep.mubr.f32.mxu0 0.0
  %1132 = vmatmul.mubr.f32.gmra.mxu0 %v703
  %v1133 = vpop.f32.mrf.mxu0
  %v1134 = vadd.f32 %v877, %v1133
  %v1135 = vpop.f32.mrf.mxu0
  %v1136 = vadd.f32 %v879, %v1135
  %1137 = vmatprep.mubr.f32.mxu0 0.0
  %1138 = vmatmul.mubr.f32.gmra.mxu0 %v704
  %v1139 = vpop.f32.mrf.mxu0
  %v1140 = vadd.f32 %v883, %v1139
  %v1141 = vpop.f32.mrf.mxu0
  %v1142 = vadd.f32 %v885, %v1141
  %1143 = vmatprep.mubr.f32.mxu0 0.0
  %1144 = vmatmul.mubr.f32.gmra.mxu0 %v705
  %v1145 = vpop.f32.mrf.mxu0
  %v1146 = vadd.f32 %v889, %v1145
  %v1147 = vpop.f32.mrf.mxu0
  %v1148 = vadd.f32 %v891, %v1147
  %1149 = vmatprep.mubr.f32.mxu0 0.0
  %1150 = vmatmul.mubr.f32.gmra.mxu0 %v706
  %v1151 = vpop.f32.mrf.mxu0
  %v1152 = vadd.f32 %v895, %v1151
  %v1153 = vpop.f32.mrf.mxu0
  %v1154 = vadd.f32 %v897, %v1153
  %1155 = vmatprep.mubr.f32.mxu0 0.0
  %1156 = vmatmul.mubr.f32.gmra.mxu0 %v707
  %v1157 = vpop.f32.mrf.mxu0
  %v1158 = vadd.f32 %v901, %v1157
  %v1159 = vpop.f32.mrf.mxu0
  %v1160 = vadd.f32 %v903, %v1159
  %1161 = vmatprep.mubr.f32.mxu0 0.0
  %1162 = vmatmul.mubr.f32.gmra.mxu0 %v708
  %v1163 = vpop.f32.mrf.mxu0
  %v1164 = vadd.f32 %v907, %v1163
  %v1165 = vpop.f32.mrf.mxu0
  %v1166 = vadd.f32 %v909, %v1165
  %1167 = vmatprep.mubr.f32.mxu0 0.0
  %1168 = vmatmul.mubr.f32.gmra.mxu0 %v709
  %v1169 = vpop.f32.mrf.mxu0
  %v1170 = vadd.f32 %v913, %v1169
  %v1171 = vpop.f32.mrf.mxu0
  %v1172 = vadd.f32 %v915, %v1171
  %1173 = vmatprep.mubr.f32.mxu0 0.0
  %1174 = vmatmul.mubr.f32.gmra.mxu0 %v710
  %v1175 = vpop.f32.mrf.mxu0
  %v1176 = vadd.f32 %v919, %v1175
  %v1177 = vpop.f32.mrf.mxu0
  %v1178 = vadd.f32 %v921, %v1177
  %1179 = vmatprep.mubr.f32.mxu0 0.0
  %1180 = vmatmul.mubr.f32.gmra.mxu0 %v711
  %v1181 = vpop.f32.mrf.mxu0
  %v1182 = vadd.f32 %v925, %v1181
  %v1183 = vpop.f32.mrf.mxu0
  %v1184 = vadd.f32 %v927, %v1183
  %1185 = vmatprep.mubr.f32.mxu0 0.0
  %1186 = vmatmul.mubr.f32.gmra.mxu0 %v712
  %v1187 = vpop.f32.mrf.mxu0
  %v1188 = vadd.f32 %v931, %v1187
  %v1189 = vpop.f32.mrf.mxu0
  %v1190 = vadd.f32 %v933, %v1189
  %1191 = vmatprep.mubr.f32.mxu0 0.0
  %1192 = vmatmul.mubr.f32.gmra.mxu0 %v713
  %v1193 = vpop.f32.mrf.mxu0
  %v1194 = vadd.f32 %v937, %v1193
  %v1195 = vpop.f32.mrf.mxu0
  %v1196 = vadd.f32 %v939, %v1195
  %1197 = vmatprep.mubr.f32.mxu0 0.0
  %1198 = vmatmul.mubr.f32.gmra.mxu0 %v714
  %v1199 = vpop.f32.mrf.mxu0
  %v1200 = vadd.f32 %v943, %v1199
  %v1201 = vpop.f32.mrf.mxu0
  %v1202 = vadd.f32 %v945, %v1201
  %1203 = vmatprep.mubr.f32.mxu0 0.0
  %1204 = vmatmul.mubr.f32.gmra.mxu0 %v715
  %v1205 = vpop.f32.mrf.mxu0
  %v1206 = vadd.f32 %v949, %v1205
  %v1207 = vpop.f32.mrf.mxu0
  %v1208 = vadd.f32 %v951, %v1207
  %1209 = vmatprep.mubr.f32.mxu0 0.0
  %1210 = vmatmul.mubr.f32.gmra.mxu0 %v716
  %v1211 = vpop.f32.mrf.mxu0
  %v1212 = vadd.f32 %v955, %v1211
  %v1213 = vpop.f32.mrf.mxu0
  %v1214 = vadd.f32 %v957, %v1213
  %1215 = vmatprep.mubr.f32.mxu0 0.0
  %1216 = vmatmul.mubr.f32.gmra.mxu0 %v717
  %v1217 = vpop.f32.mrf.mxu0
  %v1218 = vadd.f32 %v961, %v1217
  %v1219 = vpop.f32.mrf.mxu0
  %v1220 = vadd.f32 %v963, %v1219
  %1221 = vmatprep.mubr.f32.mxu0 0.0
  %1222 = vmatmul.mubr.f32.gmra.mxu0 %v718
  %v1223 = vpop.f32.mrf.mxu0
  %v1224 = vadd.f32 %v967, %v1223
  %v1225 = vpop.f32.mrf.mxu0
  %v1226 = vadd.f32 %v969, %v1225
  %1227 = vmatprep.mubr.f32.mxu0 0.0
  %1228 = vmatmul.mubr.f32.gmra.mxu0 %v719
  %v1229 = vpop.f32.mrf.mxu0
  %v1230 = vadd.f32 %v973, %v1229
  %v1231 = vpop.f32.mrf.mxu0
  %v1232 = vadd.f32 %v975, %v1231
  %1233 = vmatprep.mubr.f32.mxu0 0.0
  %1234 = vmatmul.mubr.f32.gmra.mxu0 %v720
  %v1235 = vpop.f32.mrf.mxu0
  %v1236 = vadd.f32 %v979, %v1235
  %v1237 = vpop.f32.mrf.mxu0
  %v1238 = vadd.f32 %v981, %v1237
  %1239 = vmatprep.mubr.f32.mxu0 0.0
  %1240 = vmatmul.mubr.f32.gmra.mxu0 %v721
  %v1241 = vpop.f32.mrf.mxu0
  %v1242 = vadd.f32 %v985, %v1241
  %v1243 = vpop.f32.mrf.mxu0
  %v1244 = vadd.f32 %v987, %v1243
  %1245 = vmatprep.mubr.f32.mxu0 0.0
  %1246 = vmatmul.mubr.f32.gmra.mxu0 %v722
  %v1247 = vpop.f32.mrf.mxu0
  %v1248 = vadd.f32 %v991, %v1247
  %v1249 = vpop.f32.mrf.mxu0
  %v1250 = vadd.f32 %v993, %v1249
  %1251 = vmatprep.mubr.f32.mxu0 0.0
  %1252 = vmatmul.mubr.f32.gmra.mxu0 %v723
  %v1253 = vpop.f32.mrf.mxu0
  %v1254 = vadd.f32 %v997, %v1253
  %v1255 = vpop.f32.mrf.mxu0
  %v1256 = vadd.f32 %v999, %v1255
  %1257 = vmatprep.mubr.f32.mxu0 0.0
  %1258 = vmatmul.mubr.f32.gmra.mxu0 %v724
  %v1259 = vpop.f32.mrf.mxu0
  %v1260 = vadd.f32 %v1003, %v1259
  %v1261 = vpop.f32.mrf.mxu0
  %v1262 = vadd.f32 %v1005, %v1261
  %1263 = vmatprep.mubr.f32.mxu0 0.0
  %1264 = vmatmul.mubr.f32.gmra.mxu0 %v725
  %v1265 = vpop.f32.mrf.mxu0
  %v1266 = vadd.f32 %v1009, %v1265
  %v1267 = vpop.f32.mrf.mxu0
  %v1268 = vadd.f32 %v1011, %v1267
  %1269 = vmatprep.mubr.f32.mxu0 0.0
  %1270 = vmatmul.mubr.f32.gmra.mxu0 %v726
  %v1271 = vpop.f32.mrf.mxu0
  %v1272 = vadd.f32 %v1015, %v1271
  %v1273 = vpop.f32.mrf.mxu0
  %v1274 = vadd.f32 %v1017, %v1273
  %1275 = vmatprep.mubr.f32.mxu0 0.0
  %1276 = vmatmul.mubr.f32.gmra.mxu0 %v727
  %v1277 = vpop.f32.mrf.mxu0
  %v1278 = vadd.f32 %v1021, %v1277
  %v1279 = vpop.f32.mrf.mxu0
  %v1280 = vadd.f32 %v1023, %v1279
  %1281 = vmatprep.mubr.f32.mxu0 0.0
  %1282 = vmatmul.mubr.f32.gmra.mxu0 %v728
  %v1283 = vpop.f32.mrf.mxu0
  %v1284 = vadd.f32 %v1027, %v1283
  %v1285 = vpop.f32.mrf.mxu0
  %v1286 = vadd.f32 %v1029, %v1285
  %1287 = vmatprep.mubr.f32.mxu0 0.0
  %1288 = vmatmul.mubr.f32.gmra.mxu0 %v729
  %v1289 = vpop.f32.mrf.mxu0
  %v1290 = vadd.f32 %v1033, %v1289
  %v1291 = vpop.f32.mrf.mxu0
  %v1292 = vadd.f32 %v1035, %v1291
  %1293 = vmatprep.mubr.f32.mxu0 0.0
  %1294 = vmatmul.mubr.f32.gmra.mxu0 %v730
  %v1295 = vpop.f32.mrf.mxu0
  %v1296 = vadd.f32 %v1039, %v1295
  %v1297 = vpop.f32.mrf.mxu0
  %v1298 = vadd.f32 %v1041, %v1297
  %1299 = vmatprep.mubr.f32.mxu0 0.0
  %1300 = vmatmul.mubr.f32.gmra.mxu0 %v731
  %v1301 = vpop.f32.mrf.mxu0
  %v1302 = vadd.f32 %v1045, %v1301
  %v1303 = vpop.f32.mrf.mxu0
  %v1304 = vadd.f32 %v1047, %v1303
  %1305 = vmatprep.mubr.f32.mxu0 0.0
  %1306 = vmatmul.mubr.f32.gmra.mxu0 %v732
  %v1307 = vpop.f32.mrf.mxu0
  %v1308 = vadd.f32 %v1051, %v1307
  %v1309 = vpop.f32.mrf.mxu0
  %v1310 = vadd.f32 %v1053, %v1309
  %1311 = vdwg.mxu0
  %v1312 = vrot.slane %v410, 1
  %v1313 = vrot.slane %v411, 1
  %v1314 = vrot.slane %v412, 1
  %v1315 = vrot.slane %v413, 1
  %v1316 = vrot.slane %v414, 1
  %v1317 = vrot.slane %v415, 1
  %v1318 = vrot.slane %v416, 1
  %v1319 = vrot.slane %v417, 1
  %v1320 = vrot.slane %v418, 1
  %v1321 = vrot.slane %v419, 1
  %v1322 = vrot.slane %v420, 1
  %v1323 = vrot.slane %v421, 1
  %v1324 = vrot.slane %v422, 1
  %v1325 = vrot.slane %v423, 1
  %v1326 = vrot.slane %v424, 1
  %v1327 = vrot.slane %v425, 1
  %v1328 = vrot.slane %v426, 1
  %v1329 = vrot.slane %v427, 1
  %v1330 = vrot.slane %v428, 1
  %v1331 = vrot.slane %v429, 1
  %v1332 = vrot.slane %v430, 1
  %v1333 = vrot.slane %v431, 1
  %v1334 = vrot.slane %v432, 1
  %v1335 = vrot.slane %v433, 1
  %v1336 = vrot.slane %v434, 1
  %v1337 = vrot.slane %v435, 1
  %v1338 = vrot.slane %v436, 1
  %v1339 = vrot.slane %v437, 1
  %v1340 = vrot.slane %v438, 1
  %v1341 = vrot.slane %v439, 1
  %v1342 = vrot.slane %v440, 1
  %v1343 = vrot.slane %v441, 1
  %vm1344 = vcmp.lt.s32.totalorder %v475, 7
  %v1345 = vsel %vm1344, %v1342, %v1343
  %v1346 = vsel %vm1344, %v1341, %v1342
  %v1347 = vsel %vm1344, %v1340, %v1341
  %v1348 = vsel %vm1344, %v1339, %v1340
  %v1349 = vsel %vm1344, %v1338, %v1339
  %v1350 = vsel %vm1344, %v1337, %v1338
  %v1351 = vsel %vm1344, %v1336, %v1337
  %v1352 = vsel %vm1344, %v1335, %v1336
  %v1353 = vsel %vm1344, %v1334, %v1335
  %v1354 = vsel %vm1344, %v1333, %v1334
  %v1355 = vsel %vm1344, %v1332, %v1333
  %v1356 = vsel %vm1344, %v1331, %v1332
  %v1357 = vsel %vm1344, %v1330, %v1331
  %v1358 = vsel %vm1344, %v1329, %v1330
  %v1359 = vsel %vm1344, %v1328, %v1329
  %v1360 = vsel %vm1344, %v1327, %v1328
  %v1361 = vsel %vm1344, %v1326, %v1327
  %v1362 = vsel %vm1344, %v1325, %v1326
  %v1363 = vsel %vm1344, %v1324, %v1325
  %v1364 = vsel %vm1344, %v1323, %v1324
  %v1365 = vsel %vm1344, %v1322, %v1323
  %v1366 = vsel %vm1344, %v1321, %v1322
  %v1367 = vsel %vm1344, %v1320, %v1321
  %v1368 = vsel %vm1344, %v1319, %v1320
  %v1369 = vsel %vm1344, %v1318, %v1319
  %v1370 = vsel %vm1344, %v1317, %v1318
  %v1371 = vsel %vm1344, %v1316, %v1317
  %v1372 = vsel %vm1344, %v1315, %v1316
  %v1373 = vsel %vm1344, %v1314, %v1315
  %v1374 = vsel %vm1344, %v1313, %v1314
  %v1375 = vsel %vm1344, %v1312, %v1313
  %v1376 = vsel %vm1344, %v1343, %v1312
  %s1377 = scalar_lea.vmem %s2, 512
  %v1378 = vld [vmem:[%s1377] sm:$0xff]
  %v1379 = vld [vmem:[%s1377 + $0x8] sm:$0xff]
  %v1380 = vld [vmem:[%s1377 + $0x10] sm:$0xff]
  %v1381 = vld [vmem:[%s1377 + $0x18] sm:$0xff]
  %v1382 = vld [vmem:[%s1377 + $0x20] sm:$0xff]
  %v1383 = vld [vmem:[%s1377 + $0x28] sm:$0xff]
  %v1384 = vld [vmem:[%s1377 + $0x30] sm:$0xff]
  %v1385 = vld [vmem:[%s1377 + $0x38] sm:$0xff]
  %v1386 = vld [vmem:[%s1377 + $0x40] sm:$0xff]
  %v1387 = vld [vmem:[%s1377 + $0x48] sm:$0xff]
  %v1388 = vld [vmem:[%s1377 + $0x50] sm:$0xff]
  %v1389 = vld [vmem:[%s1377 + $0x58] sm:$0xff]
  %v1390 = vld [vmem:[%s1377 + $0x60] sm:$0xff]
  %v1391 = vld [vmem:[%s1377 + $0x68] sm:$0xff]
  %v1392 = vld [vmem:[%s1377 + $0x70] sm:$0xff]
  %v1393 = vld [vmem:[%s1377 + $0x78] sm:$0xff]
  %v1394 = vld [vmem:[%s1377 + $0x80] sm:$0xff]
  %v1395 = vld [vmem:[%s1377 + $0x88] sm:$0xff]
  %v1396 = vld [vmem:[%s1377 + $0x90] sm:$0xff]
  %v1397 = vld [vmem:[%s1377 + $0x98] sm:$0xff]
  %v1398 = vld [vmem:[%s1377 + $0xa0] sm:$0xff]
  %v1399 = vld [vmem:[%s1377 + $0xa8] sm:$0xff]
  %v1400 = vld [vmem:[%s1377 + $0xb0] sm:$0xff]
  %v1401 = vld [vmem:[%s1377 + $0xb8] sm:$0xff]
  %v1402 = vld [vmem:[%s1377 + $0xc0] sm:$0xff]
  %v1403 = vld [vmem:[%s1377 + $0xc8] sm:$0xff]
  %v1404 = vld [vmem:[%s1377 + $0xd0] sm:$0xff]
  %v1405 = vld [vmem:[%s1377 + $0xd8] sm:$0xff]
  %v1406 = vld [vmem:[%s1377 + $0xe0] sm:$0xff]
  %v1407 = vld [vmem:[%s1377 + $0xe8] sm:$0xff]
  %v1408 = vld [vmem:[%s1377 + $0xf0] sm:$0xff]
  %v1409 = vld [vmem:[%s1377 + $0xf8] sm:$0xff]
  %1411 = vset.pattern.permute.xlu0 0
  %1412 = vperm.xlu0 %1411, %v1378
  %v1413 = vpop.permute.xlu0 %1412
  %1416 = vset.pattern.permute.xlu0 0
  %1417 = vperm.xlu0 %1416, %v1379
  %v1418 = vpop.permute.xlu0 %1417
  %1421 = vset.pattern.permute.xlu0 0
  %1422 = vperm.xlu0 %1421, %v1380
  %v1423 = vpop.permute.xlu0 %1422
  %1426 = vset.pattern.permute.xlu0 0
  %1427 = vperm.xlu0 %1426, %v1381
  %v1428 = vpop.permute.xlu0 %1427
  %1431 = vset.pattern.permute.xlu0 0
  %1432 = vperm.xlu0 %1431, %v1382
  %v1433 = vpop.permute.xlu0 %1432
  %1436 = vset.pattern.permute.xlu0 0
  %1437 = vperm.xlu0 %1436, %v1383
  %v1438 = vpop.permute.xlu0 %1437
  %1441 = vset.pattern.permute.xlu0 0
  %1442 = vperm.xlu0 %1441, %v1384
  %v1443 = vpop.permute.xlu0 %1442
  %1446 = vset.pattern.permute.xlu0 0
  %1447 = vperm.xlu0 %1446, %v1385
  %v1448 = vpop.permute.xlu0 %1447
  %1451 = vset.pattern.permute.xlu0 0
  %1452 = vperm.xlu0 %1451, %v1386
  %v1453 = vpop.permute.xlu0 %1452
  %1456 = vset.pattern.permute.xlu0 0
  %1457 = vperm.xlu0 %1456, %v1387
  %v1458 = vpop.permute.xlu0 %1457
  %1461 = vset.pattern.permute.xlu0 0
  %1462 = vperm.xlu0 %1461, %v1388
  %v1463 = vpop.permute.xlu0 %1462
  %1466 = vset.pattern.permute.xlu0 0
  %1467 = vperm.xlu0 %1466, %v1389
  %v1468 = vpop.permute.xlu0 %1467
  %1471 = vset.pattern.permute.xlu0 0
  %1472 = vperm.xlu0 %1471, %v1390
  %v1473 = vpop.permute.xlu0 %1472
  %1476 = vset.pattern.permute.xlu0 0
  %1477 = vperm.xlu0 %1476, %v1391
  %v1478 = vpop.permute.xlu0 %1477
  %1481 = vset.pattern.permute.xlu0 0
  %1482 = vperm.xlu0 %1481, %v1392
  %v1483 = vpop.permute.xlu0 %1482
  %1486 = vset.pattern.permute.xlu0 0
  %1487 = vperm.xlu0 %1486, %v1393
  %v1488 = vpop.permute.xlu0 %1487
  %1491 = vset.pattern.permute.xlu0 0
  %1492 = vperm.xlu0 %1491, %v1394
  %v1493 = vpop.permute.xlu0 %1492
  %1496 = vset.pattern.permute.xlu0 0
  %1497 = vperm.xlu0 %1496, %v1395
  %v1498 = vpop.permute.xlu0 %1497
  %1501 = vset.pattern.permute.xlu0 0
  %1502 = vperm.xlu0 %1501, %v1396
  %v1503 = vpop.permute.xlu0 %1502
  %1506 = vset.pattern.permute.xlu0 0
  %1507 = vperm.xlu0 %1506, %v1397
  %v1508 = vpop.permute.xlu0 %1507
  %1511 = vset.pattern.permute.xlu0 0
  %1512 = vperm.xlu0 %1511, %v1398
  %v1513 = vpop.permute.xlu0 %1512
  %1516 = vset.pattern.permute.xlu0 0
  %1517 = vperm.xlu0 %1516, %v1399
  %v1518 = vpop.permute.xlu0 %1517
  %1521 = vset.pattern.permute.xlu0 0
  %1522 = vperm.xlu0 %1521, %v1400
  %v1523 = vpop.permute.xlu0 %1522
  %1526 = vset.pattern.permute.xlu0 0
  %1527 = vperm.xlu0 %1526, %v1401
  %v1528 = vpop.permute.xlu0 %1527
  %1531 = vset.pattern.permute.xlu0 0
  %1532 = vperm.xlu0 %1531, %v1402
  %v1533 = vpop.permute.xlu0 %1532
  %1536 = vset.pattern.permute.xlu0 0
  %1537 = vperm.xlu0 %1536, %v1403
  %v1538 = vpop.permute.xlu0 %1537
  %1541 = vset.pattern.permute.xlu0 0
  %1542 = vperm.xlu0 %1541, %v1404
  %v1543 = vpop.permute.xlu0 %1542
  %1546 = vset.pattern.permute.xlu0 0
  %1547 = vperm.xlu0 %1546, %v1405
  %v1548 = vpop.permute.xlu0 %1547
  %1551 = vset.pattern.permute.xlu0 0
  %1552 = vperm.xlu0 %1551, %v1406
  %v1553 = vpop.permute.xlu0 %1552
  %1556 = vset.pattern.permute.xlu0 0
  %1557 = vperm.xlu0 %1556, %v1407
  %v1558 = vpop.permute.xlu0 %1557
  %1561 = vset.pattern.permute.xlu0 0
  %1562 = vperm.xlu0 %1561, %v1408
  %v1563 = vpop.permute.xlu0 %1562
  %1566 = vset.pattern.permute.xlu0 0
  %1567 = vperm.xlu0 %1566, %v1409
  %v1568 = vpop.permute.xlu0 %1567
  %v1570 = vmul.f32 %v1375, %v1413
  %v1571 = vmul.f32 %v1374, %v1418
  %v1572 = vmul.f32 %v1373, %v1423
  %v1573 = vmul.f32 %v1372, %v1428
  %v1574 = vmul.f32 %v1371, %v1433
  %v1575 = vmul.f32 %v1370, %v1438
  %v1576 = vmul.f32 %v1369, %v1443
  %v1577 = vmul.f32 %v1368, %v1448
  %v1578 = vmul.f32 %v1367, %v1453
  %v1579 = vmul.f32 %v1366, %v1458
  %v1580 = vmul.f32 %v1365, %v1463
  %v1581 = vmul.f32 %v1364, %v1468
  %v1582 = vmul.f32 %v1363, %v1473
  %v1583 = vmul.f32 %v1362, %v1478
  %v1584 = vmul.f32 %v1361, %v1483
  %v1585 = vmul.f32 %v1360, %v1488
  %v1586 = vmul.f32 %v1359, %v1493
  %v1587 = vmul.f32 %v1358, %v1498
  %v1588 = vmul.f32 %v1357, %v1503
  %v1589 = vmul.f32 %v1356, %v1508
  %v1590 = vmul.f32 %v1355, %v1513
  %v1591 = vmul.f32 %v1354, %v1518
  %v1592 = vmul.f32 %v1353, %v1523
  %v1593 = vmul.f32 %v1352, %v1528
  %v1594 = vmul.f32 %v1351, %v1533
  %v1595 = vmul.f32 %v1350, %v1538
  %v1596 = vmul.f32 %v1349, %v1543
  %v1597 = vmul.f32 %v1348, %v1548
  %v1598 = vmul.f32 %v1347, %v1553
  %v1599 = vmul.f32 %v1346, %v1558
  %v1600 = vmul.f32 %v1345, %v1563
  %v1601 = vmul.f32 %v1376, %v1568
  %s1602 = scalar_lea.vmem %s5, 512
  %v1603 = vld [vmem:[%s1602] sm:$0xff]
  %v1604 = vld [vmem:[%s1602 + $0x8] sm:$0xff]
  %v1605 = vld [vmem:[%s1602 + $0x10] sm:$0xff]
  %v1606 = vld [vmem:[%s1602 + $0x18] sm:$0xff]
  %v1607 = vld [vmem:[%s1602 + $0x20] sm:$0xff]
  %v1608 = vld [vmem:[%s1602 + $0x28] sm:$0xff]
  %v1609 = vld [vmem:[%s1602 + $0x30] sm:$0xff]
  %v1610 = vld [vmem:[%s1602 + $0x38] sm:$0xff]
  %v1611 = vld [vmem:[%s1602 + $0x40] sm:$0xff]
  %v1612 = vld [vmem:[%s1602 + $0x48] sm:$0xff]
  %v1613 = vld [vmem:[%s1602 + $0x50] sm:$0xff]
  %v1614 = vld [vmem:[%s1602 + $0x58] sm:$0xff]
  %v1615 = vld [vmem:[%s1602 + $0x60] sm:$0xff]
  %v1616 = vld [vmem:[%s1602 + $0x68] sm:$0xff]
  %v1617 = vld [vmem:[%s1602 + $0x70] sm:$0xff]
  %v1618 = vld [vmem:[%s1602 + $0x78] sm:$0xff]
  %v1619 = vld [vmem:[%s1602 + $0x80] sm:$0xff]
  %v1620 = vld [vmem:[%s1602 + $0x88] sm:$0xff]
  %v1621 = vld [vmem:[%s1602 + $0x90] sm:$0xff]
  %v1622 = vld [vmem:[%s1602 + $0x98] sm:$0xff]
  %v1623 = vld [vmem:[%s1602 + $0xa0] sm:$0xff]
  %v1624 = vld [vmem:[%s1602 + $0xa8] sm:$0xff]
  %v1625 = vld [vmem:[%s1602 + $0xb0] sm:$0xff]
  %v1626 = vld [vmem:[%s1602 + $0xb8] sm:$0xff]
  %v1627 = vld [vmem:[%s1602 + $0xc0] sm:$0xff]
  %v1628 = vld [vmem:[%s1602 + $0xc8] sm:$0xff]
  %v1629 = vld [vmem:[%s1602 + $0xd0] sm:$0xff]
  %v1630 = vld [vmem:[%s1602 + $0xd8] sm:$0xff]
  %v1631 = vld [vmem:[%s1602 + $0xe0] sm:$0xff]
  %v1632 = vld [vmem:[%s1602 + $0xe8] sm:$0xff]
  %v1633 = vld [vmem:[%s1602 + $0xf0] sm:$0xff]
  %v1634 = vld [vmem:[%s1602 + $0xf8] sm:$0xff]
  %1635 = vmatprep.subr.mxu0 %v1634
  %1636 = vmatpush1.msra.mxu0 %v1633
  %1637 = vmatprep.subr.mxu0 %v1632
  %1638 = vmatpush1.msra.mxu0 %v1631
  %1639 = vmatprep.subr.mxu0 %v1630
  %1640 = vmatpush1.msra.mxu0 %v1629
  %1641 = vmatprep.subr.mxu0 %v1628
  %1642 = vmatpush1.msra.mxu0 %v1627
  %1643 = vmatprep.subr.mxu0 %v1626
  %1644 = vmatpush1.msra.mxu0 %v1625
  %1645 = vmatprep.subr.mxu0 %v1624
  %1646 = vmatpush1.msra.mxu0 %v1623
  %1647 = vmatprep.subr.mxu0 %v1622
  %1648 = vmatpush1.msra.mxu0 %v1621
  %1649 = vmatprep.subr.mxu0 %v1620
  %1650 = vmatpush1.msra.mxu0 %v1619
  %1651 = vmatprep.subr.mxu0 %v1618
  %1652 = vmatpush1.msra.mxu0 %v1617
  %1653 = vmatprep.subr.mxu0 %v1616
  %1654 = vmatpush1.msra.mxu0 %v1615
  %1655 = vmatprep.subr.mxu0 %v1614
  %1656 = vmatpush1.msra.mxu0 %v1613
  %1657 = vmatprep.subr.mxu0 %v1612
  %1658 = vmatpush1.msra.mxu0 %v1611
  %1659 = vmatprep.subr.mxu0 %v1610
  %1660 = vmatpush1.msra.mxu0 %v1609
  %1661 = vmatprep.subr.mxu0 %v1608
  %1662 = vmatpush1.msra.mxu0 %v1607
  %1663 = vmatprep.subr.mxu0 %v1606
  %1664 = vmatpush1.msra.mxu0 %v1605
  %1665 = vmatprep.subr.mxu0 %v1604
  %1666 = vmatpush1.msra.mxu0 %v1603
  %1667 = vmatprep.subr.mxu0 0.0
  %1668 = vmatpush2.msra.mxu0 0.0
  %1669 = vmatprep.subr.mxu0 0.0
  %1670 = vmatpush2.msra.mxu0 0.0
  %1671 = vmatprep.subr.mxu0 0.0
  %1672 = vmatpush2.msra.mxu0 0.0
  %1673 = vmatprep.subr.mxu0 0.0
  %1674 = vmatpush2.msra.mxu0 0.0
  %1675 = vmatprep.subr.mxu0 0.0
  %1676 = vmatpush2.msra.mxu0 0.0
  %1677 = vmatprep.subr.mxu0 0.0
  %1678 = vmatpush2.msra.mxu0 0.0
  %1679 = vmatprep.subr.mxu0 0.0
  %1680 = vmatpush2.msra.mxu0 0.0
  %1681 = vmatprep.subr.mxu0 0.0
  %1682 = vmatpush2.msra.mxu0 0.0
  %1683 = vmatprep.subr.mxu0 0.0
  %1684 = vmatpush2.msra.mxu0 0.0
  %1685 = vmatprep.subr.mxu0 0.0
  %1686 = vmatpush2.msra.mxu0 0.0
  %1687 = vmatprep.subr.mxu0 0.0
  %1688 = vmatpush2.msra.mxu0 0.0
  %1689 = vmatprep.subr.mxu0 0.0
  %1690 = vmatpush2.msra.mxu0 0.0
  %1691 = vmatprep.subr.mxu0 0.0
  %1692 = vmatpush2.msra.mxu0 0.0
  %1693 = vmatprep.subr.mxu0 0.0
  %1694 = vmatpush2.msra.mxu0 0.0
  %1695 = vmatprep.subr.mxu0 0.0
  %1696 = vmatpush2.msra.mxu0 0.0
  %1697 = vmatprep.subr.mxu0 0.0
  %1698 = vmatpush2.msra.mxu0 0.0
  %1699 = vmatprep.mubr.f32.mxu0 0.0
  %1700 = vmatmul.mubr.f32.gmra.mxu0 %v1570
  %v1701 = vpop.f32.mrf.mxu0
  %v1702 = vadd.f32 0.0, %v1701
  %v1703 = vpop.f32.mrf.mxu0
  %v1704 = vadd.f32 0.0, %v1703
  %1705 = vmatprep.mubr.f32.mxu0 0.0
  %1706 = vmatmul.mubr.f32.gmra.mxu0 %v1571
  %v1707 = vpop.f32.mrf.mxu0
  %v1708 = vadd.f32 0.0, %v1707
  %v1709 = vpop.f32.mrf.mxu0
  %v1710 = vadd.f32 0.0, %v1709
  %1711 = vmatprep.mubr.f32.mxu0 0.0
  %1712 = vmatmul.mubr.f32.gmra.mxu0 %v1572
  %v1713 = vpop.f32.mrf.mxu0
  %v1714 = vadd.f32 0.0, %v1713
  %v1715 = vpop.f32.mrf.mxu0
  %v1716 = vadd.f32 0.0, %v1715
  %1717 = vmatprep.mubr.f32.mxu0 0.0
  %1718 = vmatmul.mubr.f32.gmra.mxu0 %v1573
  %v1719 = vpop.f32.mrf.mxu0
  %v1720 = vadd.f32 0.0, %v1719
  %v1721 = vpop.f32.mrf.mxu0
  %v1722 = vadd.f32 0.0, %v1721
  %1723 = vmatprep.mubr.f32.mxu0 0.0
  %1724 = vmatmul.mubr.f32.gmra.mxu0 %v1574
  %v1725 = vpop.f32.mrf.mxu0
  %v1726 = vadd.f32 0.0, %v1725
  %v1727 = vpop.f32.mrf.mxu0
  %v1728 = vadd.f32 0.0, %v1727
  %1729 = vmatprep.mubr.f32.mxu0 0.0
  %1730 = vmatmul.mubr.f32.gmra.mxu0 %v1575
  %v1731 = vpop.f32.mrf.mxu0
  %v1732 = vadd.f32 0.0, %v1731
  %v1733 = vpop.f32.mrf.mxu0
  %v1734 = vadd.f32 0.0, %v1733
  %1735 = vmatprep.mubr.f32.mxu0 0.0
  %1736 = vmatmul.mubr.f32.gmra.mxu0 %v1576
  %v1737 = vpop.f32.mrf.mxu0
  %v1738 = vadd.f32 0.0, %v1737
  %v1739 = vpop.f32.mrf.mxu0
  %v1740 = vadd.f32 0.0, %v1739
  %1741 = vmatprep.mubr.f32.mxu0 0.0
  %1742 = vmatmul.mubr.f32.gmra.mxu0 %v1577
  %v1743 = vpop.f32.mrf.mxu0
  %v1744 = vadd.f32 0.0, %v1743
  %v1745 = vpop.f32.mrf.mxu0
  %v1746 = vadd.f32 0.0, %v1745
  %1747 = vmatprep.mubr.f32.mxu0 0.0
  %1748 = vmatmul.mubr.f32.gmra.mxu0 %v1578
  %v1749 = vpop.f32.mrf.mxu0
  %v1750 = vadd.f32 0.0, %v1749
  %v1751 = vpop.f32.mrf.mxu0
  %v1752 = vadd.f32 0.0, %v1751
  %1753 = vmatprep.mubr.f32.mxu0 0.0
  %1754 = vmatmul.mubr.f32.gmra.mxu0 %v1579
  %v1755 = vpop.f32.mrf.mxu0
  %v1756 = vadd.f32 0.0, %v1755
  %v1757 = vpop.f32.mrf.mxu0
  %v1758 = vadd.f32 0.0, %v1757
  %1759 = vmatprep.mubr.f32.mxu0 0.0
  %1760 = vmatmul.mubr.f32.gmra.mxu0 %v1580
  %v1761 = vpop.f32.mrf.mxu0
  %v1762 = vadd.f32 0.0, %v1761
  %v1763 = vpop.f32.mrf.mxu0
  %v1764 = vadd.f32 0.0, %v1763
  %1765 = vmatprep.mubr.f32.mxu0 0.0
  %1766 = vmatmul.mubr.f32.gmra.mxu0 %v1581
  %v1767 = vpop.f32.mrf.mxu0
  %v1768 = vadd.f32 0.0, %v1767
  %v1769 = vpop.f32.mrf.mxu0
  %v1770 = vadd.f32 0.0, %v1769
  %1771 = vmatprep.mubr.f32.mxu0 0.0
  %1772 = vmatmul.mubr.f32.gmra.mxu0 %v1582
  %v1773 = vpop.f32.mrf.mxu0
  %v1774 = vadd.f32 0.0, %v1773
  %v1775 = vpop.f32.mrf.mxu0
  %v1776 = vadd.f32 0.0, %v1775
  %1777 = vmatprep.mubr.f32.mxu0 0.0
  %1778 = vmatmul.mubr.f32.gmra.mxu0 %v1583
  %v1779 = vpop.f32.mrf.mxu0
  %v1780 = vadd.f32 0.0, %v1779
  %v1781 = vpop.f32.mrf.mxu0
  %v1782 = vadd.f32 0.0, %v1781
  %1783 = vmatprep.mubr.f32.mxu0 0.0
  %1784 = vmatmul.mubr.f32.gmra.mxu0 %v1584
  %v1785 = vpop.f32.mrf.mxu0
  %v1786 = vadd.f32 0.0, %v1785
  %v1787 = vpop.f32.mrf.mxu0
  %v1788 = vadd.f32 0.0, %v1787
  %1789 = vmatprep.mubr.f32.mxu0 0.0
  %1790 = vmatmul.mubr.f32.gmra.mxu0 %v1585
  %v1791 = vpop.f32.mrf.mxu0
  %v1792 = vadd.f32 0.0, %v1791
  %v1793 = vpop.f32.mrf.mxu0
  %v1794 = vadd.f32 0.0, %v1793
  %1795 = vmatprep.mubr.f32.mxu0 0.0
  %1796 = vmatmul.mubr.f32.gmra.mxu0 %v1586
  %v1797 = vpop.f32.mrf.mxu0
  %v1798 = vadd.f32 0.0, %v1797
  %v1799 = vpop.f32.mrf.mxu0
  %v1800 = vadd.f32 0.0, %v1799
  %1801 = vmatprep.mubr.f32.mxu0 0.0
  %1802 = vmatmul.mubr.f32.gmra.mxu0 %v1587
  %v1803 = vpop.f32.mrf.mxu0
  %v1804 = vadd.f32 0.0, %v1803
  %v1805 = vpop.f32.mrf.mxu0
  %v1806 = vadd.f32 0.0, %v1805
  %1807 = vmatprep.mubr.f32.mxu0 0.0
  %1808 = vmatmul.mubr.f32.gmra.mxu0 %v1588
  %v1809 = vpop.f32.mrf.mxu0
  %v1810 = vadd.f32 0.0, %v1809
  %v1811 = vpop.f32.mrf.mxu0
  %v1812 = vadd.f32 0.0, %v1811
  %1813 = vmatprep.mubr.f32.mxu0 0.0
  %1814 = vmatmul.mubr.f32.gmra.mxu0 %v1589
  %v1815 = vpop.f32.mrf.mxu0
  %v1816 = vadd.f32 0.0, %v1815
  %v1817 = vpop.f32.mrf.mxu0
  %v1818 = vadd.f32 0.0, %v1817
  %1819 = vmatprep.mubr.f32.mxu0 0.0
  %1820 = vmatmul.mubr.f32.gmra.mxu0 %v1590
  %v1821 = vpop.f32.mrf.mxu0
  %v1822 = vadd.f32 0.0, %v1821
  %v1823 = vpop.f32.mrf.mxu0
  %v1824 = vadd.f32 0.0, %v1823
  %1825 = vmatprep.mubr.f32.mxu0 0.0
  %1826 = vmatmul.mubr.f32.gmra.mxu0 %v1591
  %v1827 = vpop.f32.mrf.mxu0
  %v1828 = vadd.f32 0.0, %v1827
  %v1829 = vpop.f32.mrf.mxu0
  %v1830 = vadd.f32 0.0, %v1829
  %1831 = vmatprep.mubr.f32.mxu0 0.0
  %1832 = vmatmul.mubr.f32.gmra.mxu0 %v1592
  %v1833 = vpop.f32.mrf.mxu0
  %v1834 = vadd.f32 0.0, %v1833
  %v1835 = vpop.f32.mrf.mxu0
  %v1836 = vadd.f32 0.0, %v1835
  %1837 = vmatprep.mubr.f32.mxu0 0.0
  %1838 = vmatmul.mubr.f32.gmra.mxu0 %v1593
  %v1839 = vpop.f32.mrf.mxu0
  %v1840 = vadd.f32 0.0, %v1839
  %v1841 = vpop.f32.mrf.mxu0
  %v1842 = vadd.f32 0.0, %v1841
  %1843 = vmatprep.mubr.f32.mxu0 0.0
  %1844 = vmatmul.mubr.f32.gmra.mxu0 %v1594
  %v1845 = vpop.f32.mrf.mxu0
  %v1846 = vadd.f32 0.0, %v1845
  %v1847 = vpop.f32.mrf.mxu0
  %v1848 = vadd.f32 0.0, %v1847
  %1849 = vmatprep.mubr.f32.mxu0 0.0
  %1850 = vmatmul.mubr.f32.gmra.mxu0 %v1595
  %v1851 = vpop.f32.mrf.mxu0
  %v1852 = vadd.f32 0.0, %v1851
  %v1853 = vpop.f32.mrf.mxu0
  %v1854 = vadd.f32 0.0, %v1853
  %1855 = vmatprep.mubr.f32.mxu0 0.0
  %1856 = vmatmul.mubr.f32.gmra.mxu0 %v1596
  %v1857 = vpop.f32.mrf.mxu0
  %v1858 = vadd.f32 0.0, %v1857
  %v1859 = vpop.f32.mrf.mxu0
  %v1860 = vadd.f32 0.0, %v1859
  %1861 = vmatprep.mubr.f32.mxu0 0.0
  %1862 = vmatmul.mubr.f32.gmra.mxu0 %v1597
  %v1863 = vpop.f32.mrf.mxu0
  %v1864 = vadd.f32 0.0, %v1863
  %v1865 = vpop.f32.mrf.mxu0
  %v1866 = vadd.f32 0.0, %v1865
  %1867 = vmatprep.mubr.f32.mxu0 0.0
  %1868 = vmatmul.mubr.f32.gmra.mxu0 %v1598
  %v1869 = vpop.f32.mrf.mxu0
  %v1870 = vadd.f32 0.0, %v1869
  %v1871 = vpop.f32.mrf.mxu0
  %v1872 = vadd.f32 0.0, %v1871
  %1873 = vmatprep.mubr.f32.mxu0 0.0
  %1874 = vmatmul.mubr.f32.gmra.mxu0 %v1599
  %v1875 = vpop.f32.mrf.mxu0
  %v1876 = vadd.f32 0.0, %v1875
  %v1877 = vpop.f32.mrf.mxu0
  %v1878 = vadd.f32 0.0, %v1877
  %1879 = vmatprep.mubr.f32.mxu0 0.0
  %1880 = vmatmul.mubr.f32.gmra.mxu0 %v1600
  %v1881 = vpop.f32.mrf.mxu0
  %v1882 = vadd.f32 0.0, %v1881
  %v1883 = vpop.f32.mrf.mxu0
  %v1884 = vadd.f32 0.0, %v1883
  %1885 = vmatprep.mubr.f32.mxu0 0.0
  %1886 = vmatmul.mubr.f32.gmra.mxu0 %v1601
  %v1887 = vpop.f32.mrf.mxu0
  %v1888 = vadd.f32 0.0, %v1887
  %v1889 = vpop.f32.mrf.mxu0
  %v1890 = vadd.f32 0.0, %v1889
  %1891 = vdwg.mxu0
  %v1892 = vadd.f32 %v1122, %v1702
  %v1893 = vadd.f32 %v1124, %v1704
  %v1894 = vadd.f32 %v1128, %v1708
  %v1895 = vadd.f32 %v1130, %v1710
  %v1896 = vadd.f32 %v1134, %v1714
  %v1897 = vadd.f32 %v1136, %v1716
  %v1898 = vadd.f32 %v1140, %v1720
  %v1899 = vadd.f32 %v1142, %v1722
  %v1900 = vadd.f32 %v1146, %v1726
  %v1901 = vadd.f32 %v1148, %v1728
  %v1902 = vadd.f32 %v1152, %v1732
  %v1903 = vadd.f32 %v1154, %v1734
  %v1904 = vadd.f32 %v1158, %v1738
  %v1905 = vadd.f32 %v1160, %v1740
  %v1906 = vadd.f32 %v1164, %v1744
  %v1907 = vadd.f32 %v1166, %v1746
  %v1908 = vadd.f32 %v1170, %v1750
  %v1909 = vadd.f32 %v1172, %v1752
  %v1910 = vadd.f32 %v1176, %v1756
  %v1911 = vadd.f32 %v1178, %v1758
  %v1912 = vadd.f32 %v1182, %v1762
  %v1913 = vadd.f32 %v1184, %v1764
  %v1914 = vadd.f32 %v1188, %v1768
  %v1915 = vadd.f32 %v1190, %v1770
  %v1916 = vadd.f32 %v1194, %v1774
  %v1917 = vadd.f32 %v1196, %v1776
  %v1918 = vadd.f32 %v1200, %v1780
  %v1919 = vadd.f32 %v1202, %v1782
  %v1920 = vadd.f32 %v1206, %v1786
  %v1921 = vadd.f32 %v1208, %v1788
  %v1922 = vadd.f32 %v1212, %v1792
  %v1923 = vadd.f32 %v1214, %v1794
  %v1924 = vadd.f32 %v1218, %v1798
  %v1925 = vadd.f32 %v1220, %v1800
  %v1926 = vadd.f32 %v1224, %v1804
  %v1927 = vadd.f32 %v1226, %v1806
  %v1928 = vadd.f32 %v1230, %v1810
  %v1929 = vadd.f32 %v1232, %v1812
  %v1930 = vadd.f32 %v1236, %v1816
  %v1931 = vadd.f32 %v1238, %v1818
  %v1932 = vadd.f32 %v1242, %v1822
  %v1933 = vadd.f32 %v1244, %v1824
  %v1934 = vadd.f32 %v1248, %v1828
  %v1935 = vadd.f32 %v1250, %v1830
  %v1936 = vadd.f32 %v1254, %v1834
  %v1937 = vadd.f32 %v1256, %v1836
  %v1938 = vadd.f32 %v1260, %v1840
  %v1939 = vadd.f32 %v1262, %v1842
  %v1940 = vadd.f32 %v1266, %v1846
  %v1941 = vadd.f32 %v1268, %v1848
  %v1942 = vadd.f32 %v1272, %v1852
  %v1943 = vadd.f32 %v1274, %v1854
  %v1944 = vadd.f32 %v1278, %v1858
  %v1945 = vadd.f32 %v1280, %v1860
  %v1946 = vadd.f32 %v1284, %v1864
  %v1947 = vadd.f32 %v1286, %v1866
  %v1948 = vadd.f32 %v1290, %v1870
  %v1949 = vadd.f32 %v1292, %v1872
  %v1950 = vadd.f32 %v1296, %v1876
  %v1951 = vadd.f32 %v1298, %v1878
  %v1952 = vadd.f32 %v1302, %v1882
  %v1953 = vadd.f32 %v1304, %v1884
  %v1954 = vadd.f32 %v1308, %v1888
  %v1955 = vadd.f32 %v1310, %v1890
  %v1956 = vld [vmem:[%s6] sm:$0x3]
  %v1958 = vlaneseq
  %v1959 = vshrl.u32 %v1958, 7
  %v1960 = vsub.s32 0, %v1959
  %v1961 = vrot.slane %v1956, %v1960
  %v1962 = vlaneseq
  %v1963 = vshrl.u32 %v1962, 7
  %v1964 = vsub.s32 1, %v1963
  %v1965 = vrot.slane %v1956, %v1964
  %v1968 = vadd.f32 %v1892, %v1961
  %v1969 = vadd.f32 %v1893, %v1965
  %v1970 = vadd.f32 %v1894, %v1961
  %v1971 = vadd.f32 %v1895, %v1965
  %v1972 = vadd.f32 %v1896, %v1961
  %v1973 = vadd.f32 %v1897, %v1965
  %v1974 = vadd.f32 %v1898, %v1961
  %v1975 = vadd.f32 %v1899, %v1965
  %v1976 = vadd.f32 %v1900, %v1961
  %v1977 = vadd.f32 %v1901, %v1965
  %v1978 = vadd.f32 %v1902, %v1961
  %v1979 = vadd.f32 %v1903, %v1965
  %v1980 = vadd.f32 %v1904, %v1961
  %v1981 = vadd.f32 %v1905, %v1965
  %v1982 = vadd.f32 %v1906, %v1961
  %v1983 = vadd.f32 %v1907, %v1965
  %v1984 = vadd.f32 %v1908, %v1961
  %v1985 = vadd.f32 %v1909, %v1965
  %v1986 = vadd.f32 %v1910, %v1961
  %v1987 = vadd.f32 %v1911, %v1965
  %v1988 = vadd.f32 %v1912, %v1961
  %v1989 = vadd.f32 %v1913, %v1965
  %v1990 = vadd.f32 %v1914, %v1961
  %v1991 = vadd.f32 %v1915, %v1965
  %v1992 = vadd.f32 %v1916, %v1961
  %v1993 = vadd.f32 %v1917, %v1965
  %v1994 = vadd.f32 %v1918, %v1961
  %v1995 = vadd.f32 %v1919, %v1965
  %v1996 = vadd.f32 %v1920, %v1961
  %v1997 = vadd.f32 %v1921, %v1965
  %v1998 = vadd.f32 %v1922, %v1961
  %v1999 = vadd.f32 %v1923, %v1965
  %v2000 = vadd.f32 %v1924, %v1961
  %v2001 = vadd.f32 %v1925, %v1965
  %v2002 = vadd.f32 %v1926, %v1961
  %v2003 = vadd.f32 %v1927, %v1965
  %v2004 = vadd.f32 %v1928, %v1961
  %v2005 = vadd.f32 %v1929, %v1965
  %v2006 = vadd.f32 %v1930, %v1961
  %v2007 = vadd.f32 %v1931, %v1965
  %v2008 = vadd.f32 %v1932, %v1961
  %v2009 = vadd.f32 %v1933, %v1965
  %v2010 = vadd.f32 %v1934, %v1961
  %v2011 = vadd.f32 %v1935, %v1965
  %v2012 = vadd.f32 %v1936, %v1961
  %v2013 = vadd.f32 %v1937, %v1965
  %v2014 = vadd.f32 %v1938, %v1961
  %v2015 = vadd.f32 %v1939, %v1965
  %v2016 = vadd.f32 %v1940, %v1961
  %v2017 = vadd.f32 %v1941, %v1965
  %v2018 = vadd.f32 %v1942, %v1961
  %v2019 = vadd.f32 %v1943, %v1965
  %v2020 = vadd.f32 %v1944, %v1961
  %v2021 = vadd.f32 %v1945, %v1965
  %v2022 = vadd.f32 %v1946, %v1961
  %v2023 = vadd.f32 %v1947, %v1965
  %v2024 = vadd.f32 %v1948, %v1961
  %v2025 = vadd.f32 %v1949, %v1965
  %v2026 = vadd.f32 %v1950, %v1961
  %v2027 = vadd.f32 %v1951, %v1965
  %v2028 = vadd.f32 %v1952, %v1961
  %v2029 = vadd.f32 %v1953, %v1965
  %v2030 = vadd.f32 %v1954, %v1961
  %v2031 = vadd.f32 %v1955, %v1965
  %v2032 = vxor.u32 %v1969, 2147483648
  %v2033 = vxor.u32 %v1971, 2147483648
  %v2034 = vxor.u32 %v1973, 2147483648
  %v2035 = vxor.u32 %v1975, 2147483648
  %v2036 = vxor.u32 %v1977, 2147483648
  %v2037 = vxor.u32 %v1979, 2147483648
  %v2038 = vxor.u32 %v1981, 2147483648
  %v2039 = vxor.u32 %v1983, 2147483648
  %v2040 = vxor.u32 %v1985, 2147483648
  %v2041 = vxor.u32 %v1987, 2147483648
  %v2042 = vxor.u32 %v1989, 2147483648
  %v2043 = vxor.u32 %v1991, 2147483648
  %v2044 = vxor.u32 %v1993, 2147483648
  %v2045 = vxor.u32 %v1995, 2147483648
  %v2046 = vxor.u32 %v1997, 2147483648
  %v2047 = vxor.u32 %v1999, 2147483648
  %v2048 = vxor.u32 %v2001, 2147483648
  %v2049 = vxor.u32 %v2003, 2147483648
  %v2050 = vxor.u32 %v2005, 2147483648
  %v2051 = vxor.u32 %v2007, 2147483648
  %v2052 = vxor.u32 %v2009, 2147483648
  %v2053 = vxor.u32 %v2011, 2147483648
  %v2054 = vxor.u32 %v2013, 2147483648
  %v2055 = vxor.u32 %v2015, 2147483648
  %v2056 = vxor.u32 %v2017, 2147483648
  %v2057 = vxor.u32 %v2019, 2147483648
  %v2058 = vxor.u32 %v2021, 2147483648
  %v2059 = vxor.u32 %v2023, 2147483648
  %v2060 = vxor.u32 %v2025, 2147483648
  %v2061 = vxor.u32 %v2027, 2147483648
  %v2062 = vxor.u32 %v2029, 2147483648
  %v2063 = vxor.u32 %v2031, 2147483648
  %v2064 = vmul.f32 %v2032, 1.442695
  %v2065 = vpow.pop %v2064
  %v2066 = vmul.f32 %v2033, 1.442695
  %v2067 = vpow.pop %v2066
  %v2068 = vmul.f32 %v2034, 1.442695
  %v2069 = vpow.pop %v2068
  %v2070 = vmul.f32 %v2035, 1.442695
  %v2071 = vpow.pop %v2070
  %v2072 = vmul.f32 %v2036, 1.442695
  %v2073 = vpow.pop %v2072
  %v2074 = vmul.f32 %v2037, 1.442695
  %v2075 = vpow.pop %v2074
  %v2076 = vmul.f32 %v2038, 1.442695
  %v2077 = vpow.pop %v2076
  %v2078 = vmul.f32 %v2039, 1.442695
  %v2079 = vpow.pop %v2078
  %v2080 = vmul.f32 %v2040, 1.442695
  %v2081 = vpow.pop %v2080
  %v2082 = vmul.f32 %v2041, 1.442695
  %v2083 = vpow.pop %v2082
  %v2084 = vmul.f32 %v2042, 1.442695
  %v2085 = vpow.pop %v2084
  %v2086 = vmul.f32 %v2043, 1.442695
  %v2087 = vpow.pop %v2086
  %v2088 = vmul.f32 %v2044, 1.442695
  %v2089 = vpow.pop %v2088
  %v2090 = vmul.f32 %v2045, 1.442695
  %v2091 = vpow.pop %v2090
  %v2092 = vmul.f32 %v2046, 1.442695
  %v2093 = vpow.pop %v2092
  %v2094 = vmul.f32 %v2047, 1.442695
  %v2095 = vpow.pop %v2094
  %v2096 = vmul.f32 %v2048, 1.442695
  %v2097 = vpow.pop %v2096
  %v2098 = vmul.f32 %v2049, 1.442695
  %v2099 = vpow.pop %v2098
  %v2100 = vmul.f32 %v2050, 1.442695
  %v2101 = vpow.pop %v2100
  %v2102 = vmul.f32 %v2051, 1.442695
  %v2103 = vpow.pop %v2102
  %v2104 = vmul.f32 %v2052, 1.442695
  %v2105 = vpow.pop %v2104
  %v2106 = vmul.f32 %v2053, 1.442695
  %v2107 = vpow.pop %v2106
  %v2108 = vmul.f32 %v2054, 1.442695
  %v2109 = vpow.pop %v2108
  %v2110 = vmul.f32 %v2055, 1.442695
  %v2111 = vpow.pop %v2110
  %v2112 = vmul.f32 %v2056, 1.442695
  %v2113 = vpow.pop %v2112
  %v2114 = vmul.f32 %v2057, 1.442695
  %v2115 = vpow.pop %v2114
  %v2116 = vmul.f32 %v2058, 1.442695
  %v2117 = vpow.pop %v2116
  %v2118 = vmul.f32 %v2059, 1.442695
  %v2119 = vpow.pop %v2118
  %v2120 = vmul.f32 %v2060, 1.442695
  %v2121 = vpow.pop %v2120
  %v2122 = vmul.f32 %v2061, 1.442695
  %v2123 = vpow.pop %v2122
  %v2124 = vmul.f32 %v2062, 1.442695
  %v2125 = vpow.pop %v2124
  %v2126 = vmul.f32 %v2063, 1.442695
  %v2127 = vpow.pop %v2126
  %v2128 = vadd.f32 %v2065, 1.0
  %v2129 = vadd.f32 %v2067, 1.0
  %v2130 = vadd.f32 %v2069, 1.0
  %v2131 = vadd.f32 %v2071, 1.0
  %v2132 = vadd.f32 %v2073, 1.0
  %v2133 = vadd.f32 %v2075, 1.0
  %v2134 = vadd.f32 %v2077, 1.0
  %v2135 = vadd.f32 %v2079, 1.0
  %v2136 = vadd.f32 %v2081, 1.0
  %v2137 = vadd.f32 %v2083, 1.0
  %v2138 = vadd.f32 %v2085, 1.0
  %v2139 = vadd.f32 %v2087, 1.0
  %v2140 = vadd.f32 %v2089, 1.0
  %v2141 = vadd.f32 %v2091, 1.0
  %v2142 = vadd.f32 %v2093, 1.0
  %v2143 = vadd.f32 %v2095, 1.0
  %v2144 = vadd.f32 %v2097, 1.0
  %v2145 = vadd.f32 %v2099, 1.0
  %v2146 = vadd.f32 %v2101, 1.0
  %v2147 = vadd.f32 %v2103, 1.0
  %v2148 = vadd.f32 %v2105, 1.0
  %v2149 = vadd.f32 %v2107, 1.0
  %v2150 = vadd.f32 %v2109, 1.0
  %v2151 = vadd.f32 %v2111, 1.0
  %v2152 = vadd.f32 %v2113, 1.0
  %v2153 = vadd.f32 %v2115, 1.0
  %v2154 = vadd.f32 %v2117, 1.0
  %v2155 = vadd.f32 %v2119, 1.0
  %v2156 = vadd.f32 %v2121, 1.0
  %v2157 = vadd.f32 %v2123, 1.0
  %v2158 = vadd.f32 %v2125, 1.0
  %v2159 = vadd.f32 %v2127, 1.0
  %v2160 = vrcp.pop %v2128
  %v2161 = vmul.f32 1.0, %v2160
  %v2162 = vrcp.pop %v2129
  %v2163 = vmul.f32 1.0, %v2162
  %v2164 = vrcp.pop %v2130
  %v2165 = vmul.f32 1.0, %v2164
  %v2166 = vrcp.pop %v2131
  %v2167 = vmul.f32 1.0, %v2166
  %v2168 = vrcp.pop %v2132
  %v2169 = vmul.f32 1.0, %v2168
  %v2170 = vrcp.pop %v2133
  %v2171 = vmul.f32 1.0, %v2170
  %v2172 = vrcp.pop %v2134
  %v2173 = vmul.f32 1.0, %v2172
  %v2174 = vrcp.pop %v2135
  %v2175 = vmul.f32 1.0, %v2174
  %v2176 = vrcp.pop %v2136
  %v2177 = vmul.f32 1.0, %v2176
  %v2178 = vrcp.pop %v2137
  %v2179 = vmul.f32 1.0, %v2178
  %v2180 = vrcp.pop %v2138
  %v2181 = vmul.f32 1.0, %v2180
  %v2182 = vrcp.pop %v2139
  %v2183 = vmul.f32 1.0, %v2182
  %v2184 = vrcp.pop %v2140
  %v2185 = vmul.f32 1.0, %v2184
  %v2186 = vrcp.pop %v2141
  %v2187 = vmul.f32 1.0, %v2186
  %v2188 = vrcp.pop %v2142
  %v2189 = vmul.f32 1.0, %v2188
  %v2190 = vrcp.pop %v2143
  %v2191 = vmul.f32 1.0, %v2190
  %v2192 = vrcp.pop %v2144
  %v2193 = vmul.f32 1.0, %v2192
  %v2194 = vrcp.pop %v2145
  %v2195 = vmul.f32 1.0, %v2194
  %v2196 = vrcp.pop %v2146
  %v2197 = vmul.f32 1.0, %v2196
  %v2198 = vrcp.pop %v2147
  %v2199 = vmul.f32 1.0, %v2198
  %v2200 = vrcp.pop %v2148
  %v2201 = vmul.f32 1.0, %v2200
  %v2202 = vrcp.pop %v2149
  %v2203 = vmul.f32 1.0, %v2202
  %v2204 = vrcp.pop %v2150
  %v2205 = vmul.f32 1.0, %v2204
  %v2206 = vrcp.pop %v2151
  %v2207 = vmul.f32 1.0, %v2206
  %v2208 = vrcp.pop %v2152
  %v2209 = vmul.f32 1.0, %v2208
  %v2210 = vrcp.pop %v2153
  %v2211 = vmul.f32 1.0, %v2210
  %v2212 = vrcp.pop %v2154
  %v2213 = vmul.f32 1.0, %v2212
  %v2214 = vrcp.pop %v2155
  %v2215 = vmul.f32 1.0, %v2214
  %v2216 = vrcp.pop %v2156
  %v2217 = vmul.f32 1.0, %v2216
  %v2218 = vrcp.pop %v2157
  %v2219 = vmul.f32 1.0, %v2218
  %v2220 = vrcp.pop %v2158
  %v2221 = vmul.f32 1.0, %v2220
  %v2222 = vrcp.pop %v2159
  %v2223 = vmul.f32 1.0, %v2222
  %v2224 = vmul.f32 %v1968, %v2161
  %v2225 = vmul.f32 %v1970, %v2163
  %v2226 = vmul.f32 %v1972, %v2165
  %v2227 = vmul.f32 %v1974, %v2167
  %v2228 = vmul.f32 %v1976, %v2169
  %v2229 = vmul.f32 %v1978, %v2171
  %v2230 = vmul.f32 %v1980, %v2173
  %v2231 = vmul.f32 %v1982, %v2175
  %v2232 = vmul.f32 %v1984, %v2177
  %v2233 = vmul.f32 %v1986, %v2179
  %v2234 = vmul.f32 %v1988, %v2181
  %v2235 = vmul.f32 %v1990, %v2183
  %v2236 = vmul.f32 %v1992, %v2185
  %v2237 = vmul.f32 %v1994, %v2187
  %v2238 = vmul.f32 %v1996, %v2189
  %v2239 = vmul.f32 %v1998, %v2191
  %v2240 = vmul.f32 %v2000, %v2193
  %v2241 = vmul.f32 %v2002, %v2195
  %v2242 = vmul.f32 %v2004, %v2197
  %v2243 = vmul.f32 %v2006, %v2199
  %v2244 = vmul.f32 %v2008, %v2201
  %v2245 = vmul.f32 %v2010, %v2203
  %v2246 = vmul.f32 %v2012, %v2205
  %v2247 = vmul.f32 %v2014, %v2207
  %v2248 = vmul.f32 %v2016, %v2209
  %v2249 = vmul.f32 %v2018, %v2211
  %v2250 = vmul.f32 %v2020, %v2213
  %v2251 = vmul.f32 %v2022, %v2215
  %v2252 = vmul.f32 %v2024, %v2217
  %v2253 = vmul.f32 %v2026, %v2219
  %v2254 = vmul.f32 %v2028, %v2221
  %v2255 = vmul.f32 %v2030, %v2223
  %v2256 = vadd.f32 %v2224, %v410
  %v2257 = vadd.f32 %v2225, %v411
  %v2258 = vadd.f32 %v2226, %v412
  %v2259 = vadd.f32 %v2227, %v413
  %v2260 = vadd.f32 %v2228, %v414
  %v2261 = vadd.f32 %v2229, %v415
  %v2262 = vadd.f32 %v2230, %v416
  %v2263 = vadd.f32 %v2231, %v417
  %v2264 = vadd.f32 %v2232, %v418
  %v2265 = vadd.f32 %v2233, %v419
  %v2266 = vadd.f32 %v2234, %v420
  %v2267 = vadd.f32 %v2235, %v421
  %v2268 = vadd.f32 %v2236, %v422
  %v2269 = vadd.f32 %v2237, %v423
  %v2270 = vadd.f32 %v2238, %v424
  %v2271 = vadd.f32 %v2239, %v425
  %v2272 = vadd.f32 %v2240, %v426
  %v2273 = vadd.f32 %v2241, %v427
  %v2274 = vadd.f32 %v2242, %v428
  %v2275 = vadd.f32 %v2243, %v429
  %v2276 = vadd.f32 %v2244, %v430
  %v2277 = vadd.f32 %v2245, %v431
  %v2278 = vadd.f32 %v2246, %v432
  %v2279 = vadd.f32 %v2247, %v433
  %v2280 = vadd.f32 %v2248, %v434
  %v2281 = vadd.f32 %v2249, %v435
  %v2282 = vadd.f32 %v2250, %v436
  %v2283 = vadd.f32 %v2251, %v437
  %v2284 = vadd.f32 %v2252, %v438
  %v2285 = vadd.f32 %v2253, %v439
  %v2286 = vadd.f32 %v2254, %v440
  %v2287 = vadd.f32 %v2255, %v441
  %v2288 = vmul.f32 %v2256, 0.70710677
  %v2289 = vmul.f32 %v2257, 0.70710677
  %v2290 = vmul.f32 %v2258, 0.70710677
  %v2291 = vmul.f32 %v2259, 0.70710677
  %v2292 = vmul.f32 %v2260, 0.70710677
  %v2293 = vmul.f32 %v2261, 0.70710677
  %v2294 = vmul.f32 %v2262, 0.70710677
  %v2295 = vmul.f32 %v2263, 0.70710677
  %v2296 = vmul.f32 %v2264, 0.70710677
  %v2297 = vmul.f32 %v2265, 0.70710677
  %v2298 = vmul.f32 %v2266, 0.70710677
  %v2299 = vmul.f32 %v2267, 0.70710677
  %v2300 = vmul.f32 %v2268, 0.70710677
  %v2301 = vmul.f32 %v2269, 0.70710677
  %v2302 = vmul.f32 %v2270, 0.70710677
  %v2303 = vmul.f32 %v2271, 0.70710677
  %v2304 = vmul.f32 %v2272, 0.70710677
  %v2305 = vmul.f32 %v2273, 0.70710677
  %v2306 = vmul.f32 %v2274, 0.70710677
  %v2307 = vmul.f32 %v2275, 0.70710677
  %v2308 = vmul.f32 %v2276, 0.70710677
  %v2309 = vmul.f32 %v2277, 0.70710677
  %v2310 = vmul.f32 %v2278, 0.70710677
  %v2311 = vmul.f32 %v2279, 0.70710677
  %v2312 = vmul.f32 %v2280, 0.70710677
  %v2313 = vmul.f32 %v2281, 0.70710677
  %v2314 = vmul.f32 %v2282, 0.70710677
  %v2315 = vmul.f32 %v2283, 0.70710677
  %v2316 = vmul.f32 %v2284, 0.70710677
  %v2317 = vmul.f32 %v2285, 0.70710677
  %v2318 = vmul.f32 %v2286, 0.70710677
  %v2319 = vmul.f32 %v2287, 0.70710677
  %v2320 = vrot.slane %v2288, 7
  %v2321 = vrot.slane %v2289, 7
  %v2322 = vrot.slane %v2290, 7
  %v2323 = vrot.slane %v2291, 7
  %v2324 = vrot.slane %v2292, 7
  %v2325 = vrot.slane %v2293, 7
  %v2326 = vrot.slane %v2294, 7
  %v2327 = vrot.slane %v2295, 7
  %v2328 = vrot.slane %v2296, 7
  %v2329 = vrot.slane %v2297, 7
  %v2330 = vrot.slane %v2298, 7
  %v2331 = vrot.slane %v2299, 7
  %v2332 = vrot.slane %v2300, 7
  %v2333 = vrot.slane %v2301, 7
  %v2334 = vrot.slane %v2302, 7
  %v2335 = vrot.slane %v2303, 7
  %v2336 = vrot.slane %v2304, 7
  %v2337 = vrot.slane %v2305, 7
  %v2338 = vrot.slane %v2306, 7
  %v2339 = vrot.slane %v2307, 7
  %v2340 = vrot.slane %v2308, 7
  %v2341 = vrot.slane %v2309, 7
  %v2342 = vrot.slane %v2310, 7
  %v2343 = vrot.slane %v2311, 7
  %v2344 = vrot.slane %v2312, 7
  %v2345 = vrot.slane %v2313, 7
  %v2346 = vrot.slane %v2314, 7
  %v2347 = vrot.slane %v2315, 7
  %v2348 = vrot.slane %v2316, 7
  %v2349 = vrot.slane %v2317, 7
  %v2350 = vrot.slane %v2318, 7
  %v2351 = vrot.slane %v2319, 7
  %v2352 = vsel %vm476, %v2350, %v2351
  %v2353 = vsel %vm476, %v2349, %v2350
  %v2354 = vsel %vm476, %v2348, %v2349
  %v2355 = vsel %vm476, %v2347, %v2348
  %v2356 = vsel %vm476, %v2346, %v2347
  %v2357 = vsel %vm476, %v2345, %v2346
  %v2358 = vsel %vm476, %v2344, %v2345
  %v2359 = vsel %vm476, %v2343, %v2344
  %v2360 = vsel %vm476, %v2342, %v2343
  %v2361 = vsel %vm476, %v2341, %v2342
  %v2362 = vsel %vm476, %v2340, %v2341
  %v2363 = vsel %vm476, %v2339, %v2340
  %v2364 = vsel %vm476, %v2338, %v2339
  %v2365 = vsel %vm476, %v2337, %v2338
  %v2366 = vsel %vm476, %v2336, %v2337
  %v2367 = vsel %vm476, %v2335, %v2336
  %v2368 = vsel %vm476, %v2334, %v2335
  %v2369 = vsel %vm476, %v2333, %v2334
  %v2370 = vsel %vm476, %v2332, %v2333
  %v2371 = vsel %vm476, %v2331, %v2332
  %v2372 = vsel %vm476, %v2330, %v2331
  %v2373 = vsel %vm476, %v2329, %v2330
  %v2374 = vsel %vm476, %v2328, %v2329
  %v2375 = vsel %vm476, %v2327, %v2328
  %v2376 = vsel %vm476, %v2326, %v2327
  %v2377 = vsel %vm476, %v2325, %v2326
  %v2378 = vsel %vm476, %v2324, %v2325
  %v2379 = vsel %vm476, %v2323, %v2324
  %v2380 = vsel %vm476, %v2322, %v2323
  %v2381 = vsel %vm476, %v2321, %v2322
  %v2382 = vsel %vm476, %v2320, %v2321
  %v2383 = vsel %vm476, %v2351, %v2320
  %v2384 = vmul.f32 %v2383, %v544
  %v2385 = vmul.f32 %v2382, %v549
  %v2386 = vmul.f32 %v2381, %v554
  %v2387 = vmul.f32 %v2380, %v559
  %v2388 = vmul.f32 %v2379, %v564
  %v2389 = vmul.f32 %v2378, %v569
  %v2390 = vmul.f32 %v2377, %v574
  %v2391 = vmul.f32 %v2376, %v579
  %v2392 = vmul.f32 %v2375, %v584
  %v2393 = vmul.f32 %v2374, %v589
  %v2394 = vmul.f32 %v2373, %v594
  %v2395 = vmul.f32 %v2372, %v599
  %v2396 = vmul.f32 %v2371, %v604
  %v2397 = vmul.f32 %v2370, %v609
  %v2398 = vmul.f32 %v2369, %v614
  %v2399 = vmul.f32 %v2368, %v619
  %v2400 = vmul.f32 %v2367, %v624
  %v2401 = vmul.f32 %v2366, %v629
  %v2402 = vmul.f32 %v2365, %v634
  %v2403 = vmul.f32 %v2364, %v639
  %v2404 = vmul.f32 %v2363, %v644
  %v2405 = vmul.f32 %v2362, %v649
  %v2406 = vmul.f32 %v2361, %v654
  %v2407 = vmul.f32 %v2360, %v659
  %v2408 = vmul.f32 %v2359, %v664
  %v2409 = vmul.f32 %v2358, %v669
  %v2410 = vmul.f32 %v2357, %v674
  %v2411 = vmul.f32 %v2356, %v679
  %v2412 = vmul.f32 %v2355, %v684
  %v2413 = vmul.f32 %v2354, %v689
  %v2414 = vmul.f32 %v2353, %v694
  %v2415 = vmul.f32 %v2352, %v699
  %s2416 = scalar_lea.vmem %s5, 768
  %v2417 = vld [vmem:[%s2416] sm:$0xff]
  %v2418 = vld [vmem:[%s2416 + $0x8] sm:$0xff]
  %v2419 = vld [vmem:[%s2416 + $0x10] sm:$0xff]
  %v2420 = vld [vmem:[%s2416 + $0x18] sm:$0xff]
  %v2421 = vld [vmem:[%s2416 + $0x20] sm:$0xff]
  %v2422 = vld [vmem:[%s2416 + $0x28] sm:$0xff]
  %v2423 = vld [vmem:[%s2416 + $0x30] sm:$0xff]
  %v2424 = vld [vmem:[%s2416 + $0x38] sm:$0xff]
  %v2425 = vld [vmem:[%s2416 + $0x40] sm:$0xff]
  %v2426 = vld [vmem:[%s2416 + $0x48] sm:$0xff]
  %v2427 = vld [vmem:[%s2416 + $0x50] sm:$0xff]
  %v2428 = vld [vmem:[%s2416 + $0x58] sm:$0xff]
  %v2429 = vld [vmem:[%s2416 + $0x60] sm:$0xff]
  %v2430 = vld [vmem:[%s2416 + $0x68] sm:$0xff]
  %v2431 = vld [vmem:[%s2416 + $0x70] sm:$0xff]
  %v2432 = vld [vmem:[%s2416 + $0x78] sm:$0xff]
  %v2433 = vld [vmem:[%s2416 + $0x80] sm:$0xff]
  %v2434 = vld [vmem:[%s2416 + $0x88] sm:$0xff]
  %v2435 = vld [vmem:[%s2416 + $0x90] sm:$0xff]
  %v2436 = vld [vmem:[%s2416 + $0x98] sm:$0xff]
  %v2437 = vld [vmem:[%s2416 + $0xa0] sm:$0xff]
  %v2438 = vld [vmem:[%s2416 + $0xa8] sm:$0xff]
  %v2439 = vld [vmem:[%s2416 + $0xb0] sm:$0xff]
  %v2440 = vld [vmem:[%s2416 + $0xb8] sm:$0xff]
  %v2441 = vld [vmem:[%s2416 + $0xc0] sm:$0xff]
  %v2442 = vld [vmem:[%s2416 + $0xc8] sm:$0xff]
  %v2443 = vld [vmem:[%s2416 + $0xd0] sm:$0xff]
  %v2444 = vld [vmem:[%s2416 + $0xd8] sm:$0xff]
  %v2445 = vld [vmem:[%s2416 + $0xe0] sm:$0xff]
  %v2446 = vld [vmem:[%s2416 + $0xe8] sm:$0xff]
  %v2447 = vld [vmem:[%s2416 + $0xf0] sm:$0xff]
  %v2448 = vld [vmem:[%s2416 + $0xf8] sm:$0xff]
  %s2449 = scalar_lea.vmem %s5, 1024
  %v2450 = vld [vmem:[%s2449] sm:$0xff]
  %v2451 = vld [vmem:[%s2449 + $0x8] sm:$0xff]
  %v2452 = vld [vmem:[%s2449 + $0x10] sm:$0xff]
  %v2453 = vld [vmem:[%s2449 + $0x18] sm:$0xff]
  %v2454 = vld [vmem:[%s2449 + $0x20] sm:$0xff]
  %v2455 = vld [vmem:[%s2449 + $0x28] sm:$0xff]
  %v2456 = vld [vmem:[%s2449 + $0x30] sm:$0xff]
  %v2457 = vld [vmem:[%s2449 + $0x38] sm:$0xff]
  %v2458 = vld [vmem:[%s2449 + $0x40] sm:$0xff]
  %v2459 = vld [vmem:[%s2449 + $0x48] sm:$0xff]
  %v2460 = vld [vmem:[%s2449 + $0x50] sm:$0xff]
  %v2461 = vld [vmem:[%s2449 + $0x58] sm:$0xff]
  %v2462 = vld [vmem:[%s2449 + $0x60] sm:$0xff]
  %v2463 = vld [vmem:[%s2449 + $0x68] sm:$0xff]
  %v2464 = vld [vmem:[%s2449 + $0x70] sm:$0xff]
  %v2465 = vld [vmem:[%s2449 + $0x78] sm:$0xff]
  %v2466 = vld [vmem:[%s2449 + $0x80] sm:$0xff]
  %v2467 = vld [vmem:[%s2449 + $0x88] sm:$0xff]
  %v2468 = vld [vmem:[%s2449 + $0x90] sm:$0xff]
  %v2469 = vld [vmem:[%s2449 + $0x98] sm:$0xff]
  %v2470 = vld [vmem:[%s2449 + $0xa0] sm:$0xff]
  %v2471 = vld [vmem:[%s2449 + $0xa8] sm:$0xff]
  %v2472 = vld [vmem:[%s2449 + $0xb0] sm:$0xff]
  %v2473 = vld [vmem:[%s2449 + $0xb8] sm:$0xff]
  %v2474 = vld [vmem:[%s2449 + $0xc0] sm:$0xff]
  %v2475 = vld [vmem:[%s2449 + $0xc8] sm:$0xff]
  %v2476 = vld [vmem:[%s2449 + $0xd0] sm:$0xff]
  %v2477 = vld [vmem:[%s2449 + $0xd8] sm:$0xff]
  %v2478 = vld [vmem:[%s2449 + $0xe0] sm:$0xff]
  %v2479 = vld [vmem:[%s2449 + $0xe8] sm:$0xff]
  %v2480 = vld [vmem:[%s2449 + $0xf0] sm:$0xff]
  %v2481 = vld [vmem:[%s2449 + $0xf8] sm:$0xff]
  %2482 = vmatprep.subr.mxu0 %v2481
  %2483 = vmatpush1.msra.mxu0 %v2480
  %2484 = vmatprep.subr.mxu0 %v2479
  %2485 = vmatpush1.msra.mxu0 %v2478
  %2486 = vmatprep.subr.mxu0 %v2477
  %2487 = vmatpush1.msra.mxu0 %v2476
  %2488 = vmatprep.subr.mxu0 %v2475
  %2489 = vmatpush1.msra.mxu0 %v2474
  %2490 = vmatprep.subr.mxu0 %v2473
  %2491 = vmatpush1.msra.mxu0 %v2472
  %2492 = vmatprep.subr.mxu0 %v2471
  %2493 = vmatpush1.msra.mxu0 %v2470
  %2494 = vmatprep.subr.mxu0 %v2469
  %2495 = vmatpush1.msra.mxu0 %v2468
  %2496 = vmatprep.subr.mxu0 %v2467
  %2497 = vmatpush1.msra.mxu0 %v2466
  %2498 = vmatprep.subr.mxu0 %v2465
  %2499 = vmatpush1.msra.mxu0 %v2464
  %2500 = vmatprep.subr.mxu0 %v2463
  %2501 = vmatpush1.msra.mxu0 %v2462
  %2502 = vmatprep.subr.mxu0 %v2461
  %2503 = vmatpush1.msra.mxu0 %v2460
  %2504 = vmatprep.subr.mxu0 %v2459
  %2505 = vmatpush1.msra.mxu0 %v2458
  %2506 = vmatprep.subr.mxu0 %v2457
  %2507 = vmatpush1.msra.mxu0 %v2456
  %2508 = vmatprep.subr.mxu0 %v2455
  %2509 = vmatpush1.msra.mxu0 %v2454
  %2510 = vmatprep.subr.mxu0 %v2453
  %2511 = vmatpush1.msra.mxu0 %v2452
  %2512 = vmatprep.subr.mxu0 %v2451
  %2513 = vmatpush1.msra.mxu0 %v2450
  %2514 = vmatprep.subr.mxu0 0.0
  %2515 = vmatpush2.msra.mxu0 0.0
  %2516 = vmatprep.subr.mxu0 0.0
  %2517 = vmatpush2.msra.mxu0 0.0
  %2518 = vmatprep.subr.mxu0 0.0
  %2519 = vmatpush2.msra.mxu0 0.0
  %2520 = vmatprep.subr.mxu0 0.0
  %2521 = vmatpush2.msra.mxu0 0.0
  %2522 = vmatprep.subr.mxu0 0.0
  %2523 = vmatpush2.msra.mxu0 0.0
  %2524 = vmatprep.subr.mxu0 0.0
  %2525 = vmatpush2.msra.mxu0 0.0
  %2526 = vmatprep.subr.mxu0 0.0
  %2527 = vmatpush2.msra.mxu0 0.0
  %2528 = vmatprep.subr.mxu0 0.0
  %2529 = vmatpush2.msra.mxu0 0.0
  %2530 = vmatprep.subr.mxu0 0.0
  %2531 = vmatpush2.msra.mxu0 0.0
  %2532 = vmatprep.subr.mxu0 0.0
  %2533 = vmatpush2.msra.mxu0 0.0
  %2534 = vmatprep.subr.mxu0 0.0
  %2535 = vmatpush2.msra.mxu0 0.0
  %2536 = vmatprep.subr.mxu0 0.0
  %2537 = vmatpush2.msra.mxu0 0.0
  %2538 = vmatprep.subr.mxu0 0.0
  %2539 = vmatpush2.msra.mxu0 0.0
  %2540 = vmatprep.subr.mxu0 0.0
  %2541 = vmatpush2.msra.mxu0 0.0
  %2542 = vmatprep.subr.mxu0 0.0
  %2543 = vmatpush2.msra.mxu0 0.0
  %2544 = vmatprep.subr.mxu0 0.0
  %2545 = vmatpush2.msra.mxu0 0.0
  %2546 = vmatprep.mubr.f32.mxu0 0.0
  %2547 = vmatmul.mubr.f32.gmra.mxu0 %v2288
  %v2548 = vpop.f32.mrf.mxu0
  %v2549 = vadd.f32 0.0, %v2548
  %v2550 = vpop.f32.mrf.mxu0
  %v2551 = vadd.f32 0.0, %v2550
  %2552 = vmatprep.mubr.f32.mxu0 0.0
  %2553 = vmatmul.mubr.f32.gmra.mxu0 %v2289
  %v2554 = vpop.f32.mrf.mxu0
  %v2555 = vadd.f32 0.0, %v2554
  %v2556 = vpop.f32.mrf.mxu0
  %v2557 = vadd.f32 0.0, %v2556
  %2558 = vmatprep.mubr.f32.mxu0 0.0
  %2559 = vmatmul.mubr.f32.gmra.mxu0 %v2290
  %v2560 = vpop.f32.mrf.mxu0
  %v2561 = vadd.f32 0.0, %v2560
  %v2562 = vpop.f32.mrf.mxu0
  %v2563 = vadd.f32 0.0, %v2562
  %2564 = vmatprep.mubr.f32.mxu0 0.0
  %2565 = vmatmul.mubr.f32.gmra.mxu0 %v2291
  %v2566 = vpop.f32.mrf.mxu0
  %v2567 = vadd.f32 0.0, %v2566
  %v2568 = vpop.f32.mrf.mxu0
  %v2569 = vadd.f32 0.0, %v2568
  %2570 = vmatprep.mubr.f32.mxu0 0.0
  %2571 = vmatmul.mubr.f32.gmra.mxu0 %v2292
  %v2572 = vpop.f32.mrf.mxu0
  %v2573 = vadd.f32 0.0, %v2572
  %v2574 = vpop.f32.mrf.mxu0
  %v2575 = vadd.f32 0.0, %v2574
  %2576 = vmatprep.mubr.f32.mxu0 0.0
  %2577 = vmatmul.mubr.f32.gmra.mxu0 %v2293
  %v2578 = vpop.f32.mrf.mxu0
  %v2579 = vadd.f32 0.0, %v2578
  %v2580 = vpop.f32.mrf.mxu0
  %v2581 = vadd.f32 0.0, %v2580
  %2582 = vmatprep.mubr.f32.mxu0 0.0
  %2583 = vmatmul.mubr.f32.gmra.mxu0 %v2294
  %v2584 = vpop.f32.mrf.mxu0
  %v2585 = vadd.f32 0.0, %v2584
  %v2586 = vpop.f32.mrf.mxu0
  %v2587 = vadd.f32 0.0, %v2586
  %2588 = vmatprep.mubr.f32.mxu0 0.0
  %2589 = vmatmul.mubr.f32.gmra.mxu0 %v2295
  %v2590 = vpop.f32.mrf.mxu0
  %v2591 = vadd.f32 0.0, %v2590
  %v2592 = vpop.f32.mrf.mxu0
  %v2593 = vadd.f32 0.0, %v2592
  %2594 = vmatprep.mubr.f32.mxu0 0.0
  %2595 = vmatmul.mubr.f32.gmra.mxu0 %v2296
  %v2596 = vpop.f32.mrf.mxu0
  %v2597 = vadd.f32 0.0, %v2596
  %v2598 = vpop.f32.mrf.mxu0
  %v2599 = vadd.f32 0.0, %v2598
  %2600 = vmatprep.mubr.f32.mxu0 0.0
  %2601 = vmatmul.mubr.f32.gmra.mxu0 %v2297
  %v2602 = vpop.f32.mrf.mxu0
  %v2603 = vadd.f32 0.0, %v2602
  %v2604 = vpop.f32.mrf.mxu0
  %v2605 = vadd.f32 0.0, %v2604
  %2606 = vmatprep.mubr.f32.mxu0 0.0
  %2607 = vmatmul.mubr.f32.gmra.mxu0 %v2298
  %v2608 = vpop.f32.mrf.mxu0
  %v2609 = vadd.f32 0.0, %v2608
  %v2610 = vpop.f32.mrf.mxu0
  %v2611 = vadd.f32 0.0, %v2610
  %2612 = vmatprep.mubr.f32.mxu0 0.0
  %2613 = vmatmul.mubr.f32.gmra.mxu0 %v2299
  %v2614 = vpop.f32.mrf.mxu0
  %v2615 = vadd.f32 0.0, %v2614
  %v2616 = vpop.f32.mrf.mxu0
  %v2617 = vadd.f32 0.0, %v2616
  %2618 = vmatprep.mubr.f32.mxu0 0.0
  %2619 = vmatmul.mubr.f32.gmra.mxu0 %v2300
  %v2620 = vpop.f32.mrf.mxu0
  %v2621 = vadd.f32 0.0, %v2620
  %v2622 = vpop.f32.mrf.mxu0
  %v2623 = vadd.f32 0.0, %v2622
  %2624 = vmatprep.mubr.f32.mxu0 0.0
  %2625 = vmatmul.mubr.f32.gmra.mxu0 %v2301
  %v2626 = vpop.f32.mrf.mxu0
  %v2627 = vadd.f32 0.0, %v2626
  %v2628 = vpop.f32.mrf.mxu0
  %v2629 = vadd.f32 0.0, %v2628
  %2630 = vmatprep.mubr.f32.mxu0 0.0
  %2631 = vmatmul.mubr.f32.gmra.mxu0 %v2302
  %v2632 = vpop.f32.mrf.mxu0
  %v2633 = vadd.f32 0.0, %v2632
  %v2634 = vpop.f32.mrf.mxu0
  %v2635 = vadd.f32 0.0, %v2634
  %2636 = vmatprep.mubr.f32.mxu0 0.0
  %2637 = vmatmul.mubr.f32.gmra.mxu0 %v2303
  %v2638 = vpop.f32.mrf.mxu0
  %v2639 = vadd.f32 0.0, %v2638
  %v2640 = vpop.f32.mrf.mxu0
  %v2641 = vadd.f32 0.0, %v2640
  %2642 = vmatprep.mubr.f32.mxu0 0.0
  %2643 = vmatmul.mubr.f32.gmra.mxu0 %v2304
  %v2644 = vpop.f32.mrf.mxu0
  %v2645 = vadd.f32 0.0, %v2644
  %v2646 = vpop.f32.mrf.mxu0
  %v2647 = vadd.f32 0.0, %v2646
  %2648 = vmatprep.mubr.f32.mxu0 0.0
  %2649 = vmatmul.mubr.f32.gmra.mxu0 %v2305
  %v2650 = vpop.f32.mrf.mxu0
  %v2651 = vadd.f32 0.0, %v2650
  %v2652 = vpop.f32.mrf.mxu0
  %v2653 = vadd.f32 0.0, %v2652
  %2654 = vmatprep.mubr.f32.mxu0 0.0
  %2655 = vmatmul.mubr.f32.gmra.mxu0 %v2306
  %v2656 = vpop.f32.mrf.mxu0
  %v2657 = vadd.f32 0.0, %v2656
  %v2658 = vpop.f32.mrf.mxu0
  %v2659 = vadd.f32 0.0, %v2658
  %2660 = vmatprep.mubr.f32.mxu0 0.0
  %2661 = vmatmul.mubr.f32.gmra.mxu0 %v2307
  %v2662 = vpop.f32.mrf.mxu0
  %v2663 = vadd.f32 0.0, %v2662
  %v2664 = vpop.f32.mrf.mxu0
  %v2665 = vadd.f32 0.0, %v2664
  %2666 = vmatprep.mubr.f32.mxu0 0.0
  %2667 = vmatmul.mubr.f32.gmra.mxu0 %v2308
  %v2668 = vpop.f32.mrf.mxu0
  %v2669 = vadd.f32 0.0, %v2668
  %v2670 = vpop.f32.mrf.mxu0
  %v2671 = vadd.f32 0.0, %v2670
  %2672 = vmatprep.mubr.f32.mxu0 0.0
  %2673 = vmatmul.mubr.f32.gmra.mxu0 %v2309
  %v2674 = vpop.f32.mrf.mxu0
  %v2675 = vadd.f32 0.0, %v2674
  %v2676 = vpop.f32.mrf.mxu0
  %v2677 = vadd.f32 0.0, %v2676
  %2678 = vmatprep.mubr.f32.mxu0 0.0
  %2679 = vmatmul.mubr.f32.gmra.mxu0 %v2310
  %v2680 = vpop.f32.mrf.mxu0
  %v2681 = vadd.f32 0.0, %v2680
  %v2682 = vpop.f32.mrf.mxu0
  %v2683 = vadd.f32 0.0, %v2682
  %2684 = vmatprep.mubr.f32.mxu0 0.0
  %2685 = vmatmul.mubr.f32.gmra.mxu0 %v2311
  %v2686 = vpop.f32.mrf.mxu0
  %v2687 = vadd.f32 0.0, %v2686
  %v2688 = vpop.f32.mrf.mxu0
  %v2689 = vadd.f32 0.0, %v2688
  %2690 = vmatprep.mubr.f32.mxu0 0.0
  %2691 = vmatmul.mubr.f32.gmra.mxu0 %v2312
  %v2692 = vpop.f32.mrf.mxu0
  %v2693 = vadd.f32 0.0, %v2692
  %v2694 = vpop.f32.mrf.mxu0
  %v2695 = vadd.f32 0.0, %v2694
  %2696 = vmatprep.mubr.f32.mxu0 0.0
  %2697 = vmatmul.mubr.f32.gmra.mxu0 %v2313
  %v2698 = vpop.f32.mrf.mxu0
  %v2699 = vadd.f32 0.0, %v2698
  %v2700 = vpop.f32.mrf.mxu0
  %v2701 = vadd.f32 0.0, %v2700
  %2702 = vmatprep.mubr.f32.mxu0 0.0
  %2703 = vmatmul.mubr.f32.gmra.mxu0 %v2314
  %v2704 = vpop.f32.mrf.mxu0
  %v2705 = vadd.f32 0.0, %v2704
  %v2706 = vpop.f32.mrf.mxu0
  %v2707 = vadd.f32 0.0, %v2706
  %2708 = vmatprep.mubr.f32.mxu0 0.0
  %2709 = vmatmul.mubr.f32.gmra.mxu0 %v2315
  %v2710 = vpop.f32.mrf.mxu0
  %v2711 = vadd.f32 0.0, %v2710
  %v2712 = vpop.f32.mrf.mxu0
  %v2713 = vadd.f32 0.0, %v2712
  %2714 = vmatprep.mubr.f32.mxu0 0.0
  %2715 = vmatmul.mubr.f32.gmra.mxu0 %v2316
  %v2716 = vpop.f32.mrf.mxu0
  %v2717 = vadd.f32 0.0, %v2716
  %v2718 = vpop.f32.mrf.mxu0
  %v2719 = vadd.f32 0.0, %v2718
  %2720 = vmatprep.mubr.f32.mxu0 0.0
  %2721 = vmatmul.mubr.f32.gmra.mxu0 %v2317
  %v2722 = vpop.f32.mrf.mxu0
  %v2723 = vadd.f32 0.0, %v2722
  %v2724 = vpop.f32.mrf.mxu0
  %v2725 = vadd.f32 0.0, %v2724
  %2726 = vmatprep.mubr.f32.mxu0 0.0
  %2727 = vmatmul.mubr.f32.gmra.mxu0 %v2318
  %v2728 = vpop.f32.mrf.mxu0
  %v2729 = vadd.f32 0.0, %v2728
  %v2730 = vpop.f32.mrf.mxu0
  %v2731 = vadd.f32 0.0, %v2730
  %2732 = vmatprep.mubr.f32.mxu0 0.0
  %2733 = vmatmul.mubr.f32.gmra.mxu0 %v2319
  %v2734 = vpop.f32.mrf.mxu0
  %v2735 = vadd.f32 0.0, %v2734
  %v2736 = vpop.f32.mrf.mxu0
  %v2737 = vadd.f32 0.0, %v2736
  %2738 = vdwg.mxu0
  %2739 = vmatprep.subr.mxu0 %v2448
  %2740 = vmatpush1.msra.mxu0 %v2447
  %2741 = vmatprep.subr.mxu0 %v2446
  %2742 = vmatpush1.msra.mxu0 %v2445
  %2743 = vmatprep.subr.mxu0 %v2444
  %2744 = vmatpush1.msra.mxu0 %v2443
  %2745 = vmatprep.subr.mxu0 %v2442
  %2746 = vmatpush1.msra.mxu0 %v2441
  %2747 = vmatprep.subr.mxu0 %v2440
  %2748 = vmatpush1.msra.mxu0 %v2439
  %2749 = vmatprep.subr.mxu0 %v2438
  %2750 = vmatpush1.msra.mxu0 %v2437
  %2751 = vmatprep.subr.mxu0 %v2436
  %2752 = vmatpush1.msra.mxu0 %v2435
  %2753 = vmatprep.subr.mxu0 %v2434
  %2754 = vmatpush1.msra.mxu0 %v2433
  %2755 = vmatprep.subr.mxu0 %v2432
  %2756 = vmatpush1.msra.mxu0 %v2431
  %2757 = vmatprep.subr.mxu0 %v2430
  %2758 = vmatpush1.msra.mxu0 %v2429
  %2759 = vmatprep.subr.mxu0 %v2428
  %2760 = vmatpush1.msra.mxu0 %v2427
  %2761 = vmatprep.subr.mxu0 %v2426
  %2762 = vmatpush1.msra.mxu0 %v2425
  %2763 = vmatprep.subr.mxu0 %v2424
  %2764 = vmatpush1.msra.mxu0 %v2423
  %2765 = vmatprep.subr.mxu0 %v2422
  %2766 = vmatpush1.msra.mxu0 %v2421
  %2767 = vmatprep.subr.mxu0 %v2420
  %2768 = vmatpush1.msra.mxu0 %v2419
  %2769 = vmatprep.subr.mxu0 %v2418
  %2770 = vmatpush1.msra.mxu0 %v2417
  %2771 = vmatprep.subr.mxu0 0.0
  %2772 = vmatpush2.msra.mxu0 0.0
  %2773 = vmatprep.subr.mxu0 0.0
  %2774 = vmatpush2.msra.mxu0 0.0
  %2775 = vmatprep.subr.mxu0 0.0
  %2776 = vmatpush2.msra.mxu0 0.0
  %2777 = vmatprep.subr.mxu0 0.0
  %2778 = vmatpush2.msra.mxu0 0.0
  %2779 = vmatprep.subr.mxu0 0.0
  %2780 = vmatpush2.msra.mxu0 0.0
  %2781 = vmatprep.subr.mxu0 0.0
  %2782 = vmatpush2.msra.mxu0 0.0
  %2783 = vmatprep.subr.mxu0 0.0
  %2784 = vmatpush2.msra.mxu0 0.0
  %2785 = vmatprep.subr.mxu0 0.0
  %2786 = vmatpush2.msra.mxu0 0.0
  %2787 = vmatprep.subr.mxu0 0.0
  %2788 = vmatpush2.msra.mxu0 0.0
  %2789 = vmatprep.subr.mxu0 0.0
  %2790 = vmatpush2.msra.mxu0 0.0
  %2791 = vmatprep.subr.mxu0 0.0
  %2792 = vmatpush2.msra.mxu0 0.0
  %2793 = vmatprep.subr.mxu0 0.0
  %2794 = vmatpush2.msra.mxu0 0.0
  %2795 = vmatprep.subr.mxu0 0.0
  %2796 = vmatpush2.msra.mxu0 0.0
  %2797 = vmatprep.subr.mxu0 0.0
  %2798 = vmatpush2.msra.mxu0 0.0
  %2799 = vmatprep.subr.mxu0 0.0
  %2800 = vmatpush2.msra.mxu0 0.0
  %2801 = vmatprep.subr.mxu0 0.0
  %2802 = vmatpush2.msra.mxu0 0.0
  %2803 = vmatprep.mubr.f32.mxu0 0.0
  %2804 = vmatmul.mubr.f32.gmra.mxu0 %v2384
  %v2805 = vpop.f32.mrf.mxu0
  %v2806 = vadd.f32 %v2549, %v2805
  %v2807 = vpop.f32.mrf.mxu0
  %v2808 = vadd.f32 %v2551, %v2807
  %2809 = vmatprep.mubr.f32.mxu0 0.0
  %2810 = vmatmul.mubr.f32.gmra.mxu0 %v2385
  %v2811 = vpop.f32.mrf.mxu0
  %v2812 = vadd.f32 %v2555, %v2811
  %v2813 = vpop.f32.mrf.mxu0
  %v2814 = vadd.f32 %v2557, %v2813
  %2815 = vmatprep.mubr.f32.mxu0 0.0
  %2816 = vmatmul.mubr.f32.gmra.mxu0 %v2386
  %v2817 = vpop.f32.mrf.mxu0
  %v2818 = vadd.f32 %v2561, %v2817
  %v2819 = vpop.f32.mrf.mxu0
  %v2820 = vadd.f32 %v2563, %v2819
  %2821 = vmatprep.mubr.f32.mxu0 0.0
  %2822 = vmatmul.mubr.f32.gmra.mxu0 %v2387
  %v2823 = vpop.f32.mrf.mxu0
  %v2824 = vadd.f32 %v2567, %v2823
  %v2825 = vpop.f32.mrf.mxu0
  %v2826 = vadd.f32 %v2569, %v2825
  %2827 = vmatprep.mubr.f32.mxu0 0.0
  %2828 = vmatmul.mubr.f32.gmra.mxu0 %v2388
  %v2829 = vpop.f32.mrf.mxu0
  %v2830 = vadd.f32 %v2573, %v2829
  %v2831 = vpop.f32.mrf.mxu0
  %v2832 = vadd.f32 %v2575, %v2831
  %2833 = vmatprep.mubr.f32.mxu0 0.0
  %2834 = vmatmul.mubr.f32.gmra.mxu0 %v2389
  %v2835 = vpop.f32.mrf.mxu0
  %v2836 = vadd.f32 %v2579, %v2835
  %v2837 = vpop.f32.mrf.mxu0
  %v2838 = vadd.f32 %v2581, %v2837
  %2839 = vmatprep.mubr.f32.mxu0 0.0
  %2840 = vmatmul.mubr.f32.gmra.mxu0 %v2390
  %v2841 = vpop.f32.mrf.mxu0
  %v2842 = vadd.f32 %v2585, %v2841
  %v2843 = vpop.f32.mrf.mxu0
  %v2844 = vadd.f32 %v2587, %v2843
  %2845 = vmatprep.mubr.f32.mxu0 0.0
  %2846 = vmatmul.mubr.f32.gmra.mxu0 %v2391
  %v2847 = vpop.f32.mrf.mxu0
  %v2848 = vadd.f32 %v2591, %v2847
  %v2849 = vpop.f32.mrf.mxu0
  %v2850 = vadd.f32 %v2593, %v2849
  %2851 = vmatprep.mubr.f32.mxu0 0.0
  %2852 = vmatmul.mubr.f32.gmra.mxu0 %v2392
  %v2853 = vpop.f32.mrf.mxu0
  %v2854 = vadd.f32 %v2597, %v2853
  %v2855 = vpop.f32.mrf.mxu0
  %v2856 = vadd.f32 %v2599, %v2855
  %2857 = vmatprep.mubr.f32.mxu0 0.0
  %2858 = vmatmul.mubr.f32.gmra.mxu0 %v2393
  %v2859 = vpop.f32.mrf.mxu0
  %v2860 = vadd.f32 %v2603, %v2859
  %v2861 = vpop.f32.mrf.mxu0
  %v2862 = vadd.f32 %v2605, %v2861
  %2863 = vmatprep.mubr.f32.mxu0 0.0
  %2864 = vmatmul.mubr.f32.gmra.mxu0 %v2394
  %v2865 = vpop.f32.mrf.mxu0
  %v2866 = vadd.f32 %v2609, %v2865
  %v2867 = vpop.f32.mrf.mxu0
  %v2868 = vadd.f32 %v2611, %v2867
  %2869 = vmatprep.mubr.f32.mxu0 0.0
  %2870 = vmatmul.mubr.f32.gmra.mxu0 %v2395
  %v2871 = vpop.f32.mrf.mxu0
  %v2872 = vadd.f32 %v2615, %v2871
  %v2873 = vpop.f32.mrf.mxu0
  %v2874 = vadd.f32 %v2617, %v2873
  %2875 = vmatprep.mubr.f32.mxu0 0.0
  %2876 = vmatmul.mubr.f32.gmra.mxu0 %v2396
  %v2877 = vpop.f32.mrf.mxu0
  %v2878 = vadd.f32 %v2621, %v2877
  %v2879 = vpop.f32.mrf.mxu0
  %v2880 = vadd.f32 %v2623, %v2879
  %2881 = vmatprep.mubr.f32.mxu0 0.0
  %2882 = vmatmul.mubr.f32.gmra.mxu0 %v2397
  %v2883 = vpop.f32.mrf.mxu0
  %v2884 = vadd.f32 %v2627, %v2883
  %v2885 = vpop.f32.mrf.mxu0
  %v2886 = vadd.f32 %v2629, %v2885
  %2887 = vmatprep.mubr.f32.mxu0 0.0
  %2888 = vmatmul.mubr.f32.gmra.mxu0 %v2398
  %v2889 = vpop.f32.mrf.mxu0
  %v2890 = vadd.f32 %v2633, %v2889
  %v2891 = vpop.f32.mrf.mxu0
  %v2892 = vadd.f32 %v2635, %v2891
  %2893 = vmatprep.mubr.f32.mxu0 0.0
  %2894 = vmatmul.mubr.f32.gmra.mxu0 %v2399
  %v2895 = vpop.f32.mrf.mxu0
  %v2896 = vadd.f32 %v2639, %v2895
  %v2897 = vpop.f32.mrf.mxu0
  %v2898 = vadd.f32 %v2641, %v2897
  %2899 = vmatprep.mubr.f32.mxu0 0.0
  %2900 = vmatmul.mubr.f32.gmra.mxu0 %v2400
  %v2901 = vpop.f32.mrf.mxu0
  %v2902 = vadd.f32 %v2645, %v2901
  %v2903 = vpop.f32.mrf.mxu0
  %v2904 = vadd.f32 %v2647, %v2903
  %2905 = vmatprep.mubr.f32.mxu0 0.0
  %2906 = vmatmul.mubr.f32.gmra.mxu0 %v2401
  %v2907 = vpop.f32.mrf.mxu0
  %v2908 = vadd.f32 %v2651, %v2907
  %v2909 = vpop.f32.mrf.mxu0
  %v2910 = vadd.f32 %v2653, %v2909
  %2911 = vmatprep.mubr.f32.mxu0 0.0
  %2912 = vmatmul.mubr.f32.gmra.mxu0 %v2402
  %v2913 = vpop.f32.mrf.mxu0
  %v2914 = vadd.f32 %v2657, %v2913
  %v2915 = vpop.f32.mrf.mxu0
  %v2916 = vadd.f32 %v2659, %v2915
  %2917 = vmatprep.mubr.f32.mxu0 0.0
  %2918 = vmatmul.mubr.f32.gmra.mxu0 %v2403
  %v2919 = vpop.f32.mrf.mxu0
  %v2920 = vadd.f32 %v2663, %v2919
  %v2921 = vpop.f32.mrf.mxu0
  %v2922 = vadd.f32 %v2665, %v2921
  %2923 = vmatprep.mubr.f32.mxu0 0.0
  %2924 = vmatmul.mubr.f32.gmra.mxu0 %v2404
  %v2925 = vpop.f32.mrf.mxu0
  %v2926 = vadd.f32 %v2669, %v2925
  %v2927 = vpop.f32.mrf.mxu0
  %v2928 = vadd.f32 %v2671, %v2927
  %2929 = vmatprep.mubr.f32.mxu0 0.0
  %2930 = vmatmul.mubr.f32.gmra.mxu0 %v2405
  %v2931 = vpop.f32.mrf.mxu0
  %v2932 = vadd.f32 %v2675, %v2931
  %v2933 = vpop.f32.mrf.mxu0
  %v2934 = vadd.f32 %v2677, %v2933
  %2935 = vmatprep.mubr.f32.mxu0 0.0
  %2936 = vmatmul.mubr.f32.gmra.mxu0 %v2406
  %v2937 = vpop.f32.mrf.mxu0
  %v2938 = vadd.f32 %v2681, %v2937
  %v2939 = vpop.f32.mrf.mxu0
  %v2940 = vadd.f32 %v2683, %v2939
  %2941 = vmatprep.mubr.f32.mxu0 0.0
  %2942 = vmatmul.mubr.f32.gmra.mxu0 %v2407
  %v2943 = vpop.f32.mrf.mxu0
  %v2944 = vadd.f32 %v2687, %v2943
  %v2945 = vpop.f32.mrf.mxu0
  %v2946 = vadd.f32 %v2689, %v2945
  %2947 = vmatprep.mubr.f32.mxu0 0.0
  %2948 = vmatmul.mubr.f32.gmra.mxu0 %v2408
  %v2949 = vpop.f32.mrf.mxu0
  %v2950 = vadd.f32 %v2693, %v2949
  %v2951 = vpop.f32.mrf.mxu0
  %v2952 = vadd.f32 %v2695, %v2951
  %2953 = vmatprep.mubr.f32.mxu0 0.0
  %2954 = vmatmul.mubr.f32.gmra.mxu0 %v2409
  %v2955 = vpop.f32.mrf.mxu0
  %v2956 = vadd.f32 %v2699, %v2955
  %v2957 = vpop.f32.mrf.mxu0
  %v2958 = vadd.f32 %v2701, %v2957
  %2959 = vmatprep.mubr.f32.mxu0 0.0
  %2960 = vmatmul.mubr.f32.gmra.mxu0 %v2410
  %v2961 = vpop.f32.mrf.mxu0
  %v2962 = vadd.f32 %v2705, %v2961
  %v2963 = vpop.f32.mrf.mxu0
  %v2964 = vadd.f32 %v2707, %v2963
  %2965 = vmatprep.mubr.f32.mxu0 0.0
  %2966 = vmatmul.mubr.f32.gmra.mxu0 %v2411
  %v2967 = vpop.f32.mrf.mxu0
  %v2968 = vadd.f32 %v2711, %v2967
  %v2969 = vpop.f32.mrf.mxu0
  %v2970 = vadd.f32 %v2713, %v2969
  %2971 = vmatprep.mubr.f32.mxu0 0.0
  %2972 = vmatmul.mubr.f32.gmra.mxu0 %v2412
  %v2973 = vpop.f32.mrf.mxu0
  %v2974 = vadd.f32 %v2717, %v2973
  %v2975 = vpop.f32.mrf.mxu0
  %v2976 = vadd.f32 %v2719, %v2975
  %2977 = vmatprep.mubr.f32.mxu0 0.0
  %2978 = vmatmul.mubr.f32.gmra.mxu0 %v2413
  %v2979 = vpop.f32.mrf.mxu0
  %v2980 = vadd.f32 %v2723, %v2979
  %v2981 = vpop.f32.mrf.mxu0
  %v2982 = vadd.f32 %v2725, %v2981
  %2983 = vmatprep.mubr.f32.mxu0 0.0
  %2984 = vmatmul.mubr.f32.gmra.mxu0 %v2414
  %v2985 = vpop.f32.mrf.mxu0
  %v2986 = vadd.f32 %v2729, %v2985
  %v2987 = vpop.f32.mrf.mxu0
  %v2988 = vadd.f32 %v2731, %v2987
  %2989 = vmatprep.mubr.f32.mxu0 0.0
  %2990 = vmatmul.mubr.f32.gmra.mxu0 %v2415
  %v2991 = vpop.f32.mrf.mxu0
  %v2992 = vadd.f32 %v2735, %v2991
  %v2993 = vpop.f32.mrf.mxu0
  %v2994 = vadd.f32 %v2737, %v2993
  %2995 = vdwg.mxu0
  %v2996 = vrot.slane %v2288, 1
  %v2997 = vrot.slane %v2289, 1
  %v2998 = vrot.slane %v2290, 1
  %v2999 = vrot.slane %v2291, 1
  %v3000 = vrot.slane %v2292, 1
  %v3001 = vrot.slane %v2293, 1
  %v3002 = vrot.slane %v2294, 1
  %v3003 = vrot.slane %v2295, 1
  %v3004 = vrot.slane %v2296, 1
  %v3005 = vrot.slane %v2297, 1
  %v3006 = vrot.slane %v2298, 1
  %v3007 = vrot.slane %v2299, 1
  %v3008 = vrot.slane %v2300, 1
  %v3009 = vrot.slane %v2301, 1
  %v3010 = vrot.slane %v2302, 1
  %v3011 = vrot.slane %v2303, 1
  %v3012 = vrot.slane %v2304, 1
  %v3013 = vrot.slane %v2305, 1
  %v3014 = vrot.slane %v2306, 1
  %v3015 = vrot.slane %v2307, 1
  %v3016 = vrot.slane %v2308, 1
  %v3017 = vrot.slane %v2309, 1
  %v3018 = vrot.slane %v2310, 1
  %v3019 = vrot.slane %v2311, 1
  %v3020 = vrot.slane %v2312, 1
  %v3021 = vrot.slane %v2313, 1
  %v3022 = vrot.slane %v2314, 1
  %v3023 = vrot.slane %v2315, 1
  %v3024 = vrot.slane %v2316, 1
  %v3025 = vrot.slane %v2317, 1
  %v3026 = vrot.slane %v2318, 1
  %v3027 = vrot.slane %v2319, 1
  %v3028 = vsel %vm1344, %v3026, %v3027
  %v3029 = vsel %vm1344, %v3025, %v3026
  %v3030 = vsel %vm1344, %v3024, %v3025
  %v3031 = vsel %vm1344, %v3023, %v3024
  %v3032 = vsel %vm1344, %v3022, %v3023
  %v3033 = vsel %vm1344, %v3021, %v3022
  %v3034 = vsel %vm1344, %v3020, %v3021
  %v3035 = vsel %vm1344, %v3019, %v3020
  %v3036 = vsel %vm1344, %v3018, %v3019
  %v3037 = vsel %vm1344, %v3017, %v3018
  %v3038 = vsel %vm1344, %v3016, %v3017
  %v3039 = vsel %vm1344, %v3015, %v3016
  %v3040 = vsel %vm1344, %v3014, %v3015
  %v3041 = vsel %vm1344, %v3013, %v3014
  %v3042 = vsel %vm1344, %v3012, %v3013
  %v3043 = vsel %vm1344, %v3011, %v3012
  %v3044 = vsel %vm1344, %v3010, %v3011
  %v3045 = vsel %vm1344, %v3009, %v3010
  %v3046 = vsel %vm1344, %v3008, %v3009
  %v3047 = vsel %vm1344, %v3007, %v3008
  %v3048 = vsel %vm1344, %v3006, %v3007
  %v3049 = vsel %vm1344, %v3005, %v3006
  %v3050 = vsel %vm1344, %v3004, %v3005
  %v3051 = vsel %vm1344, %v3003, %v3004
  %v3052 = vsel %vm1344, %v3002, %v3003
  %v3053 = vsel %vm1344, %v3001, %v3002
  %v3054 = vsel %vm1344, %v3000, %v3001
  %v3055 = vsel %vm1344, %v2999, %v3000
  %v3056 = vsel %vm1344, %v2998, %v2999
  %v3057 = vsel %vm1344, %v2997, %v2998
  %v3058 = vsel %vm1344, %v2996, %v2997
  %v3059 = vsel %vm1344, %v3027, %v2996
  %v3060 = vmul.f32 %v3058, %v1413
  %v3061 = vmul.f32 %v3057, %v1418
  %v3062 = vmul.f32 %v3056, %v1423
  %v3063 = vmul.f32 %v3055, %v1428
  %v3064 = vmul.f32 %v3054, %v1433
  %v3065 = vmul.f32 %v3053, %v1438
  %v3066 = vmul.f32 %v3052, %v1443
  %v3067 = vmul.f32 %v3051, %v1448
  %v3068 = vmul.f32 %v3050, %v1453
  %v3069 = vmul.f32 %v3049, %v1458
  %v3070 = vmul.f32 %v3048, %v1463
  %v3071 = vmul.f32 %v3047, %v1468
  %v3072 = vmul.f32 %v3046, %v1473
  %v3073 = vmul.f32 %v3045, %v1478
  %v3074 = vmul.f32 %v3044, %v1483
  %v3075 = vmul.f32 %v3043, %v1488
  %v3076 = vmul.f32 %v3042, %v1493
  %v3077 = vmul.f32 %v3041, %v1498
  %v3078 = vmul.f32 %v3040, %v1503
  %v3079 = vmul.f32 %v3039, %v1508
  %v3080 = vmul.f32 %v3038, %v1513
  %v3081 = vmul.f32 %v3037, %v1518
  %v3082 = vmul.f32 %v3036, %v1523
  %v3083 = vmul.f32 %v3035, %v1528
  %v3084 = vmul.f32 %v3034, %v1533
  %v3085 = vmul.f32 %v3033, %v1538
  %v3086 = vmul.f32 %v3032, %v1543
  %v3087 = vmul.f32 %v3031, %v1548
  %v3088 = vmul.f32 %v3030, %v1553
  %v3089 = vmul.f32 %v3029, %v1558
  %v3090 = vmul.f32 %v3028, %v1563
  %v3091 = vmul.f32 %v3059, %v1568
  %s3092 = scalar_lea.vmem %s5, 1280
  %v3093 = vld [vmem:[%s3092] sm:$0xff]
  %v3094 = vld [vmem:[%s3092 + $0x8] sm:$0xff]
  %v3095 = vld [vmem:[%s3092 + $0x10] sm:$0xff]
  %v3096 = vld [vmem:[%s3092 + $0x18] sm:$0xff]
  %v3097 = vld [vmem:[%s3092 + $0x20] sm:$0xff]
  %v3098 = vld [vmem:[%s3092 + $0x28] sm:$0xff]
  %v3099 = vld [vmem:[%s3092 + $0x30] sm:$0xff]
  %v3100 = vld [vmem:[%s3092 + $0x38] sm:$0xff]
  %v3101 = vld [vmem:[%s3092 + $0x40] sm:$0xff]
  %v3102 = vld [vmem:[%s3092 + $0x48] sm:$0xff]
  %v3103 = vld [vmem:[%s3092 + $0x50] sm:$0xff]
  %v3104 = vld [vmem:[%s3092 + $0x58] sm:$0xff]
  %v3105 = vld [vmem:[%s3092 + $0x60] sm:$0xff]
  %v3106 = vld [vmem:[%s3092 + $0x68] sm:$0xff]
  %v3107 = vld [vmem:[%s3092 + $0x70] sm:$0xff]
  %v3108 = vld [vmem:[%s3092 + $0x78] sm:$0xff]
  %v3109 = vld [vmem:[%s3092 + $0x80] sm:$0xff]
  %v3110 = vld [vmem:[%s3092 + $0x88] sm:$0xff]
  %v3111 = vld [vmem:[%s3092 + $0x90] sm:$0xff]
  %v3112 = vld [vmem:[%s3092 + $0x98] sm:$0xff]
  %v3113 = vld [vmem:[%s3092 + $0xa0] sm:$0xff]
  %v3114 = vld [vmem:[%s3092 + $0xa8] sm:$0xff]
  %v3115 = vld [vmem:[%s3092 + $0xb0] sm:$0xff]
  %v3116 = vld [vmem:[%s3092 + $0xb8] sm:$0xff]
  %v3117 = vld [vmem:[%s3092 + $0xc0] sm:$0xff]
  %v3118 = vld [vmem:[%s3092 + $0xc8] sm:$0xff]
  %v3119 = vld [vmem:[%s3092 + $0xd0] sm:$0xff]
  %v3120 = vld [vmem:[%s3092 + $0xd8] sm:$0xff]
  %v3121 = vld [vmem:[%s3092 + $0xe0] sm:$0xff]
  %v3122 = vld [vmem:[%s3092 + $0xe8] sm:$0xff]
  %v3123 = vld [vmem:[%s3092 + $0xf0] sm:$0xff]
  %v3124 = vld [vmem:[%s3092 + $0xf8] sm:$0xff]
  %3125 = vmatprep.subr.mxu0 %v3124
  %3126 = vmatpush1.msra.mxu0 %v3123
  %3127 = vmatprep.subr.mxu0 %v3122
  %3128 = vmatpush1.msra.mxu0 %v3121
  %3129 = vmatprep.subr.mxu0 %v3120
  %3130 = vmatpush1.msra.mxu0 %v3119
  %3131 = vmatprep.subr.mxu0 %v3118
  %3132 = vmatpush1.msra.mxu0 %v3117
  %3133 = vmatprep.subr.mxu0 %v3116
  %3134 = vmatpush1.msra.mxu0 %v3115
  %3135 = vmatprep.subr.mxu0 %v3114
  %3136 = vmatpush1.msra.mxu0 %v3113
  %3137 = vmatprep.subr.mxu0 %v3112
  %3138 = vmatpush1.msra.mxu0 %v3111
  %3139 = vmatprep.subr.mxu0 %v3110
  %3140 = vmatpush1.msra.mxu0 %v3109
  %3141 = vmatprep.subr.mxu0 %v3108
  %3142 = vmatpush1.msra.mxu0 %v3107
  %3143 = vmatprep.subr.mxu0 %v3106
  %3144 = vmatpush1.msra.mxu0 %v3105
  %3145 = vmatprep.subr.mxu0 %v3104
  %3146 = vmatpush1.msra.mxu0 %v3103
  %3147 = vmatprep.subr.mxu0 %v3102
  %3148 = vmatpush1.msra.mxu0 %v3101
  %3149 = vmatprep.subr.mxu0 %v3100
  %3150 = vmatpush1.msra.mxu0 %v3099
  %3151 = vmatprep.subr.mxu0 %v3098
  %3152 = vmatpush1.msra.mxu0 %v3097
  %3153 = vmatprep.subr.mxu0 %v3096
  %3154 = vmatpush1.msra.mxu0 %v3095
  %3155 = vmatprep.subr.mxu0 %v3094
  %3156 = vmatpush1.msra.mxu0 %v3093
  %3157 = vmatprep.subr.mxu0 0.0
  %3158 = vmatpush2.msra.mxu0 0.0
  %3159 = vmatprep.subr.mxu0 0.0
  %3160 = vmatpush2.msra.mxu0 0.0
  %3161 = vmatprep.subr.mxu0 0.0
  %3162 = vmatpush2.msra.mxu0 0.0
  %3163 = vmatprep.subr.mxu0 0.0
  %3164 = vmatpush2.msra.mxu0 0.0
  %3165 = vmatprep.subr.mxu0 0.0
  %3166 = vmatpush2.msra.mxu0 0.0
  %3167 = vmatprep.subr.mxu0 0.0
  %3168 = vmatpush2.msra.mxu0 0.0
  %3169 = vmatprep.subr.mxu0 0.0
  %3170 = vmatpush2.msra.mxu0 0.0
  %3171 = vmatprep.subr.mxu0 0.0
  %3172 = vmatpush2.msra.mxu0 0.0
  %3173 = vmatprep.subr.mxu0 0.0
  %3174 = vmatpush2.msra.mxu0 0.0
  %3175 = vmatprep.subr.mxu0 0.0
  %3176 = vmatpush2.msra.mxu0 0.0
  %3177 = vmatprep.subr.mxu0 0.0
  %3178 = vmatpush2.msra.mxu0 0.0
  %3179 = vmatprep.subr.mxu0 0.0
  %3180 = vmatpush2.msra.mxu0 0.0
  %3181 = vmatprep.subr.mxu0 0.0
  %3182 = vmatpush2.msra.mxu0 0.0
  %3183 = vmatprep.subr.mxu0 0.0
  %3184 = vmatpush2.msra.mxu0 0.0
  %3185 = vmatprep.subr.mxu0 0.0
  %3186 = vmatpush2.msra.mxu0 0.0
  %3187 = vmatprep.subr.mxu0 0.0
  %3188 = vmatpush2.msra.mxu0 0.0
  %3189 = vmatprep.mubr.f32.mxu0 0.0
  %3190 = vmatmul.mubr.f32.gmra.mxu0 %v3060
  %v3191 = vpop.f32.mrf.mxu0
  %v3192 = vadd.f32 0.0, %v3191
  %v3193 = vpop.f32.mrf.mxu0
  %v3194 = vadd.f32 0.0, %v3193
  %3195 = vmatprep.mubr.f32.mxu0 0.0
  %3196 = vmatmul.mubr.f32.gmra.mxu0 %v3061
  %v3197 = vpop.f32.mrf.mxu0
  %v3198 = vadd.f32 0.0, %v3197
  %v3199 = vpop.f32.mrf.mxu0
  %v3200 = vadd.f32 0.0, %v3199
  %3201 = vmatprep.mubr.f32.mxu0 0.0
  %3202 = vmatmul.mubr.f32.gmra.mxu0 %v3062
  %v3203 = vpop.f32.mrf.mxu0
  %v3204 = vadd.f32 0.0, %v3203
  %v3205 = vpop.f32.mrf.mxu0
  %v3206 = vadd.f32 0.0, %v3205
  %3207 = vmatprep.mubr.f32.mxu0 0.0
  %3208 = vmatmul.mubr.f32.gmra.mxu0 %v3063
  %v3209 = vpop.f32.mrf.mxu0
  %v3210 = vadd.f32 0.0, %v3209
  %v3211 = vpop.f32.mrf.mxu0
  %v3212 = vadd.f32 0.0, %v3211
  %3213 = vmatprep.mubr.f32.mxu0 0.0
  %3214 = vmatmul.mubr.f32.gmra.mxu0 %v3064
  %v3215 = vpop.f32.mrf.mxu0
  %v3216 = vadd.f32 0.0, %v3215
  %v3217 = vpop.f32.mrf.mxu0
  %v3218 = vadd.f32 0.0, %v3217
  %3219 = vmatprep.mubr.f32.mxu0 0.0
  %3220 = vmatmul.mubr.f32.gmra.mxu0 %v3065
  %v3221 = vpop.f32.mrf.mxu0
  %v3222 = vadd.f32 0.0, %v3221
  %v3223 = vpop.f32.mrf.mxu0
  %v3224 = vadd.f32 0.0, %v3223
  %3225 = vmatprep.mubr.f32.mxu0 0.0
  %3226 = vmatmul.mubr.f32.gmra.mxu0 %v3066
  %v3227 = vpop.f32.mrf.mxu0
  %v3228 = vadd.f32 0.0, %v3227
  %v3229 = vpop.f32.mrf.mxu0
  %v3230 = vadd.f32 0.0, %v3229
  %3231 = vmatprep.mubr.f32.mxu0 0.0
  %3232 = vmatmul.mubr.f32.gmra.mxu0 %v3067
  %v3233 = vpop.f32.mrf.mxu0
  %v3234 = vadd.f32 0.0, %v3233
  %v3235 = vpop.f32.mrf.mxu0
  %v3236 = vadd.f32 0.0, %v3235
  %3237 = vmatprep.mubr.f32.mxu0 0.0
  %3238 = vmatmul.mubr.f32.gmra.mxu0 %v3068
  %v3239 = vpop.f32.mrf.mxu0
  %v3240 = vadd.f32 0.0, %v3239
  %v3241 = vpop.f32.mrf.mxu0
  %v3242 = vadd.f32 0.0, %v3241
  %3243 = vmatprep.mubr.f32.mxu0 0.0
  %3244 = vmatmul.mubr.f32.gmra.mxu0 %v3069
  %v3245 = vpop.f32.mrf.mxu0
  %v3246 = vadd.f32 0.0, %v3245
  %v3247 = vpop.f32.mrf.mxu0
  %v3248 = vadd.f32 0.0, %v3247
  %3249 = vmatprep.mubr.f32.mxu0 0.0
  %3250 = vmatmul.mubr.f32.gmra.mxu0 %v3070
  %v3251 = vpop.f32.mrf.mxu0
  %v3252 = vadd.f32 0.0, %v3251
  %v3253 = vpop.f32.mrf.mxu0
  %v3254 = vadd.f32 0.0, %v3253
  %3255 = vmatprep.mubr.f32.mxu0 0.0
  %3256 = vmatmul.mubr.f32.gmra.mxu0 %v3071
  %v3257 = vpop.f32.mrf.mxu0
  %v3258 = vadd.f32 0.0, %v3257
  %v3259 = vpop.f32.mrf.mxu0
  %v3260 = vadd.f32 0.0, %v3259
  %3261 = vmatprep.mubr.f32.mxu0 0.0
  %3262 = vmatmul.mubr.f32.gmra.mxu0 %v3072
  %v3263 = vpop.f32.mrf.mxu0
  %v3264 = vadd.f32 0.0, %v3263
  %v3265 = vpop.f32.mrf.mxu0
  %v3266 = vadd.f32 0.0, %v3265
  %3267 = vmatprep.mubr.f32.mxu0 0.0
  %3268 = vmatmul.mubr.f32.gmra.mxu0 %v3073
  %v3269 = vpop.f32.mrf.mxu0
  %v3270 = vadd.f32 0.0, %v3269
  %v3271 = vpop.f32.mrf.mxu0
  %v3272 = vadd.f32 0.0, %v3271
  %3273 = vmatprep.mubr.f32.mxu0 0.0
  %3274 = vmatmul.mubr.f32.gmra.mxu0 %v3074
  %v3275 = vpop.f32.mrf.mxu0
  %v3276 = vadd.f32 0.0, %v3275
  %v3277 = vpop.f32.mrf.mxu0
  %v3278 = vadd.f32 0.0, %v3277
  %3279 = vmatprep.mubr.f32.mxu0 0.0
  %3280 = vmatmul.mubr.f32.gmra.mxu0 %v3075
  %v3281 = vpop.f32.mrf.mxu0
  %v3282 = vadd.f32 0.0, %v3281
  %v3283 = vpop.f32.mrf.mxu0
  %v3284 = vadd.f32 0.0, %v3283
  %3285 = vmatprep.mubr.f32.mxu0 0.0
  %3286 = vmatmul.mubr.f32.gmra.mxu0 %v3076
  %v3287 = vpop.f32.mrf.mxu0
  %v3288 = vadd.f32 0.0, %v3287
  %v3289 = vpop.f32.mrf.mxu0
  %v3290 = vadd.f32 0.0, %v3289
  %3291 = vmatprep.mubr.f32.mxu0 0.0
  %3292 = vmatmul.mubr.f32.gmra.mxu0 %v3077
  %v3293 = vpop.f32.mrf.mxu0
  %v3294 = vadd.f32 0.0, %v3293
  %v3295 = vpop.f32.mrf.mxu0
  %v3296 = vadd.f32 0.0, %v3295
  %3297 = vmatprep.mubr.f32.mxu0 0.0
  %3298 = vmatmul.mubr.f32.gmra.mxu0 %v3078
  %v3299 = vpop.f32.mrf.mxu0
  %v3300 = vadd.f32 0.0, %v3299
  %v3301 = vpop.f32.mrf.mxu0
  %v3302 = vadd.f32 0.0, %v3301
  %3303 = vmatprep.mubr.f32.mxu0 0.0
  %3304 = vmatmul.mubr.f32.gmra.mxu0 %v3079
  %v3305 = vpop.f32.mrf.mxu0
  %v3306 = vadd.f32 0.0, %v3305
  %v3307 = vpop.f32.mrf.mxu0
  %v3308 = vadd.f32 0.0, %v3307
  %3309 = vmatprep.mubr.f32.mxu0 0.0
  %3310 = vmatmul.mubr.f32.gmra.mxu0 %v3080
  %v3311 = vpop.f32.mrf.mxu0
  %v3312 = vadd.f32 0.0, %v3311
  %v3313 = vpop.f32.mrf.mxu0
  %v3314 = vadd.f32 0.0, %v3313
  %3315 = vmatprep.mubr.f32.mxu0 0.0
  %3316 = vmatmul.mubr.f32.gmra.mxu0 %v3081
  %v3317 = vpop.f32.mrf.mxu0
  %v3318 = vadd.f32 0.0, %v3317
  %v3319 = vpop.f32.mrf.mxu0
  %v3320 = vadd.f32 0.0, %v3319
  %3321 = vmatprep.mubr.f32.mxu0 0.0
  %3322 = vmatmul.mubr.f32.gmra.mxu0 %v3082
  %v3323 = vpop.f32.mrf.mxu0
  %v3324 = vadd.f32 0.0, %v3323
  %v3325 = vpop.f32.mrf.mxu0
  %v3326 = vadd.f32 0.0, %v3325
  %3327 = vmatprep.mubr.f32.mxu0 0.0
  %3328 = vmatmul.mubr.f32.gmra.mxu0 %v3083
  %v3329 = vpop.f32.mrf.mxu0
  %v3330 = vadd.f32 0.0, %v3329
  %v3331 = vpop.f32.mrf.mxu0
  %v3332 = vadd.f32 0.0, %v3331
  %3333 = vmatprep.mubr.f32.mxu0 0.0
  %3334 = vmatmul.mubr.f32.gmra.mxu0 %v3084
  %v3335 = vpop.f32.mrf.mxu0
  %v3336 = vadd.f32 0.0, %v3335
  %v3337 = vpop.f32.mrf.mxu0
  %v3338 = vadd.f32 0.0, %v3337
  %3339 = vmatprep.mubr.f32.mxu0 0.0
  %3340 = vmatmul.mubr.f32.gmra.mxu0 %v3085
  %v3341 = vpop.f32.mrf.mxu0
  %v3342 = vadd.f32 0.0, %v3341
  %v3343 = vpop.f32.mrf.mxu0
  %v3344 = vadd.f32 0.0, %v3343
  %3345 = vmatprep.mubr.f32.mxu0 0.0
  %3346 = vmatmul.mubr.f32.gmra.mxu0 %v3086
  %v3347 = vpop.f32.mrf.mxu0
  %v3348 = vadd.f32 0.0, %v3347
  %v3349 = vpop.f32.mrf.mxu0
  %v3350 = vadd.f32 0.0, %v3349
  %3351 = vmatprep.mubr.f32.mxu0 0.0
  %3352 = vmatmul.mubr.f32.gmra.mxu0 %v3087
  %v3353 = vpop.f32.mrf.mxu0
  %v3354 = vadd.f32 0.0, %v3353
  %v3355 = vpop.f32.mrf.mxu0
  %v3356 = vadd.f32 0.0, %v3355
  %3357 = vmatprep.mubr.f32.mxu0 0.0
  %3358 = vmatmul.mubr.f32.gmra.mxu0 %v3088
  %v3359 = vpop.f32.mrf.mxu0
  %v3360 = vadd.f32 0.0, %v3359
  %v3361 = vpop.f32.mrf.mxu0
  %v3362 = vadd.f32 0.0, %v3361
  %3363 = vmatprep.mubr.f32.mxu0 0.0
  %3364 = vmatmul.mubr.f32.gmra.mxu0 %v3089
  %v3365 = vpop.f32.mrf.mxu0
  %v3366 = vadd.f32 0.0, %v3365
  %v3367 = vpop.f32.mrf.mxu0
  %v3368 = vadd.f32 0.0, %v3367
  %3369 = vmatprep.mubr.f32.mxu0 0.0
  %3370 = vmatmul.mubr.f32.gmra.mxu0 %v3090
  %v3371 = vpop.f32.mrf.mxu0
  %v3372 = vadd.f32 0.0, %v3371
  %v3373 = vpop.f32.mrf.mxu0
  %v3374 = vadd.f32 0.0, %v3373
  %3375 = vmatprep.mubr.f32.mxu0 0.0
  %3376 = vmatmul.mubr.f32.gmra.mxu0 %v3091
  %v3377 = vpop.f32.mrf.mxu0
  %v3378 = vadd.f32 0.0, %v3377
  %v3379 = vpop.f32.mrf.mxu0
  %v3380 = vadd.f32 0.0, %v3379
  %3381 = vdwg.mxu0
  %v3382 = vadd.f32 %v2806, %v3192
  %v3383 = vadd.f32 %v2808, %v3194
  %v3384 = vadd.f32 %v2812, %v3198
  %v3385 = vadd.f32 %v2814, %v3200
  %v3386 = vadd.f32 %v2818, %v3204
  %v3387 = vadd.f32 %v2820, %v3206
  %v3388 = vadd.f32 %v2824, %v3210
  %v3389 = vadd.f32 %v2826, %v3212
  %v3390 = vadd.f32 %v2830, %v3216
  %v3391 = vadd.f32 %v2832, %v3218
  %v3392 = vadd.f32 %v2836, %v3222
  %v3393 = vadd.f32 %v2838, %v3224
  %v3394 = vadd.f32 %v2842, %v3228
  %v3395 = vadd.f32 %v2844, %v3230
  %v3396 = vadd.f32 %v2848, %v3234
  %v3397 = vadd.f32 %v2850, %v3236
  %v3398 = vadd.f32 %v2854, %v3240
  %v3399 = vadd.f32 %v2856, %v3242
  %v3400 = vadd.f32 %v2860, %v3246
  %v3401 = vadd.f32 %v2862, %v3248
  %v3402 = vadd.f32 %v2866, %v3252
  %v3403 = vadd.f32 %v2868, %v3254
  %v3404 = vadd.f32 %v2872, %v3258
  %v3405 = vadd.f32 %v2874, %v3260
  %v3406 = vadd.f32 %v2878, %v3264
  %v3407 = vadd.f32 %v2880, %v3266
  %v3408 = vadd.f32 %v2884, %v3270
  %v3409 = vadd.f32 %v2886, %v3272
  %v3410 = vadd.f32 %v2890, %v3276
  %v3411 = vadd.f32 %v2892, %v3278
  %v3412 = vadd.f32 %v2896, %v3282
  %v3413 = vadd.f32 %v2898, %v3284
  %v3414 = vadd.f32 %v2902, %v3288
  %v3415 = vadd.f32 %v2904, %v3290
  %v3416 = vadd.f32 %v2908, %v3294
  %v3417 = vadd.f32 %v2910, %v3296
  %v3418 = vadd.f32 %v2914, %v3300
  %v3419 = vadd.f32 %v2916, %v3302
  %v3420 = vadd.f32 %v2920, %v3306
  %v3421 = vadd.f32 %v2922, %v3308
  %v3422 = vadd.f32 %v2926, %v3312
  %v3423 = vadd.f32 %v2928, %v3314
  %v3424 = vadd.f32 %v2932, %v3318
  %v3425 = vadd.f32 %v2934, %v3320
  %v3426 = vadd.f32 %v2938, %v3324
  %v3427 = vadd.f32 %v2940, %v3326
  %v3428 = vadd.f32 %v2944, %v3330
  %v3429 = vadd.f32 %v2946, %v3332
  %v3430 = vadd.f32 %v2950, %v3336
  %v3431 = vadd.f32 %v2952, %v3338
  %v3432 = vadd.f32 %v2956, %v3342
  %v3433 = vadd.f32 %v2958, %v3344
  %v3434 = vadd.f32 %v2962, %v3348
  %v3435 = vadd.f32 %v2964, %v3350
  %v3436 = vadd.f32 %v2968, %v3354
  %v3437 = vadd.f32 %v2970, %v3356
  %v3438 = vadd.f32 %v2974, %v3360
  %v3439 = vadd.f32 %v2976, %v3362
  %v3440 = vadd.f32 %v2980, %v3366
  %v3441 = vadd.f32 %v2982, %v3368
  %v3442 = vadd.f32 %v2986, %v3372
  %v3443 = vadd.f32 %v2988, %v3374
  %v3444 = vadd.f32 %v2992, %v3378
  %v3445 = vadd.f32 %v2994, %v3380
  %s3446 = scalar_lea.vmem %s6, 2
  %v3447 = vld [vmem:[%s3446] sm:$0x3]
  %v3449 = vlaneseq
  %v3450 = vshrl.u32 %v3449, 7
  %v3451 = vsub.s32 0, %v3450
  %v3452 = vrot.slane %v3447, %v3451
  %v3453 = vlaneseq
  %v3454 = vshrl.u32 %v3453, 7
  %v3455 = vsub.s32 1, %v3454
  %v3456 = vrot.slane %v3447, %v3455
  %v3459 = vadd.f32 %v3382, %v3452
  %v3460 = vadd.f32 %v3383, %v3456
  %v3461 = vadd.f32 %v3384, %v3452
  %v3462 = vadd.f32 %v3385, %v3456
  %v3463 = vadd.f32 %v3386, %v3452
  %v3464 = vadd.f32 %v3387, %v3456
  %v3465 = vadd.f32 %v3388, %v3452
  %v3466 = vadd.f32 %v3389, %v3456
  %v3467 = vadd.f32 %v3390, %v3452
  %v3468 = vadd.f32 %v3391, %v3456
  %v3469 = vadd.f32 %v3392, %v3452
  %v3470 = vadd.f32 %v3393, %v3456
  %v3471 = vadd.f32 %v3394, %v3452
  %v3472 = vadd.f32 %v3395, %v3456
  %v3473 = vadd.f32 %v3396, %v3452
  %v3474 = vadd.f32 %v3397, %v3456
  %v3475 = vadd.f32 %v3398, %v3452
  %v3476 = vadd.f32 %v3399, %v3456
  %v3477 = vadd.f32 %v3400, %v3452
  %v3478 = vadd.f32 %v3401, %v3456
  %v3479 = vadd.f32 %v3402, %v3452
  %v3480 = vadd.f32 %v3403, %v3456
  %v3481 = vadd.f32 %v3404, %v3452
  %v3482 = vadd.f32 %v3405, %v3456
  %v3483 = vadd.f32 %v3406, %v3452
  %v3484 = vadd.f32 %v3407, %v3456
  %v3485 = vadd.f32 %v3408, %v3452
  %v3486 = vadd.f32 %v3409, %v3456
  %v3487 = vadd.f32 %v3410, %v3452
  %v3488 = vadd.f32 %v3411, %v3456
  %v3489 = vadd.f32 %v3412, %v3452
  %v3490 = vadd.f32 %v3413, %v3456
  %v3491 = vadd.f32 %v3414, %v3452
  %v3492 = vadd.f32 %v3415, %v3456
  %v3493 = vadd.f32 %v3416, %v3452
  %v3494 = vadd.f32 %v3417, %v3456
  %v3495 = vadd.f32 %v3418, %v3452
  %v3496 = vadd.f32 %v3419, %v3456
  %v3497 = vadd.f32 %v3420, %v3452
  %v3498 = vadd.f32 %v3421, %v3456
  %v3499 = vadd.f32 %v3422, %v3452
  %v3500 = vadd.f32 %v3423, %v3456
  %v3501 = vadd.f32 %v3424, %v3452
  %v3502 = vadd.f32 %v3425, %v3456
  %v3503 = vadd.f32 %v3426, %v3452
  %v3504 = vadd.f32 %v3427, %v3456
  %v3505 = vadd.f32 %v3428, %v3452
  %v3506 = vadd.f32 %v3429, %v3456
  %v3507 = vadd.f32 %v3430, %v3452
  %v3508 = vadd.f32 %v3431, %v3456
  %v3509 = vadd.f32 %v3432, %v3452
  %v3510 = vadd.f32 %v3433, %v3456
  %v3511 = vadd.f32 %v3434, %v3452
  %v3512 = vadd.f32 %v3435, %v3456
  %v3513 = vadd.f32 %v3436, %v3452
  %v3514 = vadd.f32 %v3437, %v3456
  %v3515 = vadd.f32 %v3438, %v3452
  %v3516 = vadd.f32 %v3439, %v3456
  %v3517 = vadd.f32 %v3440, %v3452
  %v3518 = vadd.f32 %v3441, %v3456
  %v3519 = vadd.f32 %v3442, %v3452
  %v3520 = vadd.f32 %v3443, %v3456
  %v3521 = vadd.f32 %v3444, %v3452
  %v3522 = vadd.f32 %v3445, %v3456
  %v3523 = vxor.u32 %v3460, 2147483648
  %v3524 = vxor.u32 %v3462, 2147483648
  %v3525 = vxor.u32 %v3464, 2147483648
  %v3526 = vxor.u32 %v3466, 2147483648
  %v3527 = vxor.u32 %v3468, 2147483648
  %v3528 = vxor.u32 %v3470, 2147483648
  %v3529 = vxor.u32 %v3472, 2147483648
  %v3530 = vxor.u32 %v3474, 2147483648
  %v3531 = vxor.u32 %v3476, 2147483648
  %v3532 = vxor.u32 %v3478, 2147483648
  %v3533 = vxor.u32 %v3480, 2147483648
  %v3534 = vxor.u32 %v3482, 2147483648
  %v3535 = vxor.u32 %v3484, 2147483648
  %v3536 = vxor.u32 %v3486, 2147483648
  %v3537 = vxor.u32 %v3488, 2147483648
  %v3538 = vxor.u32 %v3490, 2147483648
  %v3539 = vxor.u32 %v3492, 2147483648
  %v3540 = vxor.u32 %v3494, 2147483648
  %v3541 = vxor.u32 %v3496, 2147483648
  %v3542 = vxor.u32 %v3498, 2147483648
  %v3543 = vxor.u32 %v3500, 2147483648
  %v3544 = vxor.u32 %v3502, 2147483648
  %v3545 = vxor.u32 %v3504, 2147483648
  %v3546 = vxor.u32 %v3506, 2147483648
  %v3547 = vxor.u32 %v3508, 2147483648
  %v3548 = vxor.u32 %v3510, 2147483648
  %v3549 = vxor.u32 %v3512, 2147483648
  %v3550 = vxor.u32 %v3514, 2147483648
  %v3551 = vxor.u32 %v3516, 2147483648
  %v3552 = vxor.u32 %v3518, 2147483648
  %v3553 = vxor.u32 %v3520, 2147483648
  %v3554 = vxor.u32 %v3522, 2147483648
  %v3555 = vmul.f32 %v3523, 1.442695
  %v3556 = vpow.pop %v3555
  %v3557 = vmul.f32 %v3524, 1.442695
  %v3558 = vpow.pop %v3557
  %v3559 = vmul.f32 %v3525, 1.442695
  %v3560 = vpow.pop %v3559
  %v3561 = vmul.f32 %v3526, 1.442695
  %v3562 = vpow.pop %v3561
  %v3563 = vmul.f32 %v3527, 1.442695
  %v3564 = vpow.pop %v3563
  %v3565 = vmul.f32 %v3528, 1.442695
  %v3566 = vpow.pop %v3565
  %v3567 = vmul.f32 %v3529, 1.442695
  %v3568 = vpow.pop %v3567
  %v3569 = vmul.f32 %v3530, 1.442695
  %v3570 = vpow.pop %v3569
  %v3571 = vmul.f32 %v3531, 1.442695
  %v3572 = vpow.pop %v3571
  %v3573 = vmul.f32 %v3532, 1.442695
  %v3574 = vpow.pop %v3573
  %v3575 = vmul.f32 %v3533, 1.442695
  %v3576 = vpow.pop %v3575
  %v3577 = vmul.f32 %v3534, 1.442695
  %v3578 = vpow.pop %v3577
  %v3579 = vmul.f32 %v3535, 1.442695
  %v3580 = vpow.pop %v3579
  %v3581 = vmul.f32 %v3536, 1.442695
  %v3582 = vpow.pop %v3581
  %v3583 = vmul.f32 %v3537, 1.442695
  %v3584 = vpow.pop %v3583
  %v3585 = vmul.f32 %v3538, 1.442695
  %v3586 = vpow.pop %v3585
  %v3587 = vmul.f32 %v3539, 1.442695
  %v3588 = vpow.pop %v3587
  %v3589 = vmul.f32 %v3540, 1.442695
  %v3590 = vpow.pop %v3589
  %v3591 = vmul.f32 %v3541, 1.442695
  %v3592 = vpow.pop %v3591
  %v3593 = vmul.f32 %v3542, 1.442695
  %v3594 = vpow.pop %v3593
  %v3595 = vmul.f32 %v3543, 1.442695
  %v3596 = vpow.pop %v3595
  %v3597 = vmul.f32 %v3544, 1.442695
  %v3598 = vpow.pop %v3597
  %v3599 = vmul.f32 %v3545, 1.442695
  %v3600 = vpow.pop %v3599
  %v3601 = vmul.f32 %v3546, 1.442695
  %v3602 = vpow.pop %v3601
  %v3603 = vmul.f32 %v3547, 1.442695
  %v3604 = vpow.pop %v3603
  %v3605 = vmul.f32 %v3548, 1.442695
  %v3606 = vpow.pop %v3605
  %v3607 = vmul.f32 %v3549, 1.442695
  %v3608 = vpow.pop %v3607
  %v3609 = vmul.f32 %v3550, 1.442695
  %v3610 = vpow.pop %v3609
  %v3611 = vmul.f32 %v3551, 1.442695
  %v3612 = vpow.pop %v3611
  %v3613 = vmul.f32 %v3552, 1.442695
  %v3614 = vpow.pop %v3613
  %v3615 = vmul.f32 %v3553, 1.442695
  %v3616 = vpow.pop %v3615
  %v3617 = vmul.f32 %v3554, 1.442695
  %v3618 = vpow.pop %v3617
  %v3619 = vadd.f32 %v3556, 1.0
  %v3620 = vadd.f32 %v3558, 1.0
  %v3621 = vadd.f32 %v3560, 1.0
  %v3622 = vadd.f32 %v3562, 1.0
  %v3623 = vadd.f32 %v3564, 1.0
  %v3624 = vadd.f32 %v3566, 1.0
  %v3625 = vadd.f32 %v3568, 1.0
  %v3626 = vadd.f32 %v3570, 1.0
  %v3627 = vadd.f32 %v3572, 1.0
  %v3628 = vadd.f32 %v3574, 1.0
  %v3629 = vadd.f32 %v3576, 1.0
  %v3630 = vadd.f32 %v3578, 1.0
  %v3631 = vadd.f32 %v3580, 1.0
  %v3632 = vadd.f32 %v3582, 1.0
  %v3633 = vadd.f32 %v3584, 1.0
  %v3634 = vadd.f32 %v3586, 1.0
  %v3635 = vadd.f32 %v3588, 1.0
  %v3636 = vadd.f32 %v3590, 1.0
  %v3637 = vadd.f32 %v3592, 1.0
  %v3638 = vadd.f32 %v3594, 1.0
  %v3639 = vadd.f32 %v3596, 1.0
  %v3640 = vadd.f32 %v3598, 1.0
  %v3641 = vadd.f32 %v3600, 1.0
  %v3642 = vadd.f32 %v3602, 1.0
  %v3643 = vadd.f32 %v3604, 1.0
  %v3644 = vadd.f32 %v3606, 1.0
  %v3645 = vadd.f32 %v3608, 1.0
  %v3646 = vadd.f32 %v3610, 1.0
  %v3647 = vadd.f32 %v3612, 1.0
  %v3648 = vadd.f32 %v3614, 1.0
  %v3649 = vadd.f32 %v3616, 1.0
  %v3650 = vadd.f32 %v3618, 1.0
  %v3651 = vrcp.pop %v3619
  %v3652 = vmul.f32 1.0, %v3651
  %v3653 = vrcp.pop %v3620
  %v3654 = vmul.f32 1.0, %v3653
  %v3655 = vrcp.pop %v3621
  %v3656 = vmul.f32 1.0, %v3655
  %v3657 = vrcp.pop %v3622
  %v3658 = vmul.f32 1.0, %v3657
  %v3659 = vrcp.pop %v3623
  %v3660 = vmul.f32 1.0, %v3659
  %v3661 = vrcp.pop %v3624
  %v3662 = vmul.f32 1.0, %v3661
  %v3663 = vrcp.pop %v3625
  %v3664 = vmul.f32 1.0, %v3663
  %v3665 = vrcp.pop %v3626
  %v3666 = vmul.f32 1.0, %v3665
  %v3667 = vrcp.pop %v3627
  %v3668 = vmul.f32 1.0, %v3667
  %v3669 = vrcp.pop %v3628
  %v3670 = vmul.f32 1.0, %v3669
  %v3671 = vrcp.pop %v3629
  %v3672 = vmul.f32 1.0, %v3671
  %v3673 = vrcp.pop %v3630
  %v3674 = vmul.f32 1.0, %v3673
  %v3675 = vrcp.pop %v3631
  %v3676 = vmul.f32 1.0, %v3675
  %v3677 = vrcp.pop %v3632
  %v3678 = vmul.f32 1.0, %v3677
  %v3679 = vrcp.pop %v3633
  %v3680 = vmul.f32 1.0, %v3679
  %v3681 = vrcp.pop %v3634
  %v3682 = vmul.f32 1.0, %v3681
  %v3683 = vrcp.pop %v3635
  %v3684 = vmul.f32 1.0, %v3683
  %v3685 = vrcp.pop %v3636
  %v3686 = vmul.f32 1.0, %v3685
  %v3687 = vrcp.pop %v3637
  %v3688 = vmul.f32 1.0, %v3687
  %v3689 = vrcp.pop %v3638
  %v3690 = vmul.f32 1.0, %v3689
  %v3691 = vrcp.pop %v3639
  %v3692 = vmul.f32 1.0, %v3691
  %v3693 = vrcp.pop %v3640
  %v3694 = vmul.f32 1.0, %v3693
  %v3695 = vrcp.pop %v3641
  %v3696 = vmul.f32 1.0, %v3695
  %v3697 = vrcp.pop %v3642
  %v3698 = vmul.f32 1.0, %v3697
  %v3699 = vrcp.pop %v3643
  %v3700 = vmul.f32 1.0, %v3699
  %v3701 = vrcp.pop %v3644
  %v3702 = vmul.f32 1.0, %v3701
  %v3703 = vrcp.pop %v3645
  %v3704 = vmul.f32 1.0, %v3703
  %v3705 = vrcp.pop %v3646
  %v3706 = vmul.f32 1.0, %v3705
  %v3707 = vrcp.pop %v3647
  %v3708 = vmul.f32 1.0, %v3707
  %v3709 = vrcp.pop %v3648
  %v3710 = vmul.f32 1.0, %v3709
  %v3711 = vrcp.pop %v3649
  %v3712 = vmul.f32 1.0, %v3711
  %v3713 = vrcp.pop %v3650
  %v3714 = vmul.f32 1.0, %v3713
  %v3715 = vmul.f32 %v3459, %v3652
  %v3716 = vmul.f32 %v3461, %v3654
  %v3717 = vmul.f32 %v3463, %v3656
  %v3718 = vmul.f32 %v3465, %v3658
  %v3719 = vmul.f32 %v3467, %v3660
  %v3720 = vmul.f32 %v3469, %v3662
  %v3721 = vmul.f32 %v3471, %v3664
  %v3722 = vmul.f32 %v3473, %v3666
  %v3723 = vmul.f32 %v3475, %v3668
  %v3724 = vmul.f32 %v3477, %v3670
  %v3725 = vmul.f32 %v3479, %v3672
  %v3726 = vmul.f32 %v3481, %v3674
  %v3727 = vmul.f32 %v3483, %v3676
  %v3728 = vmul.f32 %v3485, %v3678
  %v3729 = vmul.f32 %v3487, %v3680
  %v3730 = vmul.f32 %v3489, %v3682
  %v3731 = vmul.f32 %v3491, %v3684
  %v3732 = vmul.f32 %v3493, %v3686
  %v3733 = vmul.f32 %v3495, %v3688
  %v3734 = vmul.f32 %v3497, %v3690
  %v3735 = vmul.f32 %v3499, %v3692
  %v3736 = vmul.f32 %v3501, %v3694
  %v3737 = vmul.f32 %v3503, %v3696
  %v3738 = vmul.f32 %v3505, %v3698
  %v3739 = vmul.f32 %v3507, %v3700
  %v3740 = vmul.f32 %v3509, %v3702
  %v3741 = vmul.f32 %v3511, %v3704
  %v3742 = vmul.f32 %v3513, %v3706
  %v3743 = vmul.f32 %v3515, %v3708
  %v3744 = vmul.f32 %v3517, %v3710
  %v3745 = vmul.f32 %v3519, %v3712
  %v3746 = vmul.f32 %v3521, %v3714
  %v3747 = vadd.f32 %v3715, %v2288
  %v3748 = vadd.f32 %v3716, %v2289
  %v3749 = vadd.f32 %v3717, %v2290
  %v3750 = vadd.f32 %v3718, %v2291
  %v3751 = vadd.f32 %v3719, %v2292
  %v3752 = vadd.f32 %v3720, %v2293
  %v3753 = vadd.f32 %v3721, %v2294
  %v3754 = vadd.f32 %v3722, %v2295
  %v3755 = vadd.f32 %v3723, %v2296
  %v3756 = vadd.f32 %v3724, %v2297
  %v3757 = vadd.f32 %v3725, %v2298
  %v3758 = vadd.f32 %v3726, %v2299
  %v3759 = vadd.f32 %v3727, %v2300
  %v3760 = vadd.f32 %v3728, %v2301
  %v3761 = vadd.f32 %v3729, %v2302
  %v3762 = vadd.f32 %v3730, %v2303
  %v3763 = vadd.f32 %v3731, %v2304
  %v3764 = vadd.f32 %v3732, %v2305
  %v3765 = vadd.f32 %v3733, %v2306
  %v3766 = vadd.f32 %v3734, %v2307
  %v3767 = vadd.f32 %v3735, %v2308
  %v3768 = vadd.f32 %v3736, %v2309
  %v3769 = vadd.f32 %v3737, %v2310
  %v3770 = vadd.f32 %v3738, %v2311
  %v3771 = vadd.f32 %v3739, %v2312
  %v3772 = vadd.f32 %v3740, %v2313
  %v3773 = vadd.f32 %v3741, %v2314
  %v3774 = vadd.f32 %v3742, %v2315
  %v3775 = vadd.f32 %v3743, %v2316
  %v3776 = vadd.f32 %v3744, %v2317
  %v3777 = vadd.f32 %v3745, %v2318
  %v3778 = vadd.f32 %v3746, %v2319
  %v3779 = vmul.f32 %v3747, 0.70710677
  %v3780 = vmul.f32 %v3748, 0.70710677
  %v3781 = vmul.f32 %v3749, 0.70710677
  %v3782 = vmul.f32 %v3750, 0.70710677
  %v3783 = vmul.f32 %v3751, 0.70710677
  %v3784 = vmul.f32 %v3752, 0.70710677
  %v3785 = vmul.f32 %v3753, 0.70710677
  %v3786 = vmul.f32 %v3754, 0.70710677
  %v3787 = vmul.f32 %v3755, 0.70710677
  %v3788 = vmul.f32 %v3756, 0.70710677
  %v3789 = vmul.f32 %v3757, 0.70710677
  %v3790 = vmul.f32 %v3758, 0.70710677
  %v3791 = vmul.f32 %v3759, 0.70710677
  %v3792 = vmul.f32 %v3760, 0.70710677
  %v3793 = vmul.f32 %v3761, 0.70710677
  %v3794 = vmul.f32 %v3762, 0.70710677
  %v3795 = vmul.f32 %v3763, 0.70710677
  %v3796 = vmul.f32 %v3764, 0.70710677
  %v3797 = vmul.f32 %v3765, 0.70710677
  %v3798 = vmul.f32 %v3766, 0.70710677
  %v3799 = vmul.f32 %v3767, 0.70710677
  %v3800 = vmul.f32 %v3768, 0.70710677
  %v3801 = vmul.f32 %v3769, 0.70710677
  %v3802 = vmul.f32 %v3770, 0.70710677
  %v3803 = vmul.f32 %v3771, 0.70710677
  %v3804 = vmul.f32 %v3772, 0.70710677
  %v3805 = vmul.f32 %v3773, 0.70710677
  %v3806 = vmul.f32 %v3774, 0.70710677
  %v3807 = vmul.f32 %v3775, 0.70710677
  %v3808 = vmul.f32 %v3776, 0.70710677
  %v3809 = vmul.f32 %v3777, 0.70710677
  %v3810 = vmul.f32 %v3778, 0.70710677
  %v3811 = vld [vmem:[%s7] sm:$0xff]
  %v3812 = vld [vmem:[%s7 + $0x8] sm:$0xff]
  %v3813 = vld [vmem:[%s7 + $0x10] sm:$0xff]
  %v3814 = vld [vmem:[%s7 + $0x18] sm:$0xff]
  %v3815 = vld [vmem:[%s7 + $0x20] sm:$0xff]
  %v3816 = vld [vmem:[%s7 + $0x28] sm:$0xff]
  %v3817 = vld [vmem:[%s7 + $0x30] sm:$0xff]
  %v3818 = vld [vmem:[%s7 + $0x38] sm:$0xff]
  %v3819 = vld [vmem:[%s7 + $0x40] sm:$0xff]
  %v3820 = vld [vmem:[%s7 + $0x48] sm:$0xff]
  %v3821 = vld [vmem:[%s7 + $0x50] sm:$0xff]
  %v3822 = vld [vmem:[%s7 + $0x58] sm:$0xff]
  %v3823 = vld [vmem:[%s7 + $0x60] sm:$0xff]
  %v3824 = vld [vmem:[%s7 + $0x68] sm:$0xff]
  %v3825 = vld [vmem:[%s7 + $0x70] sm:$0xff]
  %v3826 = vld [vmem:[%s7 + $0x78] sm:$0xff]
  %v3827 = vld [vmem:[%s8] sm:$0x1]
  %v3829 = vlaneseq
  %v3830 = vshrl.u32 %v3829, 7
  %v3831 = vsub.s32 0, %v3830
  %v3832 = vrot.slane %v3827, %v3831
  %3834 = vmatprep.subr.mxu0 0.0
  %3835 = vmatpush1.msra.mxu0 %v3826
  %3836 = vmatprep.subr.mxu0 0.0
  %3837 = vmatpush1.msra.mxu0 %v3825
  %3838 = vmatprep.subr.mxu0 0.0
  %3839 = vmatpush1.msra.mxu0 %v3824
  %3840 = vmatprep.subr.mxu0 0.0
  %3841 = vmatpush1.msra.mxu0 %v3823
  %3842 = vmatprep.subr.mxu0 0.0
  %3843 = vmatpush1.msra.mxu0 %v3822
  %3844 = vmatprep.subr.mxu0 0.0
  %3845 = vmatpush1.msra.mxu0 %v3821
  %3846 = vmatprep.subr.mxu0 0.0
  %3847 = vmatpush1.msra.mxu0 %v3820
  %3848 = vmatprep.subr.mxu0 0.0
  %3849 = vmatpush1.msra.mxu0 %v3819
  %3850 = vmatprep.subr.mxu0 0.0
  %3851 = vmatpush1.msra.mxu0 %v3818
  %3852 = vmatprep.subr.mxu0 0.0
  %3853 = vmatpush1.msra.mxu0 %v3817
  %3854 = vmatprep.subr.mxu0 0.0
  %3855 = vmatpush1.msra.mxu0 %v3816
  %3856 = vmatprep.subr.mxu0 0.0
  %3857 = vmatpush1.msra.mxu0 %v3815
  %3858 = vmatprep.subr.mxu0 0.0
  %3859 = vmatpush1.msra.mxu0 %v3814
  %3860 = vmatprep.subr.mxu0 0.0
  %3861 = vmatpush1.msra.mxu0 %v3813
  %3862 = vmatprep.subr.mxu0 0.0
  %3863 = vmatpush1.msra.mxu0 %v3812
  %3864 = vmatprep.subr.mxu0 0.0
  %3865 = vmatpush1.msra.mxu0 %v3811
  %3866 = vmatprep.subr.mxu0 0.0
  %3867 = vmatpush2.msra.mxu0 0.0
  %3868 = vmatprep.subr.mxu0 0.0
  %3869 = vmatpush2.msra.mxu0 0.0
  %3870 = vmatprep.subr.mxu0 0.0
  %3871 = vmatpush2.msra.mxu0 0.0
  %3872 = vmatprep.subr.mxu0 0.0
  %3873 = vmatpush2.msra.mxu0 0.0
  %3874 = vmatprep.subr.mxu0 0.0
  %3875 = vmatpush2.msra.mxu0 0.0
  %3876 = vmatprep.subr.mxu0 0.0
  %3877 = vmatpush2.msra.mxu0 0.0
  %3878 = vmatprep.subr.mxu0 0.0
  %3879 = vmatpush2.msra.mxu0 0.0
  %3880 = vmatprep.subr.mxu0 0.0
  %3881 = vmatpush2.msra.mxu0 0.0
  %3882 = vmatprep.subr.mxu0 0.0
  %3883 = vmatpush2.msra.mxu0 0.0
  %3884 = vmatprep.subr.mxu0 0.0
  %3885 = vmatpush2.msra.mxu0 0.0
  %3886 = vmatprep.subr.mxu0 0.0
  %3887 = vmatpush2.msra.mxu0 0.0
  %3888 = vmatprep.subr.mxu0 0.0
  %3889 = vmatpush2.msra.mxu0 0.0
  %3890 = vmatprep.subr.mxu0 0.0
  %3891 = vmatpush2.msra.mxu0 0.0
  %3892 = vmatprep.subr.mxu0 0.0
  %3893 = vmatpush2.msra.mxu0 0.0
  %3894 = vmatprep.subr.mxu0 0.0
  %3895 = vmatpush2.msra.mxu0 0.0
  %3896 = vmatprep.subr.mxu0 0.0
  %3897 = vmatpush2.msra.mxu0 0.0
  %3898 = vmatprep.mubr.f32.mxu0 0.0
  %3899 = vmatmul.mubr.f32.gmra.mxu0 %v3779
  %v3900 = vpop.f32.mrf.mxu0
  %v3901 = vadd.f32 %v3832, %v3900
  %v3902 = vpop.f32.mrf.mxu0
  %3903 = vmatprep.mubr.f32.mxu0 0.0
  %3904 = vmatmul.mubr.f32.gmra.mxu0 %v3780
  %v3905 = vpop.f32.mrf.mxu0
  %v3906 = vadd.f32 %v3832, %v3905
  %v3907 = vpop.f32.mrf.mxu0
  %3908 = vmatprep.mubr.f32.mxu0 0.0
  %3909 = vmatmul.mubr.f32.gmra.mxu0 %v3781
  %v3910 = vpop.f32.mrf.mxu0
  %v3911 = vadd.f32 %v3832, %v3910
  %v3912 = vpop.f32.mrf.mxu0
  %3913 = vmatprep.mubr.f32.mxu0 0.0
  %3914 = vmatmul.mubr.f32.gmra.mxu0 %v3782
  %v3915 = vpop.f32.mrf.mxu0
  %v3916 = vadd.f32 %v3832, %v3915
  %v3917 = vpop.f32.mrf.mxu0
  %3918 = vmatprep.mubr.f32.mxu0 0.0
  %3919 = vmatmul.mubr.f32.gmra.mxu0 %v3783
  %v3920 = vpop.f32.mrf.mxu0
  %v3921 = vadd.f32 %v3832, %v3920
  %v3922 = vpop.f32.mrf.mxu0
  %3923 = vmatprep.mubr.f32.mxu0 0.0
  %3924 = vmatmul.mubr.f32.gmra.mxu0 %v3784
  %v3925 = vpop.f32.mrf.mxu0
  %v3926 = vadd.f32 %v3832, %v3925
  %v3927 = vpop.f32.mrf.mxu0
  %3928 = vmatprep.mubr.f32.mxu0 0.0
  %3929 = vmatmul.mubr.f32.gmra.mxu0 %v3785
  %v3930 = vpop.f32.mrf.mxu0
  %v3931 = vadd.f32 %v3832, %v3930
  %v3932 = vpop.f32.mrf.mxu0
  %3933 = vmatprep.mubr.f32.mxu0 0.0
  %3934 = vmatmul.mubr.f32.gmra.mxu0 %v3786
  %v3935 = vpop.f32.mrf.mxu0
  %v3936 = vadd.f32 %v3832, %v3935
  %v3937 = vpop.f32.mrf.mxu0
  %3938 = vmatprep.mubr.f32.mxu0 0.0
  %3939 = vmatmul.mubr.f32.gmra.mxu0 %v3787
  %v3940 = vpop.f32.mrf.mxu0
  %v3941 = vadd.f32 %v3832, %v3940
  %v3942 = vpop.f32.mrf.mxu0
  %3943 = vmatprep.mubr.f32.mxu0 0.0
  %3944 = vmatmul.mubr.f32.gmra.mxu0 %v3788
  %v3945 = vpop.f32.mrf.mxu0
  %v3946 = vadd.f32 %v3832, %v3945
  %v3947 = vpop.f32.mrf.mxu0
  %3948 = vmatprep.mubr.f32.mxu0 0.0
  %3949 = vmatmul.mubr.f32.gmra.mxu0 %v3789
  %v3950 = vpop.f32.mrf.mxu0
  %v3951 = vadd.f32 %v3832, %v3950
  %v3952 = vpop.f32.mrf.mxu0
  %3953 = vmatprep.mubr.f32.mxu0 0.0
  %3954 = vmatmul.mubr.f32.gmra.mxu0 %v3790
  %v3955 = vpop.f32.mrf.mxu0
  %v3956 = vadd.f32 %v3832, %v3955
  %v3957 = vpop.f32.mrf.mxu0
  %3958 = vmatprep.mubr.f32.mxu0 0.0
  %3959 = vmatmul.mubr.f32.gmra.mxu0 %v3791
  %v3960 = vpop.f32.mrf.mxu0
  %v3961 = vadd.f32 %v3832, %v3960
  %v3962 = vpop.f32.mrf.mxu0
  %3963 = vmatprep.mubr.f32.mxu0 0.0
  %3964 = vmatmul.mubr.f32.gmra.mxu0 %v3792
  %v3965 = vpop.f32.mrf.mxu0
  %v3966 = vadd.f32 %v3832, %v3965
  %v3967 = vpop.f32.mrf.mxu0
  %3968 = vmatprep.mubr.f32.mxu0 0.0
  %3969 = vmatmul.mubr.f32.gmra.mxu0 %v3793
  %v3970 = vpop.f32.mrf.mxu0
  %v3971 = vadd.f32 %v3832, %v3970
  %v3972 = vpop.f32.mrf.mxu0
  %3973 = vmatprep.mubr.f32.mxu0 0.0
  %3974 = vmatmul.mubr.f32.gmra.mxu0 %v3794
  %v3975 = vpop.f32.mrf.mxu0
  %v3976 = vadd.f32 %v3832, %v3975
  %v3977 = vpop.f32.mrf.mxu0
  %3978 = vmatprep.mubr.f32.mxu0 0.0
  %3979 = vmatmul.mubr.f32.gmra.mxu0 %v3795
  %v3980 = vpop.f32.mrf.mxu0
  %v3981 = vadd.f32 %v3832, %v3980
  %v3982 = vpop.f32.mrf.mxu0
  %3983 = vmatprep.mubr.f32.mxu0 0.0
  %3984 = vmatmul.mubr.f32.gmra.mxu0 %v3796
  %v3985 = vpop.f32.mrf.mxu0
  %v3986 = vadd.f32 %v3832, %v3985
  %v3987 = vpop.f32.mrf.mxu0
  %3988 = vmatprep.mubr.f32.mxu0 0.0
  %3989 = vmatmul.mubr.f32.gmra.mxu0 %v3797
  %v3990 = vpop.f32.mrf.mxu0
  %v3991 = vadd.f32 %v3832, %v3990
  %v3992 = vpop.f32.mrf.mxu0
  %3993 = vmatprep.mubr.f32.mxu0 0.0
  %3994 = vmatmul.mubr.f32.gmra.mxu0 %v3798
  %v3995 = vpop.f32.mrf.mxu0
  %v3996 = vadd.f32 %v3832, %v3995
  %v3997 = vpop.f32.mrf.mxu0
  %3998 = vmatprep.mubr.f32.mxu0 0.0
  %3999 = vmatmul.mubr.f32.gmra.mxu0 %v3799
  %v4000 = vpop.f32.mrf.mxu0
  %v4001 = vadd.f32 %v3832, %v4000
  %v4002 = vpop.f32.mrf.mxu0
  %4003 = vmatprep.mubr.f32.mxu0 0.0
  %4004 = vmatmul.mubr.f32.gmra.mxu0 %v3800
  %v4005 = vpop.f32.mrf.mxu0
  %v4006 = vadd.f32 %v3832, %v4005
  %v4007 = vpop.f32.mrf.mxu0
  %4008 = vmatprep.mubr.f32.mxu0 0.0
  %4009 = vmatmul.mubr.f32.gmra.mxu0 %v3801
  %v4010 = vpop.f32.mrf.mxu0
  %v4011 = vadd.f32 %v3832, %v4010
  %v4012 = vpop.f32.mrf.mxu0
  %4013 = vmatprep.mubr.f32.mxu0 0.0
  %4014 = vmatmul.mubr.f32.gmra.mxu0 %v3802
  %v4015 = vpop.f32.mrf.mxu0
  %v4016 = vadd.f32 %v3832, %v4015
  %v4017 = vpop.f32.mrf.mxu0
  %4018 = vmatprep.mubr.f32.mxu0 0.0
  %4019 = vmatmul.mubr.f32.gmra.mxu0 %v3803
  %v4020 = vpop.f32.mrf.mxu0
  %v4021 = vadd.f32 %v3832, %v4020
  %v4022 = vpop.f32.mrf.mxu0
  %4023 = vmatprep.mubr.f32.mxu0 0.0
  %4024 = vmatmul.mubr.f32.gmra.mxu0 %v3804
  %v4025 = vpop.f32.mrf.mxu0
  %v4026 = vadd.f32 %v3832, %v4025
  %v4027 = vpop.f32.mrf.mxu0
  %4028 = vmatprep.mubr.f32.mxu0 0.0
  %4029 = vmatmul.mubr.f32.gmra.mxu0 %v3805
  %v4030 = vpop.f32.mrf.mxu0
  %v4031 = vadd.f32 %v3832, %v4030
  %v4032 = vpop.f32.mrf.mxu0
  %4033 = vmatprep.mubr.f32.mxu0 0.0
  %4034 = vmatmul.mubr.f32.gmra.mxu0 %v3806
  %v4035 = vpop.f32.mrf.mxu0
  %v4036 = vadd.f32 %v3832, %v4035
  %v4037 = vpop.f32.mrf.mxu0
  %4038 = vmatprep.mubr.f32.mxu0 0.0
  %4039 = vmatmul.mubr.f32.gmra.mxu0 %v3807
  %v4040 = vpop.f32.mrf.mxu0
  %v4041 = vadd.f32 %v3832, %v4040
  %v4042 = vpop.f32.mrf.mxu0
  %4043 = vmatprep.mubr.f32.mxu0 0.0
  %4044 = vmatmul.mubr.f32.gmra.mxu0 %v3808
  %v4045 = vpop.f32.mrf.mxu0
  %v4046 = vadd.f32 %v3832, %v4045
  %v4047 = vpop.f32.mrf.mxu0
  %4048 = vmatprep.mubr.f32.mxu0 0.0
  %4049 = vmatmul.mubr.f32.gmra.mxu0 %v3809
  %v4050 = vpop.f32.mrf.mxu0
  %v4051 = vadd.f32 %v3832, %v4050
  %v4052 = vpop.f32.mrf.mxu0
  %4053 = vmatprep.mubr.f32.mxu0 0.0
  %4054 = vmatmul.mubr.f32.gmra.mxu0 %v3810
  %v4055 = vpop.f32.mrf.mxu0
  %v4056 = vadd.f32 %v3832, %v4055
  %v4057 = vpop.f32.mrf.mxu0
  %4058 = vdwg.mxu0
  %v4059 = vtanh.pop %v3901
  %v4060 = vtanh.pop %v3906
  %v4061 = vtanh.pop %v3911
  %v4062 = vtanh.pop %v3916
  %v4063 = vtanh.pop %v3921
  %v4064 = vtanh.pop %v3926
  %v4065 = vtanh.pop %v3931
  %v4066 = vtanh.pop %v3936
  %v4067 = vtanh.pop %v3941
  %v4068 = vtanh.pop %v3946
  %v4069 = vtanh.pop %v3951
  %v4070 = vtanh.pop %v3956
  %v4071 = vtanh.pop %v3961
  %v4072 = vtanh.pop %v3966
  %v4073 = vtanh.pop %v3971
  %v4074 = vtanh.pop %v3976
  %v4075 = vtanh.pop %v3981
  %v4076 = vtanh.pop %v3986
  %v4077 = vtanh.pop %v3991
  %v4078 = vtanh.pop %v3996
  %v4079 = vtanh.pop %v4001
  %v4080 = vtanh.pop %v4006
  %v4081 = vtanh.pop %v4011
  %v4082 = vtanh.pop %v4016
  %v4083 = vtanh.pop %v4021
  %v4084 = vtanh.pop %v4026
  %v4085 = vtanh.pop %v4031
  %v4086 = vtanh.pop %v4036
  %v4087 = vtanh.pop %v4041
  %v4088 = vtanh.pop %v4046
  %v4089 = vtanh.pop %v4051
  %v4090 = vtanh.pop %v4056
  %4091 = vst [vmem:[%s10] sm:$0xff] %v4059
  %4092 = vst [vmem:[%s10 + $0x8] sm:$0xff] %v4060
  %4093 = vst [vmem:[%s10 + $0x10] sm:$0xff] %v4061
  %4094 = vst [vmem:[%s10 + $0x18] sm:$0xff] %v4062
  %4095 = vst [vmem:[%s10 + $0x20] sm:$0xff] %v4063
  %4096 = vst [vmem:[%s10 + $0x28] sm:$0xff] %v4064
  %4097 = vst [vmem:[%s10 + $0x30] sm:$0xff] %v4065
  %4098 = vst [vmem:[%s10 + $0x38] sm:$0xff] %v4066
  %4099 = vst [vmem:[%s10 + $0x40] sm:$0xff] %v4067
  %4100 = vst [vmem:[%s10 + $0x48] sm:$0xff] %v4068
  %4101 = vst [vmem:[%s10 + $0x50] sm:$0xff] %v4069
  %4102 = vst [vmem:[%s10 + $0x58] sm:$0xff] %v4070
  %4103 = vst [vmem:[%s10 + $0x60] sm:$0xff] %v4071
  %4104 = vst [vmem:[%s10 + $0x68] sm:$0xff] %v4072
  %4105 = vst [vmem:[%s10 + $0x70] sm:$0xff] %v4073
  %4106 = vst [vmem:[%s10 + $0x78] sm:$0xff] %v4074
  %4107 = vst [vmem:[%s10 + $0x80] sm:$0xff] %v4075
  %4108 = vst [vmem:[%s10 + $0x88] sm:$0xff] %v4076
  %4109 = vst [vmem:[%s10 + $0x90] sm:$0xff] %v4077
  %4110 = vst [vmem:[%s10 + $0x98] sm:$0xff] %v4078
  %4111 = vst [vmem:[%s10 + $0xa0] sm:$0xff] %v4079
  %4112 = vst [vmem:[%s10 + $0xa8] sm:$0xff] %v4080
  %4113 = vst [vmem:[%s10 + $0xb0] sm:$0xff] %v4081
  %4114 = vst [vmem:[%s10 + $0xb8] sm:$0xff] %v4082
  %4115 = vst [vmem:[%s10 + $0xc0] sm:$0xff] %v4083
  %4116 = vst [vmem:[%s10 + $0xc8] sm:$0xff] %v4084
  %4117 = vst [vmem:[%s10 + $0xd0] sm:$0xff] %v4085
  %4118 = vst [vmem:[%s10 + $0xd8] sm:$0xff] %v4086
  %4119 = vst [vmem:[%s10 + $0xe0] sm:$0xff] %v4087
  %4120 = vst [vmem:[%s10 + $0xe8] sm:$0xff] %v4088
  %4121 = vst [vmem:[%s10 + $0xf0] sm:$0xff] %v4089
  %4122 = vst [vmem:[%s10 + $0xf8] sm:$0xff] %v4090
  // Predicated region
  $region38: #{encoder_forward.1} parent=0 // pred_check
    _
  $region39: #{encoder_forward.1} parent=0 // pred_check_branch
    %4124 = sbr.rel (0) target = $region41
  $region40: #{encoder_forward.1} parent=0 // pred_region
    _
  $region41: #{encoder_forward.1} parent=0 // pred_fallthru
    _
  // Predicated region
  $region42: #{encoder_forward.1} parent=0 // pred_check
    _
  $region43: #{encoder_forward.1} parent=0 // pred_check_branch
    %4126 = sbr.rel (0) target = $region45
  $region44: #{encoder_forward.1} parent=0 // pred_region
    _
  $region45: #{encoder_forward.1} parent=0 // pred_fallthru
    _
  // Predicated region
  $region46: #{encoder_forward.1} parent=0 // pred_check
    _
  $region47: #{encoder_forward.1} parent=0 // pred_check_branch
    %4128 = sbr.rel (0) target = $region49
  $region48: #{encoder_forward.1} parent=0 // pred_region
    _
  $region49: #{encoder_forward.1} parent=0 // pred_fallthru
    _
  // Predicated region
  $region50: #{encoder_forward.1} parent=0 // pred_check
    _
  $region51: #{encoder_forward.1} parent=0 // pred_check_branch
    %4130 = sbr.rel (0) target = $region53
  $region52: #{encoder_forward.1} parent=0 // pred_region
    _
  $region53: #{encoder_forward.1} parent=0 // pred_fallthru
    _

</llo_original>
